<compile_context>
chip_gen: v7x
topology: tpu7x:2x2x1
jax: 0.10.0
libtpu: 0.0.40
codegen_flags: <defaults>
</compile_context>

<pallas_src>
import functools
import math

import jax
import jax.numpy as jnp
from jax.experimental import pallas as pl
from jax.experimental.pallas import tpu as pltpu


# --------------------------------------------------------------------------- #
# Small helpers
# --------------------------------------------------------------------------- #
def _layer_norm(x, g, b, eps=1e-5):
  mu = jnp.mean(x, axis=-1, keepdims=True)
  var = jnp.mean(jnp.square(x - mu), axis=-1, keepdims=True)
  return (x - mu) * jax.lax.rsqrt(var + eps) * g + b


def _gelu(x):
  # TODO(synk): the spec's custom GELU class body is not shown; tanh
  # approximation is used (erf-exact GELU differs only at ~1e-3 level).
  c = 0.7978845608028654  # sqrt(2/pi)
  return 0.5 * x * (1.0 + jnp.tanh(c * (x + 0.044715 * x * x * x)))


# --------------------------------------------------------------------------- #
# Fused encoder-stack kernel: grid = (batch,), whole sequence per program.
# All weights for all layers are VMEM-resident (stacked on a leading L axis).
# --------------------------------------------------------------------------- #
def encoder_stack_kernel(x_ref,
                         ln1_g_ref, ln1_b_ref, wqkv_ref, bqkv_ref,
                         wo_ref, bo_ref, ln2_g_ref, ln2_b_ref,
                         w1_ref, b1_ref, w2_ref, b2_ref,
                         o_ref, *, n_head, n_layers):
  S, D = x_ref.shape[1], x_ref.shape[2]
  dh = D // n_head
  bf16 = jnp.bfloat16
  f32 = jnp.float32

  def split_heads(t):  # (S, D) -> (H, S, dh) via static lane slices + stack
    return jnp.stack([t[:, h * dh:(h + 1) * dh] for h in range(n_head)], axis=0)

  x = x_ref[0].astype(f32)                                  # (S, D) residual stream

  for l in range(n_layers):                                 # static unroll
    # ---- pre-norm self-attention block ---------------------------------- #
    xn = _layer_norm(x, ln1_g_ref[l], ln1_b_ref[l])
    qkv = jnp.dot(xn.astype(bf16), wqkv_ref[l],
                  preferred_element_type=f32) + bqkv_ref[l]  # (S, 3D) one MXU pass
    qh = split_heads(qkv[:, :D]).astype(bf16)                # 1/sqrt(dh) pre-folded
    kh = split_heads(qkv[:, D:2 * D]).astype(bf16)
    vh = split_heads(qkv[:, 2 * D:]).astype(bf16)
    # head-batched matmuls (batch dim leading): (H,S,dh) x (H,S,dh) -> (H,S,S)
    s = jnp.einsum('hqd,hkd->hqk', qh, kh, preferred_element_type=f32)
    # whole sequence in VMEM -> plain one-pass softmax (no online-softmax state)
    s = s - jnp.max(s, axis=-1, keepdims=True)
    p = jnp.exp(s)
    p = p * pl.reciprocal(jnp.sum(p, axis=-1, keepdims=True), approx=True)
    attn = jnp.einsum('hqk,hkd->hqd', p.astype(bf16), vh,
                      preferred_element_type=f32)            # (H, S, dh)
    # merge heads back to lane-dense (S, D) in PyTorch concat order
    attn = jnp.concatenate([attn[h] for h in range(n_head)], axis=-1)
    proj = jnp.dot(attn.astype(bf16), wo_ref[l],
                   preferred_element_type=f32) + bo_ref[l]
    x = x + proj                                             # residual 1 (dropout=0)

    # ---- pre-norm GELU MLP block ----------------------------------------- #
    xn2 = _layer_norm(x, ln2_g_ref[l], ln2_b_ref[l])
    h1 = jnp.dot(xn2.astype(bf16), w1_ref[l],
                 preferred_element_type=f32) + b1_ref[l]
    h1 = _gelu(h1)
    ff = jnp.dot(h1.astype(bf16), w2_ref[l],
                 preferred_element_type=f32) + b2_ref[l]
    x = x + ff                                               # residual 2 (dropout=0)

  o_ref[0] = x.astype(o_ref.dtype)


# --------------------------------------------------------------------------- #
# Wrapper
# --------------------------------------------------------------------------- #
def transformer_encoder(x_sbd, params, n_head, n_layers):
  """x_sbd: (S, B, D) like PyTorch batch_first=False.  Returns (S, B, D)."""
  S, B, D = x_sbd.shape
  F = params['w1'].shape[-1]
  L = n_layers
  x = jnp.transpose(x_sbd, (1, 0, 2))                       # (B, S, D), once

  def full(shape):                                          # whole-array block
    return pl.BlockSpec(shape, lambda b, _s=shape: (0,) * len(_s))

  x_spec = pl.BlockSpec((1, S, D), lambda b: (b, 0, 0))

  out = pl.pallas_call(
      functools.partial(encoder_stack_kernel, n_head=n_head, n_layers=L),
      grid=(B,),
      in_specs=[
          x_spec,
          full((L, 1, D)), full((L, 1, D)),                  # ln1 gamma / beta
          full((L, D, 3 * D)), full((L, 1, 3 * D)),          # fused Wqkv / bqkv
          full((L, D, D)), full((L, 1, D)),                  # Wo / bo
          full((L, 1, D)), full((L, 1, D)),                  # ln2 gamma / beta
          full((L, D, F)), full((L, 1, F)),                  # W1 / b1
          full((L, F, D)), full((L, 1, D)),                  # W2 / b2
      ],
      out_specs=x_spec,
      out_shape=jax.ShapeDtypeStruct((B, S, D), x.dtype),
      compiler_params=pltpu.CompilerParams(
          dimension_semantics=("parallel",)),
  )(x, params['ln1_g'], params['ln1_b'], params['wqkv'], params['bqkv'],
    params['wo'], params['bo'], params['ln2_g'], params['ln2_b'],
    params['w1'], params['b1'], params['w2'], params['b2'])

  return jnp.transpose(out, (1, 0, 2))


# --------------------------------------------------------------------------- #
# Parameters (PyTorch convention) and kernel-ready preparation
# --------------------------------------------------------------------------- #
def init_layer_params(key, d_model, d_ff):
  """Raw synthetic parameters, PyTorch shapes: Linear W is (out, in)."""
  ks = jax.random.split(key, 8)
  s = 0.02
  return dict(
      ln1_g=jnp.ones((d_model,), jnp.float32),
      ln1_b=jnp.zeros((d_model,), jnp.float32),
      wq=s * jax.random.normal(ks[0], (d_model, d_model), jnp.float32),
      wk=s * jax.random.normal(ks[1], (d_model, d_model), jnp.float32),
      wv=s * jax.random.normal(ks[2], (d_model, d_model), jnp.float32),
      bq=jnp.zeros((d_model,), jnp.float32),
      bk=jnp.zeros((d_model,), jnp.float32),
      bv=jnp.zeros((d_model,), jnp.float32),
      wo=s * jax.random.normal(ks[3], (d_model, d_model), jnp.float32),
      bo=jnp.zeros((d_model,), jnp.float32),
      ln2_g=jnp.ones((d_model,), jnp.float32),
      ln2_b=jnp.zeros((d_model,), jnp.float32),
      w1=s * jax.random.normal(ks[4], (d_ff, d_model), jnp.float32),
      b1=s * jax.random.normal(ks[5], (d_ff,), jnp.float32),
      w2=s * jax.random.normal(ks[6], (d_model, d_ff), jnp.float32),
      b2=s * jax.random.normal(ks[7], (d_model,), jnp.float32),
  )


def prepare_stack_params(raw_layers, n_head, weight_dtype=jnp.bfloat16):
  """One-time host-side prep: transpose weights to contraction-on-first-axis
  layout, fuse Wq/Wk/Wv into one (D,3D) matrix, fold 1/sqrt(dh) into the Q
  slice, cast matmul weights to bf16, and stack all layers on a leading axis."""
  d_model = raw_layers[0]['wq'].shape[1]
  assert d_model % n_head == 0
  scale = 1.0 / math.sqrt(d_model // n_head)
  row = lambda v: jnp.asarray(v, jnp.float32).reshape(1, -1)
  stack = lambda fn: jnp.stack([fn(p) for p in raw_layers], axis=0)
  return dict(
      ln1_g=stack(lambda p: row(p['ln1_g'])),
      ln1_b=stack(lambda p: row(p['ln1_b'])),
      wqkv=stack(lambda p: jnp.concatenate(
          [(p['wq'] * scale).T, p['wk'].T, p['wv'].T],
          axis=1).astype(weight_dtype)),
      bqkv=stack(lambda p: jnp.concatenate(
          [row(p['bq']) * scale, row(p['bk']), row(p['bv'])], axis=1)),
      wo=stack(lambda p: p['wo'].T.astype(weight_dtype)),
      bo=stack(lambda p: row(p['bo'])),
      ln2_g=stack(lambda p: row(p['ln2_g'])),
      ln2_b=stack(lambda p: row(p['ln2_b'])),
      w1=stack(lambda p: p['w1'].T.astype(weight_dtype)),
      b1=stack(lambda p: row(p['b1'])),
      w2=stack(lambda p: p['w2'].T.astype(weight_dtype)),
      b2=stack(lambda p: row(p['b2'])),
  )


# --------------------------------------------------------------------------- #
# Pure-JAX reference (f32 weights, PyTorch semantics) for a sanity check
# --------------------------------------------------------------------------- #
def _encoder_ref(x_sbd, raw_layers, n_head):
  x = x_sbd
  S, B, D = x.shape
  dh = D // n_head
  for p in raw_layers:
    xn = _layer_norm(x, p['ln1_g'], p['ln1_b'])
    q = xn @ p['wq'].T + p['bq']
    k = xn @ p['wk'].T + p['bk']
    v = xn @ p['wv'].T + p['bv']
    heads = lambda t: jnp.transpose(t.reshape(S, B, n_head, dh), (1, 2, 0, 3))
    qh, kh, vh = heads(q) / math.sqrt(dh), heads(k), heads(v)
    s = jnp.einsum('bhqd,bhkd->bhqk', qh, kh)
    pa = jax.nn.softmax(s, axis=-1)
    a = jnp.einsum('bhqk,bhkd->bhqd', pa, vh)
    a = jnp.transpose(a, (2, 0, 1, 3)).reshape(S, B, D)
    x = x + a @ p['wo'].T + p['bo']
    xn2 = _layer_norm(x, p['ln2_g'], p['ln2_b'])
    x = x + _gelu(xn2 @ p['w1'].T + p['b1']) @ p['w2'].T + p['b2']
  return x


if __name__ == "__main__":
  # Small, lane-aligned shapes: seq=16, batch=2, d_model=128, 4 heads,
  # d_feedforward=256, 2 encoder layers.
  S, B, D, H, F, L = 16, 2, 128, 4, 256, 2
  key = jax.random.PRNGKey(0)
  kx, *kls = jax.random.split(key, L + 1)
  x = jax.random.normal(kx, (S, B, D), jnp.float32)
  raw_layers = [init_layer_params(k, D, F) for k in kls]
  params = prepare_stack_params(raw_layers, H)

  # TODO(synk): attn_mask / key_padding_mask / dropout>0 paths are not exercised
  # (the reference encoder forward runs with context=None, masks=None, dropout=0).
  apply_fn = jax.jit(functools.partial(transformer_encoder, n_head=H, n_layers=L))
  y = apply_fn(x, params)
  jax.block_until_ready(y)
  assert y.shape == (S, B, D) and y.dtype == jnp.float32

  y_ref = _encoder_ref(x, raw_layers, H)
  max_err = float(jnp.max(jnp.abs(y - y_ref)))
  assert max_err < 1e-1, f"max abs error vs f32 reference too large: {max_err}"
  print("KERNEL_OK")
</pallas_src>

<mosaic_0001>
module attributes {stable_mosaic.version = 11 : i64} {
  func.func @encoder_stack_kernel(%arg0: i32, %arg1: memref<1x16x128xf32, #tpu.memory_space<vmem>>, %arg2: memref<2x1x128xf32, #tpu.memory_space<vmem>>, %arg3: memref<2x1x128xf32, #tpu.memory_space<vmem>>, %arg4: memref<2x128x384xbf16, #tpu.memory_space<vmem>>, %arg5: memref<2x1x384xf32, #tpu.memory_space<vmem>>, %arg6: memref<2x128x128xbf16, #tpu.memory_space<vmem>>, %arg7: memref<2x1x128xf32, #tpu.memory_space<vmem>>, %arg8: memref<2x1x128xf32, #tpu.memory_space<vmem>>, %arg9: memref<2x1x128xf32, #tpu.memory_space<vmem>>, %arg10: memref<2x128x256xbf16, #tpu.memory_space<vmem>>, %arg11: memref<2x1x256xf32, #tpu.memory_space<vmem>>, %arg12: memref<2x256x128xbf16, #tpu.memory_space<vmem>>, %arg13: memref<2x1x128xf32, #tpu.memory_space<vmem>>, %arg14: memref<1x16x128xf32, #tpu.memory_space<vmem>>) attributes {dimension_semantics = [#tpu.dimension_semantics<parallel>], iteration_bounds = array<i64: 2>, scalar_prefetch = 0 : i64, scratch_operands = 0 : i64, tpu.core_type = #tpu.core_type<tc>, window_params = [{transform_indices = @transform_0, window_bounds = array<i64: 1, 16, 128>}, {pipeline_mode = #tpu.pipeline_mode<synchronous>, transform_indices = @transform_1, window_bounds = array<i64: 2, 1, 128>}, {pipeline_mode = #tpu.pipeline_mode<synchronous>, transform_indices = @transform_2, window_bounds = array<i64: 2, 1, 128>}, {pipeline_mode = #tpu.pipeline_mode<synchronous>, transform_indices = @transform_3, window_bounds = array<i64: 2, 128, 384>}, {pipeline_mode = #tpu.pipeline_mode<synchronous>, transform_indices = @transform_4, window_bounds = array<i64: 2, 1, 384>}, {pipeline_mode = #tpu.pipeline_mode<synchronous>, transform_indices = @transform_5, window_bounds = array<i64: 2, 128, 128>}, {pipeline_mode = #tpu.pipeline_mode<synchronous>, transform_indices = @transform_6, window_bounds = array<i64: 2, 1, 128>}, {pipeline_mode = #tpu.pipeline_mode<synchronous>, transform_indices = @transform_7, window_bounds = array<i64: 2, 1, 128>}, {pipeline_mode = #tpu.pipeline_mode<synchronous>, transform_indices = @transform_8, window_bounds = array<i64: 2, 1, 128>}, {pipeline_mode = #tpu.pipeline_mode<synchronous>, transform_indices = @transform_9, window_bounds = array<i64: 2, 128, 256>}, {pipeline_mode = #tpu.pipeline_mode<synchronous>, transform_indices = @transform_10, window_bounds = array<i64: 2, 1, 256>}, {pipeline_mode = #tpu.pipeline_mode<synchronous>, transform_indices = @transform_11, window_bounds = array<i64: 2, 256, 128>}, {pipeline_mode = #tpu.pipeline_mode<synchronous>, transform_indices = @transform_12, window_bounds = array<i64: 2, 1, 128>}, {transform_indices = @transform_13, window_bounds = array<i64: 1, 16, 128>}]} {
    %c0 = arith.constant 0 : index
    %c0_0 = arith.constant 0 : index
    %c0_1 = arith.constant 0 : index
    %0 = vector.load %arg1[%c0, %c0_0, %c0_1] : memref<1x16x128xf32, #tpu.memory_space<vmem>>, vector<1x16x128xf32>
    %1 = vector.shape_cast %0 : vector<1x16x128xf32> to vector<16x128xf32>
    %c0_2 = arith.constant 0 : index
    %c0_3 = arith.constant 0 : index
    %c0_4 = arith.constant 0 : index
    %2 = vector.load %arg2[%c0_2, %c0_3, %c0_4] : memref<2x1x128xf32, #tpu.memory_space<vmem>>, vector<1x1x128xf32>
    %3 = vector.shape_cast %2 : vector<1x1x128xf32> to vector<1x128xf32>
    %c0_5 = arith.constant 0 : index
    %c0_6 = arith.constant 0 : index
    %c0_7 = arith.constant 0 : index
    %4 = vector.load %arg3[%c0_5, %c0_6, %c0_7] : memref<2x1x128xf32, #tpu.memory_space<vmem>>, vector<1x1x128xf32>
    %5 = vector.shape_cast %4 : vector<1x1x128xf32> to vector<1x128xf32>
    %cst = arith.constant dense<0.000000e+00> : vector<16xf32>
    %6 = vector.multi_reduction <add>, %1, %cst [1] : vector<16x128xf32> to vector<16xf32>
    %7 = vector.shape_cast %6 : vector<16xf32> to vector<16x1xf32>
    %cst_8 = arith.constant 1.280000e+02 : f32
    %8 = vector.broadcast %cst_8 : f32 to vector<16x1xf32>
    %9 = arith.divf %7, %8 : vector<16x1xf32>
    %10 = vector.broadcast %9 : vector<16x1xf32> to vector<16x128xf32>
    %11 = arith.subf %1, %10 : vector<16x128xf32>
    %12 = arith.mulf %11, %11 : vector<16x128xf32>
    %cst_9 = arith.constant dense<0.000000e+00> : vector<16xf32>
    %13 = vector.multi_reduction <add>, %12, %cst_9 [1] : vector<16x128xf32> to vector<16xf32>
    %14 = vector.shape_cast %13 : vector<16xf32> to vector<16x1xf32>
    %cst_10 = arith.constant 1.280000e+02 : f32
    %15 = vector.broadcast %cst_10 : f32 to vector<16x1xf32>
    %16 = arith.divf %14, %15 : vector<16x1xf32>
    %17 = vector.broadcast %9 : vector<16x1xf32> to vector<16x128xf32>
    %18 = arith.subf %1, %17 : vector<16x128xf32>
    %cst_11 = arith.constant 9.99999974E-6 : f32
    %19 = vector.broadcast %cst_11 : f32 to vector<16x1xf32>
    %20 = arith.addf %16, %19 : vector<16x1xf32>
    %21 = math.rsqrt %20 : vector<16x1xf32>
    %22 = vector.broadcast %21 : vector<16x1xf32> to vector<16x128xf32>
    %23 = arith.mulf %18, %22 : vector<16x128xf32>
    %24 = vector.broadcast %3 : vector<1x128xf32> to vector<16x128xf32>
    %25 = arith.mulf %23, %24 : vector<16x128xf32>
    %26 = vector.broadcast %5 : vector<1x128xf32> to vector<16x128xf32>
    %27 = arith.addf %25, %26 : vector<16x128xf32>
    %28 = arith.truncf %27 : vector<16x128xf32> to vector<16x128xbf16>
    %c0_12 = arith.constant 0 : index
    %c0_13 = arith.constant 0 : index
    %c0_14 = arith.constant 0 : index
    %29 = vector.load %arg4[%c0_12, %c0_13, %c0_14] : memref<2x128x384xbf16, #tpu.memory_space<vmem>>, vector<1x128x384xbf16>
    %30 = vector.shape_cast %29 : vector<1x128x384xbf16> to vector<128x384xbf16>
    %cst_15 = arith.constant dense<0.000000e+00> : vector<16x384xf32>
    %31 = tpu.matmul %28, %30, %cst_15 {dimension_numbers = #tpu.dot_dimension_numbers<[1], [0], [0], [1], [0, 0, 1, 1], [], []>} : vector<16x128xbf16>, vector<128x384xbf16>, vector<16x384xf32> -> vector<16x384xf32>
    %c0_16 = arith.constant 0 : index
    %c0_17 = arith.constant 0 : index
    %c0_18 = arith.constant 0 : index
    %32 = vector.load %arg5[%c0_16, %c0_17, %c0_18] : memref<2x1x384xf32, #tpu.memory_space<vmem>>, vector<1x1x384xf32>
    %33 = vector.shape_cast %32 : vector<1x1x384xf32> to vector<1x384xf32>
    %34 = vector.broadcast %33 : vector<1x384xf32> to vector<16x384xf32>
    %35 = arith.addf %31, %34 : vector<16x384xf32>
    %36 = vector.extract_strided_slice %35 {offsets = [0, 0], sizes = [16, 128], strides = [1, 1]} : vector<16x384xf32> to vector<16x128xf32>
    %37 = vector.extract_strided_slice %36 {offsets = [0, 0], sizes = [16, 32], strides = [1, 1]} : vector<16x128xf32> to vector<16x32xf32>
    %38 = vector.extract_strided_slice %36 {offsets = [0, 32], sizes = [16, 32], strides = [1, 1]} : vector<16x128xf32> to vector<16x32xf32>
    %39 = vector.extract_strided_slice %36 {offsets = [0, 64], sizes = [16, 32], strides = [1, 1]} : vector<16x128xf32> to vector<16x32xf32>
    %40 = vector.extract_strided_slice %36 {offsets = [0, 96], sizes = [16, 32], strides = [1, 1]} : vector<16x128xf32> to vector<16x32xf32>
    %41 = vector.shape_cast %37 : vector<16x32xf32> to vector<1x16x32xf32>
    %42 = vector.shape_cast %38 : vector<16x32xf32> to vector<1x16x32xf32>
    %43 = vector.shape_cast %39 : vector<16x32xf32> to vector<1x16x32xf32>
    %44 = vector.shape_cast %40 : vector<16x32xf32> to vector<1x16x32xf32>
    %45 = tpu.concatenate %41, %42, %43, %44 in 0 : vector<1x16x32xf32>, vector<1x16x32xf32>, vector<1x16x32xf32>, vector<1x16x32xf32> -> vector<4x16x32xf32>
    %46 = arith.truncf %45 : vector<4x16x32xf32> to vector<4x16x32xbf16>
    %47 = vector.extract_strided_slice %35 {offsets = [0, 128], sizes = [16, 128], strides = [1, 1]} : vector<16x384xf32> to vector<16x128xf32>
    %48 = vector.extract_strided_slice %47 {offsets = [0, 0], sizes = [16, 32], strides = [1, 1]} : vector<16x128xf32> to vector<16x32xf32>
    %49 = vector.extract_strided_slice %47 {offsets = [0, 32], sizes = [16, 32], strides = [1, 1]} : vector<16x128xf32> to vector<16x32xf32>
    %50 = vector.extract_strided_slice %47 {offsets = [0, 64], sizes = [16, 32], strides = [1, 1]} : vector<16x128xf32> to vector<16x32xf32>
    %51 = vector.extract_strided_slice %47 {offsets = [0, 96], sizes = [16, 32], strides = [1, 1]} : vector<16x128xf32> to vector<16x32xf32>
    %52 = vector.shape_cast %48 : vector<16x32xf32> to vector<1x16x32xf32>
    %53 = vector.shape_cast %49 : vector<16x32xf32> to vector<1x16x32xf32>
    %54 = vector.shape_cast %50 : vector<16x32xf32> to vector<1x16x32xf32>
    %55 = vector.shape_cast %51 : vector<16x32xf32> to vector<1x16x32xf32>
    %56 = tpu.concatenate %52, %53, %54, %55 in 0 : vector<1x16x32xf32>, vector<1x16x32xf32>, vector<1x16x32xf32>, vector<1x16x32xf32> -> vector<4x16x32xf32>
    %57 = arith.truncf %56 : vector<4x16x32xf32> to vector<4x16x32xbf16>
    %58 = vector.extract_strided_slice %35 {offsets = [0, 256], sizes = [16, 128], strides = [1, 1]} : vector<16x384xf32> to vector<16x128xf32>
    %59 = vector.extract_strided_slice %58 {offsets = [0, 0], sizes = [16, 32], strides = [1, 1]} : vector<16x128xf32> to vector<16x32xf32>
    %60 = vector.extract_strided_slice %58 {offsets = [0, 32], sizes = [16, 32], strides = [1, 1]} : vector<16x128xf32> to vector<16x32xf32>
    %61 = vector.extract_strided_slice %58 {offsets = [0, 64], sizes = [16, 32], strides = [1, 1]} : vector<16x128xf32> to vector<16x32xf32>
    %62 = vector.extract_strided_slice %58 {offsets = [0, 96], sizes = [16, 32], strides = [1, 1]} : vector<16x128xf32> to vector<16x32xf32>
    %63 = vector.shape_cast %59 : vector<16x32xf32> to vector<1x16x32xf32>
    %64 = vector.shape_cast %60 : vector<16x32xf32> to vector<1x16x32xf32>
    %65 = vector.shape_cast %61 : vector<16x32xf32> to vector<1x16x32xf32>
    %66 = vector.shape_cast %62 : vector<16x32xf32> to vector<1x16x32xf32>
    %67 = tpu.concatenate %63, %64, %65, %66 in 0 : vector<1x16x32xf32>, vector<1x16x32xf32>, vector<1x16x32xf32>, vector<1x16x32xf32> -> vector<4x16x32xf32>
    %68 = arith.truncf %67 : vector<4x16x32xf32> to vector<4x16x32xbf16>
    "tpu.trace_start"() <{level = 10 : i32, message = "hqd,hkd->hqk"}> : () -> ()
    %cst_19 = arith.constant dense<0.000000e+00> : vector<4x16x16xf32>
    %69 = tpu.matmul %46, %57, %cst_19 {dimension_numbers = #tpu.dot_dimension_numbers<[2], [2], [1], [1], [0, 0, 0, 1, 1, 1], [0], [0]>} : vector<4x16x32xbf16>, vector<4x16x32xbf16>, vector<4x16x16xf32> -> vector<4x16x16xf32>
    "tpu.trace_stop"() : () -> ()
    %cst_20 = arith.constant dense<0xFF800000> : vector<4x16xf32>
    %70 = vector.multi_reduction <maximumf>, %69, %cst_20 [2] : vector<4x16x16xf32> to vector<4x16xf32>
    %71 = vector.shape_cast %70 : vector<4x16xf32> to vector<4x16x1xf32>
    %72 = vector.broadcast %71 : vector<4x16x1xf32> to vector<4x16x16xf32>
    %73 = arith.subf %69, %72 : vector<4x16x16xf32>
    %74 = math.exp %73 : vector<4x16x16xf32>
    %cst_21 = arith.constant dense<0.000000e+00> : vector<4x16xf32>
    %75 = vector.multi_reduction <add>, %74, %cst_21 [2] : vector<4x16x16xf32> to vector<4x16xf32>
    %76 = vector.shape_cast %75 : vector<4x16xf32> to vector<4x16x1xf32>
    %77 = tpu.reciprocal %76 {approx = true} : vector<4x16x1xf32> -> vector<4x16x1xf32>
    %78 = vector.broadcast %77 : vector<4x16x1xf32> to vector<4x16x16xf32>
    %79 = arith.mulf %74, %78 : vector<4x16x16xf32>
    %80 = arith.truncf %79 : vector<4x16x16xf32> to vector<4x16x16xbf16>
    "tpu.trace_start"() <{level = 10 : i32, message = "hqk,hkd->hqd"}> : () -> ()
    %cst_22 = arith.constant dense<0.000000e+00> : vector<4x16x32xf32>
    %81 = tpu.matmul %80, %68, %cst_22 {dimension_numbers = #tpu.dot_dimension_numbers<[2], [1], [1], [2], [0, 0, 0, 1, 1, 2], [0], [0]>} : vector<4x16x16xbf16>, vector<4x16x32xbf16>, vector<4x16x32xf32> -> vector<4x16x32xf32>
    "tpu.trace_stop"() : () -> ()
    %82 = vector.extract_strided_slice %81 {offsets = [0, 0, 0], sizes = [1, 16, 32], strides = [1, 1, 1]} : vector<4x16x32xf32> to vector<1x16x32xf32>
    %83 = vector.shape_cast %82 : vector<1x16x32xf32> to vector<16x32xf32>
    %84 = vector.extract_strided_slice %81 {offsets = [1, 0, 0], sizes = [1, 16, 32], strides = [1, 1, 1]} : vector<4x16x32xf32> to vector<1x16x32xf32>
    %85 = vector.shape_cast %84 : vector<1x16x32xf32> to vector<16x32xf32>
    %86 = vector.extract_strided_slice %81 {offsets = [2, 0, 0], sizes = [1, 16, 32], strides = [1, 1, 1]} : vector<4x16x32xf32> to vector<1x16x32xf32>
    %87 = vector.shape_cast %86 : vector<1x16x32xf32> to vector<16x32xf32>
    %88 = vector.extract_strided_slice %81 {offsets = [3, 0, 0], sizes = [1, 16, 32], strides = [1, 1, 1]} : vector<4x16x32xf32> to vector<1x16x32xf32>
    %89 = vector.shape_cast %88 : vector<1x16x32xf32> to vector<16x32xf32>
    %90 = tpu.concatenate %83, %85, %87, %89 in 1 : vector<16x32xf32>, vector<16x32xf32>, vector<16x32xf32>, vector<16x32xf32> -> vector<16x128xf32>
    %91 = arith.truncf %90 : vector<16x128xf32> to vector<16x128xbf16>
    %c0_23 = arith.constant 0 : index
    %c0_24 = arith.constant 0 : index
    %c0_25 = arith.constant 0 : index
    %92 = vector.load %arg6[%c0_23, %c0_24, %c0_25] : memref<2x128x128xbf16, #tpu.memory_space<vmem>>, vector<1x128x128xbf16>
    %93 = vector.shape_cast %92 : vector<1x128x128xbf16> to vector<128x128xbf16>
    %cst_26 = arith.constant dense<0.000000e+00> : vector<16x128xf32>
    %94 = tpu.matmul %91, %93, %cst_26 {dimension_numbers = #tpu.dot_dimension_numbers<[1], [0], [0], [1], [0, 0, 1, 1], [], []>} : vector<16x128xbf16>, vector<128x128xbf16>, vector<16x128xf32> -> vector<16x128xf32>
    %c0_27 = arith.constant 0 : index
    %c0_28 = arith.constant 0 : index
    %c0_29 = arith.constant 0 : index
    %95 = vector.load %arg7[%c0_27, %c0_28, %c0_29] : memref<2x1x128xf32, #tpu.memory_space<vmem>>, vector<1x1x128xf32>
    %96 = vector.shape_cast %95 : vector<1x1x128xf32> to vector<1x128xf32>
    %97 = vector.broadcast %96 : vector<1x128xf32> to vector<16x128xf32>
    %98 = arith.addf %94, %97 : vector<16x128xf32>
    %99 = arith.addf %1, %98 : vector<16x128xf32>
    %c0_30 = arith.constant 0 : index
    %c0_31 = arith.constant 0 : index
    %c0_32 = arith.constant 0 : index
    %100 = vector.load %arg8[%c0_30, %c0_31, %c0_32] : memref<2x1x128xf32, #tpu.memory_space<vmem>>, vector<1x1x128xf32>
    %101 = vector.shape_cast %100 : vector<1x1x128xf32> to vector<1x128xf32>
    %c0_33 = arith.constant 0 : index
    %c0_34 = arith.constant 0 : index
    %c0_35 = arith.constant 0 : index
    %102 = vector.load %arg9[%c0_33, %c0_34, %c0_35] : memref<2x1x128xf32, #tpu.memory_space<vmem>>, vector<1x1x128xf32>
    %103 = vector.shape_cast %102 : vector<1x1x128xf32> to vector<1x128xf32>
    %cst_36 = arith.constant dense<0.000000e+00> : vector<16xf32>
    %104 = vector.multi_reduction <add>, %99, %cst_36 [1] : vector<16x128xf32> to vector<16xf32>
    %105 = vector.shape_cast %104 : vector<16xf32> to vector<16x1xf32>
    %cst_37 = arith.constant 1.280000e+02 : f32
    %106 = vector.broadcast %cst_37 : f32 to vector<16x1xf32>
    %107 = arith.divf %105, %106 : vector<16x1xf32>
    %108 = vector.broadcast %107 : vector<16x1xf32> to vector<16x128xf32>
    %109 = arith.subf %99, %108 : vector<16x128xf32>
    %110 = arith.mulf %109, %109 : vector<16x128xf32>
    %cst_38 = arith.constant dense<0.000000e+00> : vector<16xf32>
    %111 = vector.multi_reduction <add>, %110, %cst_38 [1] : vector<16x128xf32> to vector<16xf32>
    %112 = vector.shape_cast %111 : vector<16xf32> to vector<16x1xf32>
    %cst_39 = arith.constant 1.280000e+02 : f32
    %113 = vector.broadcast %cst_39 : f32 to vector<16x1xf32>
    %114 = arith.divf %112, %113 : vector<16x1xf32>
    %115 = vector.broadcast %107 : vector<16x1xf32> to vector<16x128xf32>
    %116 = arith.subf %99, %115 : vector<16x128xf32>
    %cst_40 = arith.constant 9.99999974E-6 : f32
    %117 = vector.broadcast %cst_40 : f32 to vector<16x1xf32>
    %118 = arith.addf %114, %117 : vector<16x1xf32>
    %119 = math.rsqrt %118 : vector<16x1xf32>
    %120 = vector.broadcast %119 : vector<16x1xf32> to vector<16x128xf32>
    %121 = arith.mulf %116, %120 : vector<16x128xf32>
    %122 = vector.broadcast %101 : vector<1x128xf32> to vector<16x128xf32>
    %123 = arith.mulf %121, %122 : vector<16x128xf32>
    %124 = vector.broadcast %103 : vector<1x128xf32> to vector<16x128xf32>
    %125 = arith.addf %123, %124 : vector<16x128xf32>
    %126 = arith.truncf %125 : vector<16x128xf32> to vector<16x128xbf16>
    %c0_41 = arith.constant 0 : index
    %c0_42 = arith.constant 0 : index
    %c0_43 = arith.constant 0 : index
    %127 = vector.load %arg10[%c0_41, %c0_42, %c0_43] : memref<2x128x256xbf16, #tpu.memory_space<vmem>>, vector<1x128x256xbf16>
    %128 = vector.shape_cast %127 : vector<1x128x256xbf16> to vector<128x256xbf16>
    %cst_44 = arith.constant dense<0.000000e+00> : vector<16x256xf32>
    %129 = tpu.matmul %126, %128, %cst_44 {dimension_numbers = #tpu.dot_dimension_numbers<[1], [0], [0], [1], [0, 0, 1, 1], [], []>} : vector<16x128xbf16>, vector<128x256xbf16>, vector<16x256xf32> -> vector<16x256xf32>
    %c0_45 = arith.constant 0 : index
    %c0_46 = arith.constant 0 : index
    %c0_47 = arith.constant 0 : index
    %130 = vector.load %arg11[%c0_45, %c0_46, %c0_47] : memref<2x1x256xf32, #tpu.memory_space<vmem>>, vector<1x1x256xf32>
    %131 = vector.shape_cast %130 : vector<1x1x256xf32> to vector<1x256xf32>
    %132 = vector.broadcast %131 : vector<1x256xf32> to vector<16x256xf32>
    %133 = arith.addf %129, %132 : vector<16x256xf32>
    %cst_48 = arith.constant 5.000000e-01 : f32
    %134 = vector.broadcast %cst_48 : f32 to vector<16x256xf32>
    %135 = arith.mulf %134, %133 : vector<16x256xf32>
    %cst_49 = arith.constant 4.471500e-02 : f32
    %136 = vector.broadcast %cst_49 : f32 to vector<16x256xf32>
    %137 = arith.mulf %136, %133 : vector<16x256xf32>
    %138 = arith.mulf %137, %133 : vector<16x256xf32>
    %139 = arith.mulf %138, %133 : vector<16x256xf32>
    %140 = arith.addf %133, %139 : vector<16x256xf32>
    %cst_50 = arith.constant 0.797884583 : f32
    %141 = vector.broadcast %cst_50 : f32 to vector<16x256xf32>
    %142 = arith.mulf %141, %140 : vector<16x256xf32>
    %143 = math.tanh %142 : vector<16x256xf32>
    %cst_51 = arith.constant 1.000000e+00 : f32
    %144 = vector.broadcast %cst_51 : f32 to vector<16x256xf32>
    %145 = arith.addf %144, %143 : vector<16x256xf32>
    %146 = arith.mulf %135, %145 : vector<16x256xf32>
    %147 = arith.truncf %146 : vector<16x256xf32> to vector<16x256xbf16>
    %c0_52 = arith.constant 0 : index
    %c0_53 = arith.constant 0 : index
    %c0_54 = arith.constant 0 : index
    %148 = vector.load %arg12[%c0_52, %c0_53, %c0_54] : memref<2x256x128xbf16, #tpu.memory_space<vmem>>, vector<1x256x128xbf16>
    %149 = vector.shape_cast %148 : vector<1x256x128xbf16> to vector<256x128xbf16>
    %cst_55 = arith.constant dense<0.000000e+00> : vector<16x128xf32>
    %150 = tpu.matmul %147, %149, %cst_55 {dimension_numbers = #tpu.dot_dimension_numbers<[1], [0], [0], [1], [0, 0, 1, 1], [], []>} : vector<16x256xbf16>, vector<256x128xbf16>, vector<16x128xf32> -> vector<16x128xf32>
    %c0_56 = arith.constant 0 : index
    %c0_57 = arith.constant 0 : index
    %c0_58 = arith.constant 0 : index
    %151 = vector.load %arg13[%c0_56, %c0_57, %c0_58] : memref<2x1x128xf32, #tpu.memory_space<vmem>>, vector<1x1x128xf32>
    %152 = vector.shape_cast %151 : vector<1x1x128xf32> to vector<1x128xf32>
    %153 = vector.broadcast %152 : vector<1x128xf32> to vector<16x128xf32>
    %154 = arith.addf %150, %153 : vector<16x128xf32>
    %155 = arith.addf %99, %154 : vector<16x128xf32>
    %c1 = arith.constant 1 : index
    %c0_59 = arith.constant 0 : index
    %c0_60 = arith.constant 0 : index
    %156 = vector.load %arg2[%c1, %c0_59, %c0_60] : memref<2x1x128xf32, #tpu.memory_space<vmem>>, vector<1x1x128xf32>
    %157 = vector.shape_cast %156 : vector<1x1x128xf32> to vector<1x128xf32>
    %c1_61 = arith.constant 1 : index
    %c0_62 = arith.constant 0 : index
    %c0_63 = arith.constant 0 : index
    %158 = vector.load %arg3[%c1_61, %c0_62, %c0_63] : memref<2x1x128xf32, #tpu.memory_space<vmem>>, vector<1x1x128xf32>
    %159 = vector.shape_cast %158 : vector<1x1x128xf32> to vector<1x128xf32>
    %cst_64 = arith.constant dense<0.000000e+00> : vector<16xf32>
    %160 = vector.multi_reduction <add>, %155, %cst_64 [1] : vector<16x128xf32> to vector<16xf32>
    %161 = vector.shape_cast %160 : vector<16xf32> to vector<16x1xf32>
    %cst_65 = arith.constant 1.280000e+02 : f32
    %162 = vector.broadcast %cst_65 : f32 to vector<16x1xf32>
    %163 = arith.divf %161, %162 : vector<16x1xf32>
    %164 = vector.broadcast %163 : vector<16x1xf32> to vector<16x128xf32>
    %165 = arith.subf %155, %164 : vector<16x128xf32>
    %166 = arith.mulf %165, %165 : vector<16x128xf32>
    %cst_66 = arith.constant dense<0.000000e+00> : vector<16xf32>
    %167 = vector.multi_reduction <add>, %166, %cst_66 [1] : vector<16x128xf32> to vector<16xf32>
    %168 = vector.shape_cast %167 : vector<16xf32> to vector<16x1xf32>
    %cst_67 = arith.constant 1.280000e+02 : f32
    %169 = vector.broadcast %cst_67 : f32 to vector<16x1xf32>
    %170 = arith.divf %168, %169 : vector<16x1xf32>
    %171 = vector.broadcast %163 : vector<16x1xf32> to vector<16x128xf32>
    %172 = arith.subf %155, %171 : vector<16x128xf32>
    %cst_68 = arith.constant 9.99999974E-6 : f32
    %173 = vector.broadcast %cst_68 : f32 to vector<16x1xf32>
    %174 = arith.addf %170, %173 : vector<16x1xf32>
    %175 = math.rsqrt %174 : vector<16x1xf32>
    %176 = vector.broadcast %175 : vector<16x1xf32> to vector<16x128xf32>
    %177 = arith.mulf %172, %176 : vector<16x128xf32>
    %178 = vector.broadcast %157 : vector<1x128xf32> to vector<16x128xf32>
    %179 = arith.mulf %177, %178 : vector<16x128xf32>
    %180 = vector.broadcast %159 : vector<1x128xf32> to vector<16x128xf32>
    %181 = arith.addf %179, %180 : vector<16x128xf32>
    %182 = arith.truncf %181 : vector<16x128xf32> to vector<16x128xbf16>
    %c1_69 = arith.constant 1 : index
    %c0_70 = arith.constant 0 : index
    %c0_71 = arith.constant 0 : index
    %183 = vector.load %arg4[%c1_69, %c0_70, %c0_71] : memref<2x128x384xbf16, #tpu.memory_space<vmem>>, vector<1x128x384xbf16>
    %184 = vector.shape_cast %183 : vector<1x128x384xbf16> to vector<128x384xbf16>
    %cst_72 = arith.constant dense<0.000000e+00> : vector<16x384xf32>
    %185 = tpu.matmul %182, %184, %cst_72 {dimension_numbers = #tpu.dot_dimension_numbers<[1], [0], [0], [1], [0, 0, 1, 1], [], []>} : vector<16x128xbf16>, vector<128x384xbf16>, vector<16x384xf32> -> vector<16x384xf32>
    %c1_73 = arith.constant 1 : index
    %c0_74 = arith.constant 0 : index
    %c0_75 = arith.constant 0 : index
    %186 = vector.load %arg5[%c1_73, %c0_74, %c0_75] : memref<2x1x384xf32, #tpu.memory_space<vmem>>, vector<1x1x384xf32>
    %187 = vector.shape_cast %186 : vector<1x1x384xf32> to vector<1x384xf32>
    %188 = vector.broadcast %187 : vector<1x384xf32> to vector<16x384xf32>
    %189 = arith.addf %185, %188 : vector<16x384xf32>
    %190 = vector.extract_strided_slice %189 {offsets = [0, 0], sizes = [16, 128], strides = [1, 1]} : vector<16x384xf32> to vector<16x128xf32>
    %191 = vector.extract_strided_slice %190 {offsets = [0, 0], sizes = [16, 32], strides = [1, 1]} : vector<16x128xf32> to vector<16x32xf32>
    %192 = vector.extract_strided_slice %190 {offsets = [0, 32], sizes = [16, 32], strides = [1, 1]} : vector<16x128xf32> to vector<16x32xf32>
    %193 = vector.extract_strided_slice %190 {offsets = [0, 64], sizes = [16, 32], strides = [1, 1]} : vector<16x128xf32> to vector<16x32xf32>
    %194 = vector.extract_strided_slice %190 {offsets = [0, 96], sizes = [16, 32], strides = [1, 1]} : vector<16x128xf32> to vector<16x32xf32>
    %195 = vector.shape_cast %191 : vector<16x32xf32> to vector<1x16x32xf32>
    %196 = vector.shape_cast %192 : vector<16x32xf32> to vector<1x16x32xf32>
    %197 = vector.shape_cast %193 : vector<16x32xf32> to vector<1x16x32xf32>
    %198 = vector.shape_cast %194 : vector<16x32xf32> to vector<1x16x32xf32>
    %199 = tpu.concatenate %195, %196, %197, %198 in 0 : vector<1x16x32xf32>, vector<1x16x32xf32>, vector<1x16x32xf32>, vector<1x16x32xf32> -> vector<4x16x32xf32>
    %200 = arith.truncf %199 : vector<4x16x32xf32> to vector<4x16x32xbf16>
    %201 = vector.extract_strided_slice %189 {offsets = [0, 128], sizes = [16, 128], strides = [1, 1]} : vector<16x384xf32> to vector<16x128xf32>
    %202 = vector.extract_strided_slice %201 {offsets = [0, 0], sizes = [16, 32], strides = [1, 1]} : vector<16x128xf32> to vector<16x32xf32>
    %203 = vector.extract_strided_slice %201 {offsets = [0, 32], sizes = [16, 32], strides = [1, 1]} : vector<16x128xf32> to vector<16x32xf32>
    %204 = vector.extract_strided_slice %201 {offsets = [0, 64], sizes = [16, 32], strides = [1, 1]} : vector<16x128xf32> to vector<16x32xf32>
    %205 = vector.extract_strided_slice %201 {offsets = [0, 96], sizes = [16, 32], strides = [1, 1]} : vector<16x128xf32> to vector<16x32xf32>
    %206 = vector.shape_cast %202 : vector<16x32xf32> to vector<1x16x32xf32>
    %207 = vector.shape_cast %203 : vector<16x32xf32> to vector<1x16x32xf32>
    %208 = vector.shape_cast %204 : vector<16x32xf32> to vector<1x16x32xf32>
    %209 = vector.shape_cast %205 : vector<16x32xf32> to vector<1x16x32xf32>
    %210 = tpu.concatenate %206, %207, %208, %209 in 0 : vector<1x16x32xf32>, vector<1x16x32xf32>, vector<1x16x32xf32>, vector<1x16x32xf32> -> vector<4x16x32xf32>
    %211 = arith.truncf %210 : vector<4x16x32xf32> to vector<4x16x32xbf16>
    %212 = vector.extract_strided_slice %189 {offsets = [0, 256], sizes = [16, 128], strides = [1, 1]} : vector<16x384xf32> to vector<16x128xf32>
    %213 = vector.extract_strided_slice %212 {offsets = [0, 0], sizes = [16, 32], strides = [1, 1]} : vector<16x128xf32> to vector<16x32xf32>
    %214 = vector.extract_strided_slice %212 {offsets = [0, 32], sizes = [16, 32], strides = [1, 1]} : vector<16x128xf32> to vector<16x32xf32>
    %215 = vector.extract_strided_slice %212 {offsets = [0, 64], sizes = [16, 32], strides = [1, 1]} : vector<16x128xf32> to vector<16x32xf32>
    %216 = vector.extract_strided_slice %212 {offsets = [0, 96], sizes = [16, 32], strides = [1, 1]} : vector<16x128xf32> to vector<16x32xf32>
    %217 = vector.shape_cast %213 : vector<16x32xf32> to vector<1x16x32xf32>
    %218 = vector.shape_cast %214 : vector<16x32xf32> to vector<1x16x32xf32>
    %219 = vector.shape_cast %215 : vector<16x32xf32> to vector<1x16x32xf32>
    %220 = vector.shape_cast %216 : vector<16x32xf32> to vector<1x16x32xf32>
    %221 = tpu.concatenate %217, %218, %219, %220 in 0 : vector<1x16x32xf32>, vector<1x16x32xf32>, vector<1x16x32xf32>, vector<1x16x32xf32> -> vector<4x16x32xf32>
    %222 = arith.truncf %221 : vector<4x16x32xf32> to vector<4x16x32xbf16>
    "tpu.trace_start"() <{level = 10 : i32, message = "hqd,hkd->hqk"}> : () -> ()
    %cst_76 = arith.constant dense<0.000000e+00> : vector<4x16x16xf32>
    %223 = tpu.matmul %200, %211, %cst_76 {dimension_numbers = #tpu.dot_dimension_numbers<[2], [2], [1], [1], [0, 0, 0, 1, 1, 1], [0], [0]>} : vector<4x16x32xbf16>, vector<4x16x32xbf16>, vector<4x16x16xf32> -> vector<4x16x16xf32>
    "tpu.trace_stop"() : () -> ()
    %cst_77 = arith.constant dense<0xFF800000> : vector<4x16xf32>
    %224 = vector.multi_reduction <maximumf>, %223, %cst_77 [2] : vector<4x16x16xf32> to vector<4x16xf32>
    %225 = vector.shape_cast %224 : vector<4x16xf32> to vector<4x16x1xf32>
    %226 = vector.broadcast %225 : vector<4x16x1xf32> to vector<4x16x16xf32>
    %227 = arith.subf %223, %226 : vector<4x16x16xf32>
    %228 = math.exp %227 : vector<4x16x16xf32>
    %cst_78 = arith.constant dense<0.000000e+00> : vector<4x16xf32>
    %229 = vector.multi_reduction <add>, %228, %cst_78 [2] : vector<4x16x16xf32> to vector<4x16xf32>
    %230 = vector.shape_cast %229 : vector<4x16xf32> to vector<4x16x1xf32>
    %231 = tpu.reciprocal %230 {approx = true} : vector<4x16x1xf32> -> vector<4x16x1xf32>
    %232 = vector.broadcast %231 : vector<4x16x1xf32> to vector<4x16x16xf32>
    %233 = arith.mulf %228, %232 : vector<4x16x16xf32>
    %234 = arith.truncf %233 : vector<4x16x16xf32> to vector<4x16x16xbf16>
    "tpu.trace_start"() <{level = 10 : i32, message = "hqk,hkd->hqd"}> : () -> ()
    %cst_79 = arith.constant dense<0.000000e+00> : vector<4x16x32xf32>
    %235 = tpu.matmul %234, %222, %cst_79 {dimension_numbers = #tpu.dot_dimension_numbers<[2], [1], [1], [2], [0, 0, 0, 1, 1, 2], [0], [0]>} : vector<4x16x16xbf16>, vector<4x16x32xbf16>, vector<4x16x32xf32> -> vector<4x16x32xf32>
    "tpu.trace_stop"() : () -> ()
    %236 = vector.extract_strided_slice %235 {offsets = [0, 0, 0], sizes = [1, 16, 32], strides = [1, 1, 1]} : vector<4x16x32xf32> to vector<1x16x32xf32>
    %237 = vector.shape_cast %236 : vector<1x16x32xf32> to vector<16x32xf32>
    %238 = vector.extract_strided_slice %235 {offsets = [1, 0, 0], sizes = [1, 16, 32], strides = [1, 1, 1]} : vector<4x16x32xf32> to vector<1x16x32xf32>
    %239 = vector.shape_cast %238 : vector<1x16x32xf32> to vector<16x32xf32>
    %240 = vector.extract_strided_slice %235 {offsets = [2, 0, 0], sizes = [1, 16, 32], strides = [1, 1, 1]} : vector<4x16x32xf32> to vector<1x16x32xf32>
    %241 = vector.shape_cast %240 : vector<1x16x32xf32> to vector<16x32xf32>
    %242 = vector.extract_strided_slice %235 {offsets = [3, 0, 0], sizes = [1, 16, 32], strides = [1, 1, 1]} : vector<4x16x32xf32> to vector<1x16x32xf32>
    %243 = vector.shape_cast %242 : vector<1x16x32xf32> to vector<16x32xf32>
    %244 = tpu.concatenate %237, %239, %241, %243 in 1 : vector<16x32xf32>, vector<16x32xf32>, vector<16x32xf32>, vector<16x32xf32> -> vector<16x128xf32>
    %245 = arith.truncf %244 : vector<16x128xf32> to vector<16x128xbf16>
    %c1_80 = arith.constant 1 : index
    %c0_81 = arith.constant 0 : index
    %c0_82 = arith.constant 0 : index
    %246 = vector.load %arg6[%c1_80, %c0_81, %c0_82] : memref<2x128x128xbf16, #tpu.memory_space<vmem>>, vector<1x128x128xbf16>
    %247 = vector.shape_cast %246 : vector<1x128x128xbf16> to vector<128x128xbf16>
    %cst_83 = arith.constant dense<0.000000e+00> : vector<16x128xf32>
    %248 = tpu.matmul %245, %247, %cst_83 {dimension_numbers = #tpu.dot_dimension_numbers<[1], [0], [0], [1], [0, 0, 1, 1], [], []>} : vector<16x128xbf16>, vector<128x128xbf16>, vector<16x128xf32> -> vector<16x128xf32>
    %c1_84 = arith.constant 1 : index
    %c0_85 = arith.constant 0 : index
    %c0_86 = arith.constant 0 : index
    %249 = vector.load %arg7[%c1_84, %c0_85, %c0_86] : memref<2x1x128xf32, #tpu.memory_space<vmem>>, vector<1x1x128xf32>
    %250 = vector.shape_cast %249 : vector<1x1x128xf32> to vector<1x128xf32>
    %251 = vector.broadcast %250 : vector<1x128xf32> to vector<16x128xf32>
    %252 = arith.addf %248, %251 : vector<16x128xf32>
    %253 = arith.addf %155, %252 : vector<16x128xf32>
    %c1_87 = arith.constant 1 : index
    %c0_88 = arith.constant 0 : index
    %c0_89 = arith.constant 0 : index
    %254 = vector.load %arg8[%c1_87, %c0_88, %c0_89] : memref<2x1x128xf32, #tpu.memory_space<vmem>>, vector<1x1x128xf32>
    %255 = vector.shape_cast %254 : vector<1x1x128xf32> to vector<1x128xf32>
    %c1_90 = arith.constant 1 : index
    %c0_91 = arith.constant 0 : index
    %c0_92 = arith.constant 0 : index
    %256 = vector.load %arg9[%c1_90, %c0_91, %c0_92] : memref<2x1x128xf32, #tpu.memory_space<vmem>>, vector<1x1x128xf32>
    %257 = vector.shape_cast %256 : vector<1x1x128xf32> to vector<1x128xf32>
    %cst_93 = arith.constant dense<0.000000e+00> : vector<16xf32>
    %258 = vector.multi_reduction <add>, %253, %cst_93 [1] : vector<16x128xf32> to vector<16xf32>
    %259 = vector.shape_cast %258 : vector<16xf32> to vector<16x1xf32>
    %cst_94 = arith.constant 1.280000e+02 : f32
    %260 = vector.broadcast %cst_94 : f32 to vector<16x1xf32>
    %261 = arith.divf %259, %260 : vector<16x1xf32>
    %262 = vector.broadcast %261 : vector<16x1xf32> to vector<16x128xf32>
    %263 = arith.subf %253, %262 : vector<16x128xf32>
    %264 = arith.mulf %263, %263 : vector<16x128xf32>
    %cst_95 = arith.constant dense<0.000000e+00> : vector<16xf32>
    %265 = vector.multi_reduction <add>, %264, %cst_95 [1] : vector<16x128xf32> to vector<16xf32>
    %266 = vector.shape_cast %265 : vector<16xf32> to vector<16x1xf32>
    %cst_96 = arith.constant 1.280000e+02 : f32
    %267 = vector.broadcast %cst_96 : f32 to vector<16x1xf32>
    %268 = arith.divf %266, %267 : vector<16x1xf32>
    %269 = vector.broadcast %261 : vector<16x1xf32> to vector<16x128xf32>
    %270 = arith.subf %253, %269 : vector<16x128xf32>
    %cst_97 = arith.constant 9.99999974E-6 : f32
    %271 = vector.broadcast %cst_97 : f32 to vector<16x1xf32>
    %272 = arith.addf %268, %271 : vector<16x1xf32>
    %273 = math.rsqrt %272 : vector<16x1xf32>
    %274 = vector.broadcast %273 : vector<16x1xf32> to vector<16x128xf32>
    %275 = arith.mulf %270, %274 : vector<16x128xf32>
    %276 = vector.broadcast %255 : vector<1x128xf32> to vector<16x128xf32>
    %277 = arith.mulf %275, %276 : vector<16x128xf32>
    %278 = vector.broadcast %257 : vector<1x128xf32> to vector<16x128xf32>
    %279 = arith.addf %277, %278 : vector<16x128xf32>
    %280 = arith.truncf %279 : vector<16x128xf32> to vector<16x128xbf16>
    %c1_98 = arith.constant 1 : index
    %c0_99 = arith.constant 0 : index
    %c0_100 = arith.constant 0 : index
    %281 = vector.load %arg10[%c1_98, %c0_99, %c0_100] : memref<2x128x256xbf16, #tpu.memory_space<vmem>>, vector<1x128x256xbf16>
    %282 = vector.shape_cast %281 : vector<1x128x256xbf16> to vector<128x256xbf16>
    %cst_101 = arith.constant dense<0.000000e+00> : vector<16x256xf32>
    %283 = tpu.matmul %280, %282, %cst_101 {dimension_numbers = #tpu.dot_dimension_numbers<[1], [0], [0], [1], [0, 0, 1, 1], [], []>} : vector<16x128xbf16>, vector<128x256xbf16>, vector<16x256xf32> -> vector<16x256xf32>
    %c1_102 = arith.constant 1 : index
    %c0_103 = arith.constant 0 : index
    %c0_104 = arith.constant 0 : index
    %284 = vector.load %arg11[%c1_102, %c0_103, %c0_104] : memref<2x1x256xf32, #tpu.memory_space<vmem>>, vector<1x1x256xf32>
    %285 = vector.shape_cast %284 : vector<1x1x256xf32> to vector<1x256xf32>
    %286 = vector.broadcast %285 : vector<1x256xf32> to vector<16x256xf32>
    %287 = arith.addf %283, %286 : vector<16x256xf32>
    %cst_105 = arith.constant 5.000000e-01 : f32
    %288 = vector.broadcast %cst_105 : f32 to vector<16x256xf32>
    %289 = arith.mulf %288, %287 : vector<16x256xf32>
    %cst_106 = arith.constant 4.471500e-02 : f32
    %290 = vector.broadcast %cst_106 : f32 to vector<16x256xf32>
    %291 = arith.mulf %290, %287 : vector<16x256xf32>
    %292 = arith.mulf %291, %287 : vector<16x256xf32>
    %293 = arith.mulf %292, %287 : vector<16x256xf32>
    %294 = arith.addf %287, %293 : vector<16x256xf32>
    %cst_107 = arith.constant 0.797884583 : f32
    %295 = vector.broadcast %cst_107 : f32 to vector<16x256xf32>
    %296 = arith.mulf %295, %294 : vector<16x256xf32>
    %297 = math.tanh %296 : vector<16x256xf32>
    %cst_108 = arith.constant 1.000000e+00 : f32
    %298 = vector.broadcast %cst_108 : f32 to vector<16x256xf32>
    %299 = arith.addf %298, %297 : vector<16x256xf32>
    %300 = arith.mulf %289, %299 : vector<16x256xf32>
    %301 = arith.truncf %300 : vector<16x256xf32> to vector<16x256xbf16>
    %c1_109 = arith.constant 1 : index
    %c0_110 = arith.constant 0 : index
    %c0_111 = arith.constant 0 : index
    %302 = vector.load %arg12[%c1_109, %c0_110, %c0_111] : memref<2x256x128xbf16, #tpu.memory_space<vmem>>, vector<1x256x128xbf16>
    %303 = vector.shape_cast %302 : vector<1x256x128xbf16> to vector<256x128xbf16>
    %cst_112 = arith.constant dense<0.000000e+00> : vector<16x128xf32>
    %304 = tpu.matmul %301, %303, %cst_112 {dimension_numbers = #tpu.dot_dimension_numbers<[1], [0], [0], [1], [0, 0, 1, 1], [], []>} : vector<16x256xbf16>, vector<256x128xbf16>, vector<16x128xf32> -> vector<16x128xf32>
    %c1_113 = arith.constant 1 : index
    %c0_114 = arith.constant 0 : index
    %c0_115 = arith.constant 0 : index
    %305 = vector.load %arg13[%c1_113, %c0_114, %c0_115] : memref<2x1x128xf32, #tpu.memory_space<vmem>>, vector<1x1x128xf32>
    %306 = vector.shape_cast %305 : vector<1x1x128xf32> to vector<1x128xf32>
    %307 = vector.broadcast %306 : vector<1x128xf32> to vector<16x128xf32>
    %308 = arith.addf %304, %307 : vector<16x128xf32>
    %309 = arith.addf %253, %308 : vector<16x128xf32>
    %c0_116 = arith.constant 0 : index
    %c0_117 = arith.constant 0 : index
    %c0_118 = arith.constant 0 : index
    %310 = vector.load %arg14[%c0_116, %c0_117, %c0_118] : memref<1x16x128xf32, #tpu.memory_space<vmem>>, vector<1x16x128xf32>
    %311 = vector.shape_cast %310 : vector<1x16x128xf32> to vector<16x128xf32>
    %312 = vector.shape_cast %309 : vector<16x128xf32> to vector<1x16x128xf32>
    tpu.vector_store %arg14[%c0_116, %c0_117, %c0_118], %312 {strides = array<i32>} : memref<1x16x128xf32, #tpu.memory_space<vmem>>, vector<1x16x128xf32>,
    return
  }
  func.func @transform_0(%arg0: i32) -> (i32, i32, i32) {
    %c0_i32 = arith.constant 0 : i32
    %c0_i32_0 = arith.constant 0 : i32
    %c0_i32_1 = arith.constant 0 : i32
    return %arg0, %c0_i32, %c0_i32_0 : i32, i32, i32
  }
  func.func @transform_1(%arg0: i32) -> (i32, i32, i32) {
    %c0_i32 = arith.constant 0 : i32
    %c0_i32_0 = arith.constant 0 : i32
    %c0_i32_1 = arith.constant 0 : i32
    %c0_i32_2 = arith.constant 0 : i32
    return %c0_i32, %c0_i32_0, %c0_i32_1 : i32, i32, i32
  }
  func.func @transform_2(%arg0: i32) -> (i32, i32, i32) {
    %c0_i32 = arith.constant 0 : i32
    %c0_i32_0 = arith.constant 0 : i32
    %c0_i32_1 = arith.constant 0 : i32
    %c0_i32_2 = arith.constant 0 : i32
    return %c0_i32, %c0_i32_0, %c0_i32_1 : i32, i32, i32
  }
  func.func @transform_3(%arg0: i32) -> (i32, i32, i32) {
    %c0_i32 = arith.constant 0 : i32
    %c0_i32_0 = arith.constant 0 : i32
    %c0_i32_1 = arith.constant 0 : i32
    %c0_i32_2 = arith.constant 0 : i32
    return %c0_i32, %c0_i32_0, %c0_i32_1 : i32, i32, i32
  }
  func.func @transform_4(%arg0: i32) -> (i32, i32, i32) {
    %c0_i32 = arith.constant 0 : i32
    %c0_i32_0 = arith.constant 0 : i32
    %c0_i32_1 = arith.constant 0 : i32
    %c0_i32_2 = arith.constant 0 : i32
    return %c0_i32, %c0_i32_0, %c0_i32_1 : i32, i32, i32
  }
  func.func @transform_5(%arg0: i32) -> (i32, i32, i32) {
    %c0_i32 = arith.constant 0 : i32
    %c0_i32_0 = arith.constant 0 : i32
    %c0_i32_1 = arith.constant 0 : i32
    %c0_i32_2 = arith.constant 0 : i32
    return %c0_i32, %c0_i32_0, %c0_i32_1 : i32, i32, i32
  }
  func.func @transform_6(%arg0: i32) -> (i32, i32, i32) {
    %c0_i32 = arith.constant 0 : i32
    %c0_i32_0 = arith.constant 0 : i32
    %c0_i32_1 = arith.constant 0 : i32
    %c0_i32_2 = arith.constant 0 : i32
    return %c0_i32, %c0_i32_0, %c0_i32_1 : i32, i32, i32
  }
  func.func @transform_7(%arg0: i32) -> (i32, i32, i32) {
    %c0_i32 = arith.constant 0 : i32
    %c0_i32_0 = arith.constant 0 : i32
    %c0_i32_1 = arith.constant 0 : i32
    %c0_i32_2 = arith.constant 0 : i32
    return %c0_i32, %c0_i32_0, %c0_i32_1 : i32, i32, i32
  }
  func.func @transform_8(%arg0: i32) -> (i32, i32, i32) {
    %c0_i32 = arith.constant 0 : i32
    %c0_i32_0 = arith.constant 0 : i32
    %c0_i32_1 = arith.constant 0 : i32
    %c0_i32_2 = arith.constant 0 : i32
    return %c0_i32, %c0_i32_0, %c0_i32_1 : i32, i32, i32
  }
  func.func @transform_9(%arg0: i32) -> (i32, i32, i32) {
    %c0_i32 = arith.constant 0 : i32
    %c0_i32_0 = arith.constant 0 : i32
    %c0_i32_1 = arith.constant 0 : i32
    %c0_i32_2 = arith.constant 0 : i32
    return %c0_i32, %c0_i32_0, %c0_i32_1 : i32, i32, i32
  }
  func.func @transform_10(%arg0: i32) -> (i32, i32, i32) {
    %c0_i32 = arith.constant 0 : i32
    %c0_i32_0 = arith.constant 0 : i32
    %c0_i32_1 = arith.constant 0 : i32
    %c0_i32_2 = arith.constant 0 : i32
    return %c0_i32, %c0_i32_0, %c0_i32_1 : i32, i32, i32
  }
  func.func @transform_11(%arg0: i32) -> (i32, i32, i32) {
    %c0_i32 = arith.constant 0 : i32
    %c0_i32_0 = arith.constant 0 : i32
    %c0_i32_1 = arith.constant 0 : i32
    %c0_i32_2 = arith.constant 0 : i32
    return %c0_i32, %c0_i32_0, %c0_i32_1 : i32, i32, i32
  }
  func.func @transform_12(%arg0: i32) -> (i32, i32, i32) {
    %c0_i32 = arith.constant 0 : i32
    %c0_i32_0 = arith.constant 0 : i32
    %c0_i32_1 = arith.constant 0 : i32
    %c0_i32_2 = arith.constant 0 : i32
    return %c0_i32, %c0_i32_0, %c0_i32_1 : i32, i32, i32
  }
  func.func @transform_13(%arg0: i32) -> (i32, i32, i32) {
    %c0_i32 = arith.constant 0 : i32
    %c0_i32_0 = arith.constant 0 : i32
    %c0_i32_1 = arith.constant 0 : i32
    return %arg0, %c0_i32, %c0_i32_0 : i32, i32, i32
  }
}

</mosaic_0001>

<llo_original>
// kernel: transformer_encoder.1
$region0: #{transformer_encoder.1}
  #allocation0 [shape = 'u32[]', space=smem, size = 0x4, offset = 0x4, fixed_abs, tag = 'smem constant byte address 0x4 - core index']
  #allocation1 [shape = 'u32[144,128]{1,0:T(1,128)}', space=vmem, size = 0x12000, scoped, tag = 'internal scratch']
  %s0 = inlined_call_operand.vmem [shape: f32[2,16,128], index: 0, kind: input, shape index: {}]
  %s1 = inlined_call_operand.vmem [shape: f32[2,1,128], index: 1, kind: input, shape index: {}]
  %s2 = inlined_call_operand.vmem [shape: f32[2,1,128], index: 2, kind: input, shape index: {}]
  %s3 = inlined_call_operand.hbm [shape: bf16[2,128,384], index: 3, kind: input, shape index: {}]
  %s4 = inlined_call_operand.vmem [shape: f32[2,1,384], index: 4, kind: input, shape index: {}]
  %s5 = inlined_call_operand.hbm [shape: bf16[2,128,128], index: 5, kind: input, shape index: {}]
  %s6 = inlined_call_operand.vmem [shape: f32[2,1,128], index: 6, kind: input, shape index: {}]
  %s7 = inlined_call_operand.vmem [shape: f32[2,1,128], index: 7, kind: input, shape index: {}]
  %s8 = inlined_call_operand.vmem [shape: f32[2,1,128], index: 8, kind: input, shape index: {}]
  %s9 = inlined_call_operand.hbm [shape: bf16[2,128,256], index: 9, kind: input, shape index: {}]
  %s10 = inlined_call_operand.vmem [shape: f32[2,1,256], index: 10, kind: input, shape index: {}]
  %s11 = inlined_call_operand.hbm [shape: bf16[2,256,128], index: 11, kind: input, shape index: {}]
  %s12 = inlined_call_operand.vmem [shape: f32[2,1,128], index: 12, kind: input, shape index: {}]
  %s13 = inlined_call_operand.vmem [shape: f32[2,16,128], index: 13, kind: output, shape index: {}]
  %s14 = sld [smem:[#allocation0]]
  $region101: #{transformer_encoder.1} parent=0
    _
  %s16 = ssub.s32 1, %s14
  %s17 = scalar_select 0, %s16, %s14
  $region1: #{transformer_encoder.1} parent=0
    #allocation2 [shape = 'u8[196608]{0}', space=vmem, size = 0x30000, scoped, tag = 'input window, operand 3, single buffered']
    #allocation3 [shape = 's32[2]{0}', space=sflag, size = 0x8, scoped, tag = 'scoped memory for transformer_encoder.1']
    #allocation4 [shape = 'u8[65536]{0}', space=vmem, size = 0x10000, scoped, tag = 'input window, operand 5, single buffered']
    #allocation5 [shape = 's32[1]{0}', space=sflag, size = 0x4, scoped, tag = 'scoped memory for transformer_encoder.1']
    #allocation6 [shape = 'u8[131072]{0}', space=vmem, size = 0x20000, scoped, tag = 'input window, operand 9, single buffered']
    #allocation7 [shape = 'u8[131072]{0}', space=vmem, size = 0x20000, scoped, tag = 'input window, operand 11, single buffered']
    #allocation8 [shape = 's32[1]{0}', space=sflag, size = 0x4, scoped, tag = 'scoped memory for transformer_encoder.1']
    %18 = vsyncpa [#allocation3], 0
    %19 = vsyncpa [#allocation5], 0
    %20 = vsyncpa [#allocation8], 0
    loop: start=0, step=1, limit=4
    $region2: #{transformer_encoder.1} parent=1 // loop_pre_header
      _
    $region3: #{transformer_encoder.1} parent=1 // loop_header
      %s22 = sphi 0, %s26
      %p23 = scmp.ge.s32.totalorder %s22, 4
      %s32 = sphi 0, %s34
      %s35 = sphi 0, %s32
      %s36 = sphi 0, %s35
      %s52 = sphi 0, %s36
      %s56 = sphi 0, %s56
      %s58 = sphi 0, %s56
      %s59 = sphi 0, %s58
      %s73 = sphi 0, %s59
      %s77 = sphi 0, %s77
      %s79 = sphi 0, %s77
      %s80 = sphi 0, %s79
      %s94 = sphi 0, %s80
      %s98 = sphi 0, %s98
      %s100 = sphi 0, %s98
      %s101 = sphi 0, %s100
      %s115 = sphi 0, %s101
      %s119 = sphi 0, %s119
      %s121 = sphi 0, %s119
      %s122 = sphi 0, %s121
      %s136 = sphi 0, %s122
      %s140 = sphi 0, %s140
      %s142 = sphi 0, %s140
      %s143 = sphi 0, %s142
      %s157 = sphi 0, %s143
      %s161 = sphi 0, %s161
      %s163 = sphi 0, %s161
      %s164 = sphi 0, %s163
      %s178 = sphi 0, %s164
      %s182 = sphi 0, %s182
      %s184 = sphi 0, %s182
      %s185 = sphi 0, %s184
      %s199 = sphi 0, %s185
      %s203 = sphi 0, %s203
      %s205 = sphi 0, %s203
      %s206 = sphi 0, %s205
      %s220 = sphi 0, %s206
      %s224 = sphi 0, %s224
      %s226 = sphi 0, %s224
      %s227 = sphi 0, %s226
      %s241 = sphi 0, %s227
      %s245 = sphi 0, %s245
      %s247 = sphi 0, %s245
      %s248 = sphi 0, %s247
      %s262 = sphi 0, %s248
      %s266 = sphi 0, %s266
      %s268 = sphi 0, %s266
      %s269 = sphi 0, %s268
      %s283 = sphi 0, %s269
      %s287 = sphi 0, %s287
      %s289 = sphi 0, %s287
      %s290 = sphi 0, %s289
      %s304 = sphi 0, %s290
      %s310 = sphi 0, %s312
      %s313 = sphi 0, %s310
      %s314 = sphi 0, %s313
      %s330 = sphi 0, %s314
    $region4: #{transformer_encoder.1} parent=1 // loop_header_branch
      %25 = sbr.rel (%p23) target = $region8
    $region5: #{transformer_encoder.1} parent=1 // loop_body
      %s27 = ssub.s32 %s22, 1
      %s28 = ssub.s32 %s22, 2
      %s29 = sadd.s32 %s22, 1
      %s30 = ssub.s32 %s22, %s29
      %p31 = scmp.eq.s32.totalorder %s30, 0
      %s33 = sadd.s32 %s32, 1
      %s34 = scalar_select %p31, %s32, %s33
      %p37 = pneg %p31
      %p38 = scmp.eq.s32.totalorder %s22, 1
      %p39 = por %p37, %p38
      %p40 = scmp.ne.s32.totalorder %s32, %s35
      %p41 = scmp.eq.s32.totalorder %s22, 0
      %p42 = por %p40, %p41
      %p43 = scmp.ne.s32.totalorder %s32, %s35
      %p44 = scmp.eq.s32.totalorder %s27, 1
      %p45 = por %p43, %p44
      %p46 = scmp.ne.s32.totalorder %s35, %s36
      %p47 = scmp.eq.s32.totalorder %s27, 0
      %p48 = por %p46, %p47
      %p49 = scmp.ne.s32.totalorder %s35, %s36
      %p50 = scmp.eq.s32.totalorder %s28, 1
      %p51 = por %p49, %p50
      %p53 = scmp.ne.s32.totalorder %s36, %s52
      %p54 = scmp.eq.s32.totalorder %s28, 0
      %p55 = por %p53, %p54
      %s57 = sadd.s32 %s56, 1
      %p60 = scmp.eq.s32.totalorder %s22, 1
      %p61 = scmp.ne.s32.totalorder %s56, %s58
      %p62 = scmp.eq.s32.totalorder %s22, 0
      %p63 = por %p61, %p62
      %p64 = scmp.ne.s32.totalorder %s56, %s58
      %p65 = scmp.eq.s32.totalorder %s27, 1
      %p66 = por %p64, %p65
      %p67 = scmp.ne.s32.totalorder %s58, %s59
      %p68 = scmp.eq.s32.totalorder %s27, 0
      %p69 = por %p67, %p68
      %p70 = scmp.ne.s32.totalorder %s58, %s59
      %p71 = scmp.eq.s32.totalorder %s28, 1
      %p72 = por %p70, %p71
      %p74 = scmp.ne.s32.totalorder %s59, %s73
      %p75 = scmp.eq.s32.totalorder %s28, 0
      %p76 = por %p74, %p75
      %s78 = sadd.s32 %s77, 1
      %p81 = scmp.eq.s32.totalorder %s22, 1
      %p82 = scmp.ne.s32.totalorder %s77, %s79
      %p83 = scmp.eq.s32.totalorder %s22, 0
      %p84 = por %p82, %p83
      %p85 = scmp.ne.s32.totalorder %s77, %s79
      %p86 = scmp.eq.s32.totalorder %s27, 1
      %p87 = por %p85, %p86
      %p88 = scmp.ne.s32.totalorder %s79, %s80
      %p89 = scmp.eq.s32.totalorder %s27, 0
      %p90 = por %p88, %p89
      %p91 = scmp.ne.s32.totalorder %s79, %s80
      %p92 = scmp.eq.s32.totalorder %s28, 1
      %p93 = por %p91, %p92
      %p95 = scmp.ne.s32.totalorder %s80, %s94
      %p96 = scmp.eq.s32.totalorder %s28, 0
      %p97 = por %p95, %p96
      %s99 = sadd.s32 %s98, 1
      %p102 = scmp.eq.s32.totalorder %s22, 1
      %p103 = scmp.ne.s32.totalorder %s98, %s100
      %p104 = scmp.eq.s32.totalorder %s22, 0
      %p105 = por %p103, %p104
      %p106 = scmp.ne.s32.totalorder %s98, %s100
      %p107 = scmp.eq.s32.totalorder %s27, 1
      %p108 = por %p106, %p107
      %p109 = scmp.ne.s32.totalorder %s100, %s101
      %p110 = scmp.eq.s32.totalorder %s27, 0
      %p111 = por %p109, %p110
      %p112 = scmp.ne.s32.totalorder %s100, %s101
      %p113 = scmp.eq.s32.totalorder %s28, 1
      %p114 = por %p112, %p113
      %p116 = scmp.ne.s32.totalorder %s101, %s115
      %p117 = scmp.eq.s32.totalorder %s28, 0
      %p118 = por %p116, %p117
      %s120 = sadd.s32 %s119, 1
      %p123 = scmp.eq.s32.totalorder %s22, 1
      %p124 = scmp.ne.s32.totalorder %s119, %s121
      %p125 = scmp.eq.s32.totalorder %s22, 0
      %p126 = por %p124, %p125
      %p127 = scmp.ne.s32.totalorder %s119, %s121
      %p128 = scmp.eq.s32.totalorder %s27, 1
      %p129 = por %p127, %p128
      %p130 = scmp.ne.s32.totalorder %s121, %s122
      %p131 = scmp.eq.s32.totalorder %s27, 0
      %p132 = por %p130, %p131
      %p133 = scmp.ne.s32.totalorder %s121, %s122
      %p134 = scmp.eq.s32.totalorder %s28, 1
      %p135 = por %p133, %p134
      %p137 = scmp.ne.s32.totalorder %s122, %s136
      %p138 = scmp.eq.s32.totalorder %s28, 0
      %p139 = por %p137, %p138
      %s141 = sadd.s32 %s140, 1
      %p144 = scmp.eq.s32.totalorder %s22, 1
      %p145 = scmp.ne.s32.totalorder %s140, %s142
      %p146 = scmp.eq.s32.totalorder %s22, 0
      %p147 = por %p145, %p146
      %p148 = scmp.ne.s32.totalorder %s140, %s142
      %p149 = scmp.eq.s32.totalorder %s27, 1
      %p150 = por %p148, %p149
      %p151 = scmp.ne.s32.totalorder %s142, %s143
      %p152 = scmp.eq.s32.totalorder %s27, 0
      %p153 = por %p151, %p152
      %p154 = scmp.ne.s32.totalorder %s142, %s143
      %p155 = scmp.eq.s32.totalorder %s28, 1
      %p156 = por %p154, %p155
      %p158 = scmp.ne.s32.totalorder %s143, %s157
      %p159 = scmp.eq.s32.totalorder %s28, 0
      %p160 = por %p158, %p159
      %s162 = sadd.s32 %s161, 1
      %p165 = scmp.eq.s32.totalorder %s22, 1
      %p166 = scmp.ne.s32.totalorder %s161, %s163
      %p167 = scmp.eq.s32.totalorder %s22, 0
      %p168 = por %p166, %p167
      %p169 = scmp.ne.s32.totalorder %s161, %s163
      %p170 = scmp.eq.s32.totalorder %s27, 1
      %p171 = por %p169, %p170
      %p172 = scmp.ne.s32.totalorder %s163, %s164
      %p173 = scmp.eq.s32.totalorder %s27, 0
      %p174 = por %p172, %p173
      %p175 = scmp.ne.s32.totalorder %s163, %s164
      %p176 = scmp.eq.s32.totalorder %s28, 1
      %p177 = por %p175, %p176
      %p179 = scmp.ne.s32.totalorder %s164, %s178
      %p180 = scmp.eq.s32.totalorder %s28, 0
      %p181 = por %p179, %p180
      %s183 = sadd.s32 %s182, 1
      %p186 = scmp.eq.s32.totalorder %s22, 1
      %p187 = scmp.ne.s32.totalorder %s182, %s184
      %p188 = scmp.eq.s32.totalorder %s22, 0
      %p189 = por %p187, %p188
      %p190 = scmp.ne.s32.totalorder %s182, %s184
      %p191 = scmp.eq.s32.totalorder %s27, 1
      %p192 = por %p190, %p191
      %p193 = scmp.ne.s32.totalorder %s184, %s185
      %p194 = scmp.eq.s32.totalorder %s27, 0
      %p195 = por %p193, %p194
      %p196 = scmp.ne.s32.totalorder %s184, %s185
      %p197 = scmp.eq.s32.totalorder %s28, 1
      %p198 = por %p196, %p197
      %p200 = scmp.ne.s32.totalorder %s185, %s199
      %p201 = scmp.eq.s32.totalorder %s28, 0
      %p202 = por %p200, %p201
      %s204 = sadd.s32 %s203, 1
      %p207 = scmp.eq.s32.totalorder %s22, 1
      %p208 = scmp.ne.s32.totalorder %s203, %s205
      %p209 = scmp.eq.s32.totalorder %s22, 0
      %p210 = por %p208, %p209
      %p211 = scmp.ne.s32.totalorder %s203, %s205
      %p212 = scmp.eq.s32.totalorder %s27, 1
      %p213 = por %p211, %p212
      %p214 = scmp.ne.s32.totalorder %s205, %s206
      %p215 = scmp.eq.s32.totalorder %s27, 0
      %p216 = por %p214, %p215
      %p217 = scmp.ne.s32.totalorder %s205, %s206
      %p218 = scmp.eq.s32.totalorder %s28, 1
      %p219 = por %p217, %p218
      %p221 = scmp.ne.s32.totalorder %s206, %s220
      %p222 = scmp.eq.s32.totalorder %s28, 0
      %p223 = por %p221, %p222
      %s225 = sadd.s32 %s224, 1
      %p228 = scmp.eq.s32.totalorder %s22, 1
      %p229 = scmp.ne.s32.totalorder %s224, %s226
      %p230 = scmp.eq.s32.totalorder %s22, 0
      %p231 = por %p229, %p230
      %p232 = scmp.ne.s32.totalorder %s224, %s226
      %p233 = scmp.eq.s32.totalorder %s27, 1
      %p234 = por %p232, %p233
      %p235 = scmp.ne.s32.totalorder %s226, %s227
      %p236 = scmp.eq.s32.totalorder %s27, 0
      %p237 = por %p235, %p236
      %p238 = scmp.ne.s32.totalorder %s226, %s227
      %p239 = scmp.eq.s32.totalorder %s28, 1
      %p240 = por %p238, %p239
      %p242 = scmp.ne.s32.totalorder %s227, %s241
      %p243 = scmp.eq.s32.totalorder %s28, 0
      %p244 = por %p242, %p243
      %s246 = sadd.s32 %s245, 1
      %p249 = scmp.eq.s32.totalorder %s22, 1
      %p250 = scmp.ne.s32.totalorder %s245, %s247
      %p251 = scmp.eq.s32.totalorder %s22, 0
      %p252 = por %p250, %p251
      %p253 = scmp.ne.s32.totalorder %s245, %s247
      %p254 = scmp.eq.s32.totalorder %s27, 1
      %p255 = por %p253, %p254
      %p256 = scmp.ne.s32.totalorder %s247, %s248
      %p257 = scmp.eq.s32.totalorder %s27, 0
      %p258 = por %p256, %p257
      %p259 = scmp.ne.s32.totalorder %s247, %s248
      %p260 = scmp.eq.s32.totalorder %s28, 1
      %p261 = por %p259, %p260
      %p263 = scmp.ne.s32.totalorder %s248, %s262
      %p264 = scmp.eq.s32.totalorder %s28, 0
      %p265 = por %p263, %p264
      %s267 = sadd.s32 %s266, 1
      %p270 = scmp.eq.s32.totalorder %s22, 1
      %p271 = scmp.ne.s32.totalorder %s266, %s268
      %p272 = scmp.eq.s32.totalorder %s22, 0
      %p273 = por %p271, %p272
      %p274 = scmp.ne.s32.totalorder %s266, %s268
      %p275 = scmp.eq.s32.totalorder %s27, 1
      %p276 = por %p274, %p275
      %p277 = scmp.ne.s32.totalorder %s268, %s269
      %p278 = scmp.eq.s32.totalorder %s27, 0
      %p279 = por %p277, %p278
      %p280 = scmp.ne.s32.totalorder %s268, %s269
      %p281 = scmp.eq.s32.totalorder %s28, 1
      %p282 = por %p280, %p281
      %p284 = scmp.ne.s32.totalorder %s269, %s283
      %p285 = scmp.eq.s32.totalorder %s28, 0
      %p286 = por %p284, %p285
      %s288 = sadd.s32 %s287, 1
      %p291 = scmp.eq.s32.totalorder %s22, 1
      %p292 = scmp.ne.s32.totalorder %s287, %s289
      %p293 = scmp.eq.s32.totalorder %s22, 0
      %p294 = por %p292, %p293
      %p295 = scmp.ne.s32.totalorder %s287, %s289
      %p296 = scmp.eq.s32.totalorder %s27, 1
      %p297 = por %p295, %p296
      %p298 = scmp.ne.s32.totalorder %s289, %s290
      %p299 = scmp.eq.s32.totalorder %s27, 0
      %p300 = por %p298, %p299
      %p301 = scmp.ne.s32.totalorder %s289, %s290
      %p302 = scmp.eq.s32.totalorder %s28, 1
      %p303 = por %p301, %p302
      %p305 = scmp.ne.s32.totalorder %s290, %s304
      %p306 = scmp.eq.s32.totalorder %s28, 0
      %p307 = por %p305, %p306
      %s308 = ssub.s32 %s22, %s29
      %p309 = scmp.eq.s32.totalorder %s308, 0
      %s311 = sadd.s32 %s310, 1
      %s312 = scalar_select %p309, %s310, %s311
      %p315 = pneg %p309
      %p316 = scmp.eq.s32.totalorder %s22, 1
      %p317 = por %p315, %p316
      %p318 = scmp.ne.s32.totalorder %s310, %s313
      %p319 = scmp.eq.s32.totalorder %s22, 0
      %p320 = por %p318, %p319
      %p321 = scmp.ne.s32.totalorder %s310, %s313
      %p322 = scmp.eq.s32.totalorder %s27, 1
      %p323 = por %p321, %p322
      %p324 = scmp.ne.s32.totalorder %s313, %s314
      %p325 = scmp.eq.s32.totalorder %s27, 0
      %p326 = por %p324, %p325
      %p327 = scmp.ne.s32.totalorder %s313, %s314
      %p328 = scmp.eq.s32.totalorder %s28, 1
      %p329 = por %p327, %p328
      %p331 = scmp.ne.s32.totalorder %s314, %s330
      %p332 = scmp.eq.s32.totalorder %s28, 0
      %p333 = por %p331, %p332
      %p334 = scmp.le.s32.totalorder 1, %s22
      %p335 = scmp.lt.s32.totalorder %s22, 3
      %p336 = pnand %p334, %p335
      %p337 = pneg %p336
      // Predicated region
      $region9: #{transformer_encoder.1} parent=5 // pred_check
        _
      $region10: #{transformer_encoder.1} parent=5 // pred_check_branch
        %339 = sbr.rel (%p336) target = $region12
      $region11: #{transformer_encoder.1} parent=5 // pred_region
        %s340 = ssub.s32 %s22, 1
        // Predicated region
        $region13: #{transformer_encoder.1} parent=11 // pred_check
          %p341 = pneg %p69
        $region14: #{transformer_encoder.1} parent=11 // pred_check_branch
          %343 = sbr.rel (%p341) target = $region16
        $region15: #{transformer_encoder.1} parent=11 // pred_region
          _
        $region16: #{transformer_encoder.1} parent=11 // pred_fallthru
          _
        // Predicated region
        $region17: #{transformer_encoder.1} parent=11 // pred_check
          %p344 = pneg %p90
        $region18: #{transformer_encoder.1} parent=11 // pred_check_branch
          %346 = sbr.rel (%p344) target = $region20
        $region19: #{transformer_encoder.1} parent=11 // pred_region
          _
        $region20: #{transformer_encoder.1} parent=11 // pred_fallthru
          _
        // Predicated region
        $region21: #{transformer_encoder.1} parent=11 // pred_check
          %p347 = pneg %p111
        $region22: #{transformer_encoder.1} parent=11 // pred_check_branch
          %349 = sbr.rel (%p347) target = $region24
        $region23: #{transformer_encoder.1} parent=11 // pred_region
          %s351 = ssub.s32 6144, 6144
          %352 = vsyncadd [#allocation3], %s351
          %s353 = sshll.u32 [#allocation2], 4
          %s354 = int_to_ptr.vmem [resolvable:$true] %s353
          %359 = dma.hbm_to_vmem [thread:$0]  %s3, 6144, %s354, [#allocation3], 192, 192, 12
        $region24: #{transformer_encoder.1} parent=11 // pred_fallthru
          _
        // Predicated region
        $region25: #{transformer_encoder.1} parent=11 // pred_check
          %p360 = pneg %p132
        $region26: #{transformer_encoder.1} parent=11 // pred_check_branch
          %362 = sbr.rel (%p360) target = $region28
        $region27: #{transformer_encoder.1} parent=11 // pred_region
          _
        $region28: #{transformer_encoder.1} parent=11 // pred_fallthru
          _
        // Predicated region
        $region29: #{transformer_encoder.1} parent=11 // pred_check
          %p363 = pneg %p153
        $region30: #{transformer_encoder.1} parent=11 // pred_check_branch
          %365 = sbr.rel (%p363) target = $region32
        $region31: #{transformer_encoder.1} parent=11 // pred_region
          %s367 = ssub.s32 2048, 2048
          %368 = vsyncadd [#allocation5], %s367
          %s369 = sshll.u32 [#allocation4], 4
          %s370 = int_to_ptr.vmem [resolvable:$true] %s369
          %375 = dma.hbm_to_vmem [thread:$0]  %s5, 2048, %s370, [#allocation5], 64, 64, 4
        $region32: #{transformer_encoder.1} parent=11 // pred_fallthru
          _
        // Predicated region
        $region33: #{transformer_encoder.1} parent=11 // pred_check
          %p376 = pneg %p174
        $region34: #{transformer_encoder.1} parent=11 // pred_check_branch
          %378 = sbr.rel (%p376) target = $region36
        $region35: #{transformer_encoder.1} parent=11 // pred_region
          _
        $region36: #{transformer_encoder.1} parent=11 // pred_fallthru
          _
        // Predicated region
        $region37: #{transformer_encoder.1} parent=11 // pred_check
          %p379 = pneg %p195
        $region38: #{transformer_encoder.1} parent=11 // pred_check_branch
          %381 = sbr.rel (%p379) target = $region40
        $region39: #{transformer_encoder.1} parent=11 // pred_region
          _
        $region40: #{transformer_encoder.1} parent=11 // pred_fallthru
          _
        // Predicated region
        $region41: #{transformer_encoder.1} parent=11 // pred_check
          %p382 = pneg %p216
        $region42: #{transformer_encoder.1} parent=11 // pred_check_branch
          %384 = sbr.rel (%p382) target = $region44
        $region43: #{transformer_encoder.1} parent=11 // pred_region
          _
        $region44: #{transformer_encoder.1} parent=11 // pred_fallthru
          _
        // Predicated region
        $region45: #{transformer_encoder.1} parent=11 // pred_check
          %p385 = pneg %p237
        $region46: #{transformer_encoder.1} parent=11 // pred_check_branch
          %387 = sbr.rel (%p385) target = $region48
        $region47: #{transformer_encoder.1} parent=11 // pred_region
          %s389 = ssub.s32 4096, 4096
          %390 = vsyncadd [#allocation5], %s389
          %s391 = sshll.u32 [#allocation6], 4
          %s392 = int_to_ptr.vmem [resolvable:$true] %s391
          %397 = dma.hbm_to_vmem [thread:$0]  %s9, 4096, %s392, [#allocation5], 128, 128, 8
        $region48: #{transformer_encoder.1} parent=11 // pred_fallthru
          _
        // Predicated region
        $region49: #{transformer_encoder.1} parent=11 // pred_check
          %p398 = pneg %p258
        $region50: #{transformer_encoder.1} parent=11 // pred_check_branch
          %400 = sbr.rel (%p398) target = $region52
        $region51: #{transformer_encoder.1} parent=11 // pred_region
          _
        $region52: #{transformer_encoder.1} parent=11 // pred_fallthru
          _
        // Predicated region
        $region53: #{transformer_encoder.1} parent=11 // pred_check
          %p401 = pneg %p279
        $region54: #{transformer_encoder.1} parent=11 // pred_check_branch
          %403 = sbr.rel (%p401) target = $region56
        $region55: #{transformer_encoder.1} parent=11 // pred_region
          %s405 = ssub.s32 4096, 4096
          %406 = vsyncadd [#allocation8], %s405
          %s407 = sshll.u32 [#allocation7], 4
          %s408 = int_to_ptr.vmem [resolvable:$true] %s407
          %413 = dma.hbm_to_vmem [thread:$0]  %s11, 4096, %s408, [#allocation8], 64, 64, 4
        $region56: #{transformer_encoder.1} parent=11 // pred_fallthru
          _
        // Predicated region
        $region57: #{transformer_encoder.1} parent=11 // pred_check
          %p414 = pneg %p300
        $region58: #{transformer_encoder.1} parent=11 // pred_check_branch
          %416 = sbr.rel (%p414) target = $region60
        $region59: #{transformer_encoder.1} parent=11 // pred_region
          _
        $region60: #{transformer_encoder.1} parent=11 // pred_fallthru
          _
      $region12: #{transformer_encoder.1} parent=5 // pred_fallthru
        _
      %p417 = scmp.lt.s32.totalorder %s22, 2
      // Predicated region
      $region61: #{transformer_encoder.1} parent=5 // pred_check
        %p418 = pneg %p417
      $region62: #{transformer_encoder.1} parent=5 // pred_check_branch
        %420 = sbr.rel (%p418) target = $region64
      $region63: #{transformer_encoder.1} parent=5 // pred_region
        // Predicated region
        $region65: #{transformer_encoder.1} parent=63 // pred_check
          %p421 = pneg %p42
        $region66: #{transformer_encoder.1} parent=63 // pred_check_branch
          %423 = sbr.rel (%p421) target = $region68
        $region67: #{transformer_encoder.1} parent=63 // pred_region
          %p424 = scmp.lt.s32.totalorder %s22, 1
          %s425 = scalar_select %p424, %s22, 1
          %s426 = smul.addr %s425, 2
          %s427 = smul.addr %s426, 8
          %s428 = scalar_lea.vmem %s0, %s427
        $region68: #{transformer_encoder.1} parent=63 // pred_fallthru
          _
      $region64: #{transformer_encoder.1} parent=5 // pred_fallthru
        _
      %p429 = scmp.le.s32.totalorder 1, %s22
      %p430 = scmp.lt.s32.totalorder %s22, 3
      %p431 = pnand %p429, %p430
      %p432 = pneg %p431
      // Predicated region
      $region69: #{transformer_encoder.1} parent=5 // pred_check
        _
      $region70: #{transformer_encoder.1} parent=5 // pred_check_branch
        %434 = sbr.rel (%p431) target = $region72
      $region71: #{transformer_encoder.1} parent=5 // pred_region
        %s435 = ssub.s32 %s22, 1
        // Predicated region
        $region73: #{transformer_encoder.1} parent=71 // pred_check
          %p436 = pneg %p111
        $region74: #{transformer_encoder.1} parent=71 // pred_check_branch
          %438 = sbr.rel (%p436) target = $region76
        $region75: #{transformer_encoder.1} parent=71 // pred_region
          %439 = dma.done [#allocation3], 6144
        $region76: #{transformer_encoder.1} parent=71 // pred_fallthru
          _
        // Predicated region
        $region77: #{transformer_encoder.1} parent=71 // pred_check
          %p440 = pneg %p153
        $region78: #{transformer_encoder.1} parent=71 // pred_check_branch
          %442 = sbr.rel (%p440) target = $region80
        $region79: #{transformer_encoder.1} parent=71 // pred_region
          %443 = dma.done [#allocation5], 2048
        $region80: #{transformer_encoder.1} parent=71 // pred_fallthru
          _
        // Predicated region
        $region81: #{transformer_encoder.1} parent=71 // pred_check
          %p444 = pneg %p237
        $region82: #{transformer_encoder.1} parent=71 // pred_check_branch
          %446 = sbr.rel (%p444) target = $region84
        $region83: #{transformer_encoder.1} parent=71 // pred_region
          %447 = dma.done [#allocation5], 4096
        $region84: #{transformer_encoder.1} parent=71 // pred_fallthru
          _
        // Predicated region
        $region85: #{transformer_encoder.1} parent=71 // pred_check
          %p448 = pneg %p279
        $region86: #{transformer_encoder.1} parent=71 // pred_check_branch
          %450 = sbr.rel (%p448) target = $region88
        $region87: #{transformer_encoder.1} parent=71 // pred_region
          %451 = dma.done [#allocation8], 4096
        $region88: #{transformer_encoder.1} parent=71 // pred_fallthru
          _
        %p452 = scmp.lt.s32.totalorder %s27, 1
        %s453 = scalar_select %p452, %s27, 1
        %s454 = smul.addr %s453, 2
        %s455 = smul.addr %s454, 8
        %s456 = scalar_lea.vmem %s0, %s455
        %p457 = pneg %p48
        %p458 = pneg %p45
        %p459 = pneg %p69
        %p460 = pneg %p66
        %p461 = pneg %p90
        %p462 = pneg %p87
        %p463 = pneg %p111
        %p464 = pneg %p108
        %p465 = pneg %p132
        %p466 = pneg %p129
        %p467 = pneg %p153
        %p468 = pneg %p150
        %p469 = pneg %p174
        %p470 = pneg %p171
        %p471 = pneg %p195
        %p472 = pneg %p192
        %p473 = pneg %p216
        %p474 = pneg %p213
        %p475 = pneg %p237
        %p476 = pneg %p234
        %p477 = pneg %p258
        %p478 = pneg %p255
        %p479 = pneg %p279
        %p480 = pneg %p276
        %p481 = pneg %p300
        %p482 = pneg %p297
        %p483 = pneg %p326
        %p484 = pneg %p323
        %p485 = scmp.lt.s32.totalorder %s27, 1
        %s486 = scalar_select %p485, %s27, 1
        %s487 = smul.addr %s486, 2
        %s488 = smul.addr %s487, 8
        %s489 = scalar_lea.vmem %s13, %s488
        %p490 = scmp.lt.s32.totalorder %s27, 1
        %s491 = scalar_select %p490, %s27, 1
        %s492 = smul.addr %s491, 2
        %s493 = smul.addr %s492, 8
        %s494 = scalar_lea.vmem %s0, %s493
        %p495 = scmp.lt.s32.totalorder %s27, 1
        %s496 = scalar_select %p495, %s27, 1
        %s497 = smul.addr %s496, 2
        %s498 = smul.addr %s497, 8
        %s499 = scalar_lea.vmem %s13, %s498
        %v501 = vld [vmem:[%s494] sm:$0xff]
        %v502 = vld [vmem:[%s494 + $0x8] sm:$0xff]
        %v503 = vld [vmem:[%s1] sm:$0x1]
        %v504 = vld [vmem:[%s2] sm:$0x1]
        %505 = vadd.xlane.f32.xlu0 %v501
        %v506 = vpop.xlane.xlu0 %505
        %507 = vadd.xlane.f32.xlu0 %v502
        %v508 = vpop.xlane.xlu0 %507
        %v509 = vrcp.pop 128.0
        %v510 = vmul.f32 %v506, %v509
        %v511 = vmul.f32 %v508, %v509
        %v512 = vsub.f32 %v501, %v510
        %v513 = vsub.f32 %v502, %v511
        %v514 = vmul.f32 %v512, %v512
        %v515 = vmul.f32 %v513, %v513
        %516 = vadd.xlane.f32.xlu0 %v514
        %v517 = vpop.xlane.xlu0 %516
        %518 = vadd.xlane.f32.xlu0 %v515
        %v519 = vpop.xlane.xlu0 %518
        %v520 = vmul.f32 %v517, %v509
        %v521 = vmul.f32 %v519, %v509
        %v522 = vadd.f32 %v520, 1e-05
        %v523 = vadd.f32 %v521, 1e-05
        %v524 = vrsqrt.pop %v522
        %v525 = vrsqrt.pop %v523
        %v526 = vmul.f32 %v512, %v524
        %v527 = vmul.f32 %v513, %v525
        %v529 = vlaneseq
        %v530 = vshrl.u32 %v529, 7
        %v531 = vsub.s32 0, %v530
        %v532 = vrot.slane %v503, %v531
        %v534 = vmul.f32 %v526, %v532
        %v535 = vmul.f32 %v527, %v532
        %v537 = vlaneseq
        %v538 = vshrl.u32 %v537, 7
        %v539 = vsub.s32 0, %v538
        %v540 = vrot.slane %v504, %v539
        %v542 = vadd.f32 %v534, %v540
        %v543 = vadd.f32 %v535, %v540
        %v544 = vpack.c.bf16 %v543, %v542
        %v545 = vld [vmem:[#allocation2] sm:$0xff]
        %v546 = vld [vmem:[#allocation2 + $0x8] sm:$0xf]
        %v547 = vld [vmem:[#allocation2 + $0xc] sm:$0xff]
        %v548 = vld [vmem:[#allocation2 + $0x14] sm:$0xf]
        %v549 = vld [vmem:[#allocation2 + $0x18] sm:$0xff]
        %v550 = vld [vmem:[#allocation2 + $0x20] sm:$0xf]
        %v551 = vld [vmem:[#allocation2 + $0x24] sm:$0xff]
        %v552 = vld [vmem:[#allocation2 + $0x2c] sm:$0xf]
        %v553 = vld [vmem:[#allocation2 + $0x30] sm:$0xff]
        %v554 = vld [vmem:[#allocation2 + $0x38] sm:$0xf]
        %v555 = vld [vmem:[#allocation2 + $0x3c] sm:$0xff]
        %v556 = vld [vmem:[#allocation2 + $0x44] sm:$0xf]
        %v557 = vld [vmem:[#allocation2 + $0x48] sm:$0xff]
        %v558 = vld [vmem:[#allocation2 + $0x50] sm:$0xf]
        %v559 = vld [vmem:[#allocation2 + $0x54] sm:$0xff]
        %v560 = vld [vmem:[#allocation2 + $0x5c] sm:$0xf]
        %v561 = vld [vmem:[#allocation2 + $0x60] sm:$0xff]
        %v562 = vld [vmem:[#allocation2 + $0x68] sm:$0xf]
        %v563 = vld [vmem:[#allocation2 + $0x6c] sm:$0xff]
        %v564 = vld [vmem:[#allocation2 + $0x74] sm:$0xf]
        %v565 = vld [vmem:[#allocation2 + $0x78] sm:$0xff]
        %v566 = vld [vmem:[#allocation2 + $0x80] sm:$0xf]
        %v567 = vld [vmem:[#allocation2 + $0x84] sm:$0xff]
        %v568 = vld [vmem:[#allocation2 + $0x8c] sm:$0xf]
        %v569 = vld [vmem:[#allocation2 + $0x90] sm:$0xff]
        %v570 = vld [vmem:[#allocation2 + $0x98] sm:$0xf]
        %v571 = vld [vmem:[#allocation2 + $0x9c] sm:$0xff]
        %v572 = vld [vmem:[#allocation2 + $0xa4] sm:$0xf]
        %v573 = vld [vmem:[#allocation2 + $0xa8] sm:$0xff]
        %v574 = vld [vmem:[#allocation2 + $0xb0] sm:$0xf]
        %v575 = vld [vmem:[#allocation2 + $0xb4] sm:$0xff]
        %v576 = vld [vmem:[#allocation2 + $0xbc] sm:$0xf]
        %v577 = vld [vmem:[%s4] sm:$0x7]
        %v579 = vlaneseq
        %v580 = vshrl.u32 %v579, 7
        %v581 = vsub.s32 0, %v580
        %v582 = vrot.slane %v577, %v581
        %v583 = vlaneseq
        %v584 = vshrl.u32 %v583, 7
        %v585 = vsub.s32 1, %v584
        %v586 = vrot.slane %v577, %v585
        %v587 = vlaneseq
        %v588 = vshrl.u32 %v587, 7
        %v589 = vsub.s32 2, %v588
        %v590 = vrot.slane %v577, %v589
        %v626 = vunpack.c.l.b16 %v545
        %v627 = vunpack.c.h.b16 %v545
        %v628 = vunpack.c.l.b16 %v546
        %v629 = vunpack.c.l.b16 %v547
        %v630 = vunpack.c.h.b16 %v547
        %v631 = vunpack.c.l.b16 %v548
        %v632 = vunpack.c.l.b16 %v549
        %v633 = vunpack.c.h.b16 %v549
        %v634 = vunpack.c.l.b16 %v550
        %v635 = vunpack.c.l.b16 %v551
        %v636 = vunpack.c.h.b16 %v551
        %v637 = vunpack.c.l.b16 %v552
        %v638 = vunpack.c.l.b16 %v553
        %v639 = vunpack.c.h.b16 %v553
        %v640 = vunpack.c.l.b16 %v554
        %v641 = vunpack.c.l.b16 %v555
        %v642 = vunpack.c.h.b16 %v555
        %v643 = vunpack.c.l.b16 %v556
        %v644 = vunpack.c.l.b16 %v557
        %v645 = vunpack.c.h.b16 %v557
        %v646 = vunpack.c.l.b16 %v558
        %v647 = vunpack.c.l.b16 %v559
        %v648 = vunpack.c.h.b16 %v559
        %v649 = vunpack.c.l.b16 %v560
        %v650 = vunpack.c.l.b16 %v561
        %v651 = vunpack.c.h.b16 %v561
        %v652 = vunpack.c.l.b16 %v562
        %v653 = vunpack.c.l.b16 %v563
        %v654 = vunpack.c.h.b16 %v563
        %v655 = vunpack.c.l.b16 %v564
        %v656 = vunpack.c.l.b16 %v565
        %v657 = vunpack.c.h.b16 %v565
        %v658 = vunpack.c.l.b16 %v566
        %v659 = vunpack.c.l.b16 %v567
        %v660 = vunpack.c.h.b16 %v567
        %v661 = vunpack.c.l.b16 %v568
        %v662 = vunpack.c.l.b16 %v569
        %v663 = vunpack.c.h.b16 %v569
        %v664 = vunpack.c.l.b16 %v570
        %v665 = vunpack.c.l.b16 %v571
        %v666 = vunpack.c.h.b16 %v571
        %v667 = vunpack.c.l.b16 %v572
        %v668 = vunpack.c.l.b16 %v573
        %v669 = vunpack.c.h.b16 %v573
        %v670 = vunpack.c.l.b16 %v574
        %v671 = vunpack.c.l.b16 %v575
        %v672 = vunpack.c.h.b16 %v575
        %v673 = vunpack.c.l.b16 %v576
        %v674 = vpack.c.b16 %v629, %v626
        %v675 = vpack.c.b16 %v630, %v627
        %v676 = vpack.c.b16 %v631, %v628
        %v677 = vpack.c.b16 %v635, %v632
        %v678 = vpack.c.b16 %v636, %v633
        %v679 = vpack.c.b16 %v637, %v634
        %v680 = vpack.c.b16 %v641, %v638
        %v681 = vpack.c.b16 %v642, %v639
        %v682 = vpack.c.b16 %v643, %v640
        %v683 = vpack.c.b16 %v647, %v644
        %v684 = vpack.c.b16 %v648, %v645
        %v685 = vpack.c.b16 %v649, %v646
        %v686 = vpack.c.b16 %v653, %v650
        %v687 = vpack.c.b16 %v654, %v651
        %v688 = vpack.c.b16 %v655, %v652
        %v689 = vpack.c.b16 %v659, %v656
        %v690 = vpack.c.b16 %v660, %v657
        %v691 = vpack.c.b16 %v661, %v658
        %v692 = vpack.c.b16 %v665, %v662
        %v693 = vpack.c.b16 %v666, %v663
        %v694 = vpack.c.b16 %v667, %v664
        %v695 = vpack.c.b16 %v671, %v668
        %v696 = vpack.c.b16 %v672, %v669
        %v697 = vpack.c.b16 %v673, %v670
        %722 = vmatprep.subr.bf16.mxu0 %v675
        %723 = vmatpush1.bf16.msra.mxu0 %v674
        %724 = vmatprep.subr.bf16.mxu0 %v678
        %725 = vmatpush1.bf16.msra.mxu0 %v677
        %726 = vmatprep.subr.bf16.mxu0 %v681
        %727 = vmatpush1.bf16.msra.mxu0 %v680
        %728 = vmatprep.subr.bf16.mxu0 %v684
        %729 = vmatpush1.bf16.msra.mxu0 %v683
        %730 = vmatprep.subr.bf16.mxu0 %v687
        %731 = vmatpush1.bf16.msra.mxu0 %v686
        %732 = vmatprep.subr.bf16.mxu0 %v690
        %733 = vmatpush1.bf16.msra.mxu0 %v689
        %734 = vmatprep.subr.bf16.mxu0 %v693
        %735 = vmatpush1.bf16.msra.mxu0 %v692
        %736 = vmatprep.subr.bf16.mxu0 %v696
        %737 = vmatpush1.bf16.msra.mxu0 %v695
        %738 = vmatprep.subr.bf16.mxu0 0
        %739 = vmatpush1.bf16.msra.mxu0 0
        %740 = vmatprep.subr.bf16.mxu0 0
        %741 = vmatpush1.bf16.msra.mxu0 0
        %742 = vmatprep.subr.bf16.mxu0 0
        %743 = vmatpush1.bf16.msra.mxu0 0
        %744 = vmatprep.subr.bf16.mxu0 0
        %745 = vmatpush1.bf16.msra.mxu0 0
        %746 = vmatprep.subr.bf16.mxu0 0
        %747 = vmatpush1.bf16.msra.mxu0 0
        %748 = vmatprep.subr.bf16.mxu0 0
        %749 = vmatpush1.bf16.msra.mxu0 0
        %750 = vmatprep.subr.bf16.mxu0 0
        %751 = vmatpush1.bf16.msra.mxu0 0
        %752 = vmatprep.subr.bf16.mxu0 0
        %753 = vmatpush1.bf16.msra.mxu0 0
        %754 = vmatprep.mubr.bf16.mxu0 0
        %755 = vmatmul.mubr.bf16.gmra.mrb[0].mxu0 %v544
        %v756 = vpop.f32.mrb[0].mxu0
        %v757 = vadd.f32 %v582, %v756
        %v758 = vpop.f32.mrb[0].mxu0
        %v759 = vadd.f32 %v586, %v758
        %v760 = vpop.f32.mrb[0].mxu0
        %v761 = vadd.f32 %v582, %v760
        %v762 = vpop.f32.mrb[0].mxu0
        %v763 = vadd.f32 %v586, %v762
        %764 = vdwg.mxu0
        %765 = vmatprep.subr.bf16.mxu0 0
        %766 = vmatpush1.bf16.msra.mxu0 %v676
        %767 = vmatprep.subr.bf16.mxu0 0
        %768 = vmatpush1.bf16.msra.mxu0 %v679
        %769 = vmatprep.subr.bf16.mxu0 0
        %770 = vmatpush1.bf16.msra.mxu0 %v682
        %771 = vmatprep.subr.bf16.mxu0 0
        %772 = vmatpush1.bf16.msra.mxu0 %v685
        %773 = vmatprep.subr.bf16.mxu0 0
        %774 = vmatpush1.bf16.msra.mxu0 %v688
        %775 = vmatprep.subr.bf16.mxu0 0
        %776 = vmatpush1.bf16.msra.mxu0 %v691
        %777 = vmatprep.subr.bf16.mxu0 0
        %778 = vmatpush1.bf16.msra.mxu0 %v694
        %779 = vmatprep.subr.bf16.mxu0 0
        %780 = vmatpush1.bf16.msra.mxu0 %v697
        %781 = vmatprep.subr.bf16.mxu0 0
        %782 = vmatpush1.bf16.msra.mxu0 0
        %783 = vmatprep.subr.bf16.mxu0 0
        %784 = vmatpush1.bf16.msra.mxu0 0
        %785 = vmatprep.subr.bf16.mxu0 0
        %786 = vmatpush1.bf16.msra.mxu0 0
        %787 = vmatprep.subr.bf16.mxu0 0
        %788 = vmatpush1.bf16.msra.mxu0 0
        %789 = vmatprep.subr.bf16.mxu0 0
        %790 = vmatpush1.bf16.msra.mxu0 0
        %791 = vmatprep.subr.bf16.mxu0 0
        %792 = vmatpush1.bf16.msra.mxu0 0
        %793 = vmatprep.subr.bf16.mxu0 0
        %794 = vmatpush1.bf16.msra.mxu0 0
        %795 = vmatprep.subr.bf16.mxu0 0
        %796 = vmatpush1.bf16.msra.mxu0 0
        %797 = vmatprep.mubr.bf16.mxu0 0
        %798 = vmatmul.mubr.bf16.gmra.mrb[0].mxu0 %v544
        %v799 = vpop.f32.mrb[0].mxu0
        %v800 = vadd.f32 %v590, %v799
        %v801 = vpop.f32.mrb[0].mxu0
        %v802 = vpop.f32.mrb[0].mxu0
        %v803 = vadd.f32 %v590, %v802
        %v804 = vpop.f32.mrb[0].mxu0
        %805 = vdwg.mxu0
        %808 = vrot.lane.b32.xlu0 %v757, 96
        %v809 = vpop.permute.xlu0 %808
        %810 = vrot.lane.b32.xlu0 %v761, 96
        %v811 = vpop.permute.xlu0 %810
        %814 = vrot.lane.b32.xlu0 %v757, 64
        %v815 = vpop.permute.xlu0 %814
        %816 = vrot.lane.b32.xlu0 %v761, 64
        %v817 = vpop.permute.xlu0 %816
        %820 = vrot.lane.b32.xlu0 %v757, 32
        %v821 = vpop.permute.xlu0 %820
        %822 = vrot.lane.b32.xlu0 %v761, 32
        %v823 = vpop.permute.xlu0 %822
        %v826 = vpack.c.bf16 %v761, %v757
        %v827 = vpack.c.bf16 %v811, %v809
        %v828 = vpack.c.bf16 %v817, %v815
        %v829 = vpack.c.bf16 %v823, %v821
        %832 = vrot.lane.b32.xlu0 %v759, 96
        %v833 = vpop.permute.xlu0 %832
        %834 = vrot.lane.b32.xlu0 %v763, 96
        %v835 = vpop.permute.xlu0 %834
        %838 = vrot.lane.b32.xlu0 %v759, 64
        %v839 = vpop.permute.xlu0 %838
        %840 = vrot.lane.b32.xlu0 %v763, 64
        %v841 = vpop.permute.xlu0 %840
        %844 = vrot.lane.b32.xlu0 %v759, 32
        %v845 = vpop.permute.xlu0 %844
        %846 = vrot.lane.b32.xlu0 %v763, 32
        %v847 = vpop.permute.xlu0 %846
        %v850 = vpack.c.bf16 %v763, %v759
        %v851 = vpack.c.bf16 %v835, %v833
        %v852 = vpack.c.bf16 %v841, %v839
        %v853 = vpack.c.bf16 %v847, %v845
        %856 = vrot.lane.b32.xlu0 %v800, 96
        %v857 = vpop.permute.xlu0 %856
        %858 = vrot.lane.b32.xlu0 %v803, 96
        %v859 = vpop.permute.xlu0 %858
        %862 = vrot.lane.b32.xlu0 %v800, 64
        %v863 = vpop.permute.xlu0 %862
        %864 = vrot.lane.b32.xlu0 %v803, 64
        %v865 = vpop.permute.xlu0 %864
        %868 = vrot.lane.b32.xlu0 %v800, 32
        %v869 = vpop.permute.xlu0 %868
        %870 = vrot.lane.b32.xlu0 %v803, 32
        %v871 = vpop.permute.xlu0 %870
        %v874 = vpack.c.bf16 %v803, %v800
        %v875 = vpack.c.bf16 %v859, %v857
        %v876 = vpack.c.bf16 %v865, %v863
        %v877 = vpack.c.bf16 %v871, %v869
        %vm878 = vcmask 261120
        %v880 = vsel %vm878, %v826, 0
        %v883 = vsel %vm878, %v850, 0
        %885 = vmatprep.subr.bf16.mxu0 0
        %886 = vmatpush1.bf16.xpose.msra.mxu0 %v883
        %887 = vmatprep.subr.bf16.mxu0 0
        %888 = vmatpush1.bf16.xpose.msra.mxu0 0
        %889 = vmatprep.subr.bf16.mxu0 0
        %890 = vmatpush1.bf16.xpose.msra.mxu0 0
        %891 = vmatprep.subr.bf16.mxu0 0
        %892 = vmatpush1.bf16.xpose.msra.mxu0 0
        %893 = vmatprep.subr.bf16.mxu0 0
        %894 = vmatpush1.bf16.xpose.msra.mxu0 0
        %895 = vmatprep.subr.bf16.mxu0 0
        %896 = vmatpush1.bf16.xpose.msra.mxu0 0
        %897 = vmatprep.subr.bf16.mxu0 0
        %898 = vmatpush1.bf16.xpose.msra.mxu0 0
        %899 = vmatprep.subr.bf16.mxu0 0
        %900 = vmatpush1.bf16.xpose.msra.mxu0 0
        %901 = vmatprep.subr.bf16.mxu0 0
        %902 = vmatpush1.bf16.xpose.msra.mxu0 0
        %903 = vmatprep.subr.bf16.mxu0 0
        %904 = vmatpush1.bf16.xpose.msra.mxu0 0
        %905 = vmatprep.subr.bf16.mxu0 0
        %906 = vmatpush1.bf16.xpose.msra.mxu0 0
        %907 = vmatprep.subr.bf16.mxu0 0
        %908 = vmatpush1.bf16.xpose.msra.mxu0 0
        %909 = vmatprep.subr.bf16.mxu0 0
        %910 = vmatpush1.bf16.xpose.msra.mxu0 0
        %911 = vmatprep.subr.bf16.mxu0 0
        %912 = vmatpush1.bf16.xpose.msra.mxu0 0
        %913 = vmatprep.subr.bf16.mxu0 0
        %914 = vmatpush1.bf16.xpose.msra.mxu0 0
        %915 = vmatprep.subr.bf16.mxu0 0
        %916 = vmatpush1.bf16.xpose.msra.mxu0 0
        %917 = vmatprep.mubr.bf16.mxu0 0
        %918 = vmatmul.mubr.bf16.gmra.mrb[0].mxu0 %v880
        %v919 = vpop.f32.mrb[0].mxu0
        %v920 = vadd.f32 0.0, %v919
        %v921 = vpop.f32.mrb[0].mxu0
        %v922 = vpop.f32.mrb[0].mxu0
        %v923 = vadd.f32 0.0, %v922
        %v924 = vpop.f32.mrb[0].mxu0
        %925 = vdwg.mxu0
        %v927 = vsel %vm878, %v827, 0
        %v930 = vsel %vm878, %v851, 0
        %932 = vmatprep.subr.bf16.mxu0 0
        %933 = vmatpush1.bf16.xpose.msra.mxu0 %v930
        %934 = vmatprep.subr.bf16.mxu0 0
        %935 = vmatpush1.bf16.xpose.msra.mxu0 0
        %936 = vmatprep.subr.bf16.mxu0 0
        %937 = vmatpush1.bf16.xpose.msra.mxu0 0
        %938 = vmatprep.subr.bf16.mxu0 0
        %939 = vmatpush1.bf16.xpose.msra.mxu0 0
        %940 = vmatprep.subr.bf16.mxu0 0
        %941 = vmatpush1.bf16.xpose.msra.mxu0 0
        %942 = vmatprep.subr.bf16.mxu0 0
        %943 = vmatpush1.bf16.xpose.msra.mxu0 0
        %944 = vmatprep.subr.bf16.mxu0 0
        %945 = vmatpush1.bf16.xpose.msra.mxu0 0
        %946 = vmatprep.subr.bf16.mxu0 0
        %947 = vmatpush1.bf16.xpose.msra.mxu0 0
        %948 = vmatprep.subr.bf16.mxu0 0
        %949 = vmatpush1.bf16.xpose.msra.mxu0 0
        %950 = vmatprep.subr.bf16.mxu0 0
        %951 = vmatpush1.bf16.xpose.msra.mxu0 0
        %952 = vmatprep.subr.bf16.mxu0 0
        %953 = vmatpush1.bf16.xpose.msra.mxu0 0
        %954 = vmatprep.subr.bf16.mxu0 0
        %955 = vmatpush1.bf16.xpose.msra.mxu0 0
        %956 = vmatprep.subr.bf16.mxu0 0
        %957 = vmatpush1.bf16.xpose.msra.mxu0 0
        %958 = vmatprep.subr.bf16.mxu0 0
        %959 = vmatpush1.bf16.xpose.msra.mxu0 0
        %960 = vmatprep.subr.bf16.mxu0 0
        %961 = vmatpush1.bf16.xpose.msra.mxu0 0
        %962 = vmatprep.subr.bf16.mxu0 0
        %963 = vmatpush1.bf16.xpose.msra.mxu0 0
        %964 = vmatprep.mubr.bf16.mxu0 0
        %965 = vmatmul.mubr.bf16.gmra.mrb[0].mxu0 %v927
        %v966 = vpop.f32.mrb[0].mxu0
        %v967 = vadd.f32 0.0, %v966
        %v968 = vpop.f32.mrb[0].mxu0
        %v969 = vpop.f32.mrb[0].mxu0
        %v970 = vadd.f32 0.0, %v969
        %v971 = vpop.f32.mrb[0].mxu0
        %972 = vdwg.mxu0
        %v974 = vsel %vm878, %v828, 0
        %v977 = vsel %vm878, %v852, 0
        %979 = vmatprep.subr.bf16.mxu0 0
        %980 = vmatpush1.bf16.xpose.msra.mxu0 %v977
        %981 = vmatprep.subr.bf16.mxu0 0
        %982 = vmatpush1.bf16.xpose.msra.mxu0 0
        %983 = vmatprep.subr.bf16.mxu0 0
        %984 = vmatpush1.bf16.xpose.msra.mxu0 0
        %985 = vmatprep.subr.bf16.mxu0 0
        %986 = vmatpush1.bf16.xpose.msra.mxu0 0
        %987 = vmatprep.subr.bf16.mxu0 0
        %988 = vmatpush1.bf16.xpose.msra.mxu0 0
        %989 = vmatprep.subr.bf16.mxu0 0
        %990 = vmatpush1.bf16.xpose.msra.mxu0 0
        %991 = vmatprep.subr.bf16.mxu0 0
        %992 = vmatpush1.bf16.xpose.msra.mxu0 0
        %993 = vmatprep.subr.bf16.mxu0 0
        %994 = vmatpush1.bf16.xpose.msra.mxu0 0
        %995 = vmatprep.subr.bf16.mxu0 0
        %996 = vmatpush1.bf16.xpose.msra.mxu0 0
        %997 = vmatprep.subr.bf16.mxu0 0
        %998 = vmatpush1.bf16.xpose.msra.mxu0 0
        %999 = vmatprep.subr.bf16.mxu0 0
        %1000 = vmatpush1.bf16.xpose.msra.mxu0 0
        %1001 = vmatprep.subr.bf16.mxu0 0
        %1002 = vmatpush1.bf16.xpose.msra.mxu0 0
        %1003 = vmatprep.subr.bf16.mxu0 0
        %1004 = vmatpush1.bf16.xpose.msra.mxu0 0
        %1005 = vmatprep.subr.bf16.mxu0 0
        %1006 = vmatpush1.bf16.xpose.msra.mxu0 0
        %1007 = vmatprep.subr.bf16.mxu0 0
        %1008 = vmatpush1.bf16.xpose.msra.mxu0 0
        %1009 = vmatprep.subr.bf16.mxu0 0
        %1010 = vmatpush1.bf16.xpose.msra.mxu0 0
        %1011 = vmatprep.mubr.bf16.mxu0 0
        %1012 = vmatmul.mubr.bf16.gmra.mrb[0].mxu0 %v974
        %v1013 = vpop.f32.mrb[0].mxu0
        %v1014 = vadd.f32 0.0, %v1013
        %v1015 = vpop.f32.mrb[0].mxu0
        %v1016 = vpop.f32.mrb[0].mxu0
        %v1017 = vadd.f32 0.0, %v1016
        %v1018 = vpop.f32.mrb[0].mxu0
        %1019 = vdwg.mxu0
        %v1021 = vsel %vm878, %v829, 0
        %v1024 = vsel %vm878, %v853, 0
        %1026 = vmatprep.subr.bf16.mxu0 0
        %1027 = vmatpush1.bf16.xpose.msra.mxu0 %v1024
        %1028 = vmatprep.subr.bf16.mxu0 0
        %1029 = vmatpush1.bf16.xpose.msra.mxu0 0
        %1030 = vmatprep.subr.bf16.mxu0 0
        %1031 = vmatpush1.bf16.xpose.msra.mxu0 0
        %1032 = vmatprep.subr.bf16.mxu0 0
        %1033 = vmatpush1.bf16.xpose.msra.mxu0 0
        %1034 = vmatprep.subr.bf16.mxu0 0
        %1035 = vmatpush1.bf16.xpose.msra.mxu0 0
        %1036 = vmatprep.subr.bf16.mxu0 0
        %1037 = vmatpush1.bf16.xpose.msra.mxu0 0
        %1038 = vmatprep.subr.bf16.mxu0 0
        %1039 = vmatpush1.bf16.xpose.msra.mxu0 0
        %1040 = vmatprep.subr.bf16.mxu0 0
        %1041 = vmatpush1.bf16.xpose.msra.mxu0 0
        %1042 = vmatprep.subr.bf16.mxu0 0
        %1043 = vmatpush1.bf16.xpose.msra.mxu0 0
        %1044 = vmatprep.subr.bf16.mxu0 0
        %1045 = vmatpush1.bf16.xpose.msra.mxu0 0
        %1046 = vmatprep.subr.bf16.mxu0 0
        %1047 = vmatpush1.bf16.xpose.msra.mxu0 0
        %1048 = vmatprep.subr.bf16.mxu0 0
        %1049 = vmatpush1.bf16.xpose.msra.mxu0 0
        %1050 = vmatprep.subr.bf16.mxu0 0
        %1051 = vmatpush1.bf16.xpose.msra.mxu0 0
        %1052 = vmatprep.subr.bf16.mxu0 0
        %1053 = vmatpush1.bf16.xpose.msra.mxu0 0
        %1054 = vmatprep.subr.bf16.mxu0 0
        %1055 = vmatpush1.bf16.xpose.msra.mxu0 0
        %1056 = vmatprep.subr.bf16.mxu0 0
        %1057 = vmatpush1.bf16.xpose.msra.mxu0 0
        %1058 = vmatprep.mubr.bf16.mxu0 0
        %1059 = vmatmul.mubr.bf16.gmra.mrb[0].mxu0 %v1021
        %v1060 = vpop.f32.mrb[0].mxu0
        %v1061 = vadd.f32 0.0, %v1060
        %v1062 = vpop.f32.mrb[0].mxu0
        %v1063 = vpop.f32.mrb[0].mxu0
        %v1064 = vadd.f32 0.0, %v1063
        %v1065 = vpop.f32.mrb[0].mxu0
        %1066 = vdwg.mxu0
        %vm1067 = vcmask 130048
        %v1068 = vsel %vm1067, %v920, -inf
        %1069 = vmax.xlane.f32.xlu0 %v1068
        %v1070 = vpop.xlane.xlu0 %1069
        %v1071 = vsel %vm1067, %v923, -inf
        %1072 = vmax.xlane.f32.xlu0 %v1071
        %v1073 = vpop.xlane.xlu0 %1072
        %v1074 = vsel %vm1067, %v967, -inf
        %1075 = vmax.xlane.f32.xlu0 %v1074
        %v1076 = vpop.xlane.xlu0 %1075
        %v1077 = vsel %vm1067, %v970, -inf
        %1078 = vmax.xlane.f32.xlu0 %v1077
        %v1079 = vpop.xlane.xlu0 %1078
        %v1080 = vsel %vm1067, %v1014, -inf
        %1081 = vmax.xlane.f32.xlu0 %v1080
        %v1082 = vpop.xlane.xlu0 %1081
        %v1083 = vsel %vm1067, %v1017, -inf
        %1084 = vmax.xlane.f32.xlu0 %v1083
        %v1085 = vpop.xlane.xlu0 %1084
        %v1086 = vsel %vm1067, %v1061, -inf
        %1087 = vmax.xlane.f32.xlu0 %v1086
        %v1088 = vpop.xlane.xlu0 %1087
        %v1089 = vsel %vm1067, %v1064, -inf
        %1090 = vmax.xlane.f32.xlu0 %v1089
        %v1091 = vpop.xlane.xlu0 %1090
        %v1092 = vsub.f32 %v920, %v1070
        %v1093 = vsub.f32 %v923, %v1073
        %v1094 = vsub.f32 %v967, %v1076
        %v1095 = vsub.f32 %v970, %v1079
        %v1096 = vsub.f32 %v1014, %v1082
        %v1097 = vsub.f32 %v1017, %v1085
        %v1098 = vsub.f32 %v1061, %v1088
        %v1099 = vsub.f32 %v1064, %v1091
        %v1100 = vmul.f32 %v1092, 1.442695
        %v1101 = vpow.pop %v1100
        %v1102 = vmul.f32 %v1093, 1.442695
        %v1103 = vpow.pop %v1102
        %v1104 = vmul.f32 %v1094, 1.442695
        %v1105 = vpow.pop %v1104
        %v1106 = vmul.f32 %v1095, 1.442695
        %v1107 = vpow.pop %v1106
        %v1108 = vmul.f32 %v1096, 1.442695
        %v1109 = vpow.pop %v1108
        %v1110 = vmul.f32 %v1097, 1.442695
        %v1111 = vpow.pop %v1110
        %v1112 = vmul.f32 %v1098, 1.442695
        %v1113 = vpow.pop %v1112
        %v1114 = vmul.f32 %v1099, 1.442695
        %v1115 = vpow.pop %v1114
        %v1116 = vsel %vm1067, %v1101, 0.0
        %1117 = vadd.xlane.f32.xlu0 %v1116
        %v1118 = vpop.xlane.xlu0 %1117
        %v1119 = vsel %vm1067, %v1103, 0.0
        %1120 = vadd.xlane.f32.xlu0 %v1119
        %v1121 = vpop.xlane.xlu0 %1120
        %v1122 = vsel %vm1067, %v1105, 0.0
        %1123 = vadd.xlane.f32.xlu0 %v1122
        %v1124 = vpop.xlane.xlu0 %1123
        %v1125 = vsel %vm1067, %v1107, 0.0
        %1126 = vadd.xlane.f32.xlu0 %v1125
        %v1127 = vpop.xlane.xlu0 %1126
        %v1128 = vsel %vm1067, %v1109, 0.0
        %1129 = vadd.xlane.f32.xlu0 %v1128
        %v1130 = vpop.xlane.xlu0 %1129
        %v1131 = vsel %vm1067, %v1111, 0.0
        %1132 = vadd.xlane.f32.xlu0 %v1131
        %v1133 = vpop.xlane.xlu0 %1132
        %v1134 = vsel %vm1067, %v1113, 0.0
        %1135 = vadd.xlane.f32.xlu0 %v1134
        %v1136 = vpop.xlane.xlu0 %1135
        %v1137 = vsel %vm1067, %v1115, 0.0
        %1138 = vadd.xlane.f32.xlu0 %v1137
        %v1139 = vpop.xlane.xlu0 %1138
        %v1140 = vrcp.pop %v1118
        %v1141 = vrcp.pop %v1121
        %v1142 = vrcp.pop %v1124
        %v1143 = vrcp.pop %v1127
        %v1144 = vrcp.pop %v1130
        %v1145 = vrcp.pop %v1133
        %v1146 = vrcp.pop %v1136
        %v1147 = vrcp.pop %v1139
        %v1148 = vmul.f32 %v1101, %v1140
        %v1149 = vmul.f32 %v1103, %v1141
        %v1150 = vmul.f32 %v1105, %v1142
        %v1151 = vmul.f32 %v1107, %v1143
        %v1152 = vmul.f32 %v1109, %v1144
        %v1153 = vmul.f32 %v1111, %v1145
        %v1154 = vmul.f32 %v1113, %v1146
        %v1155 = vmul.f32 %v1115, %v1147
        %v1156 = vpack.c.bf16 %v1149, %v1148
        %v1157 = vpack.c.bf16 %v1151, %v1150
        %v1158 = vpack.c.bf16 %v1153, %v1152
        %v1159 = vpack.c.bf16 %v1155, %v1154
        %v1161 = vsel %vm1067, %v1156, 0
        %1163 = vmatprep.subr.bf16.mxu0 0
        %1164 = vmatpush1.bf16.msra.mxu0 %v874
        %1165 = vmatprep.subr.bf16.mxu0 0
        %1166 = vmatpush1.bf16.msra.mxu0 0
        %1167 = vmatprep.subr.bf16.mxu0 0
        %1168 = vmatpush1.bf16.msra.mxu0 0
        %1169 = vmatprep.subr.bf16.mxu0 0
        %1170 = vmatpush1.bf16.msra.mxu0 0
        %1171 = vmatprep.subr.bf16.mxu0 0
        %1172 = vmatpush1.bf16.msra.mxu0 0
        %1173 = vmatprep.subr.bf16.mxu0 0
        %1174 = vmatpush1.bf16.msra.mxu0 0
        %1175 = vmatprep.subr.bf16.mxu0 0
        %1176 = vmatpush1.bf16.msra.mxu0 0
        %1177 = vmatprep.subr.bf16.mxu0 0
        %1178 = vmatpush1.bf16.msra.mxu0 0
        %1179 = vmatprep.subr.bf16.mxu0 0
        %1180 = vmatpush1.bf16.msra.mxu0 0
        %1181 = vmatprep.subr.bf16.mxu0 0
        %1182 = vmatpush1.bf16.msra.mxu0 0
        %1183 = vmatprep.subr.bf16.mxu0 0
        %1184 = vmatpush1.bf16.msra.mxu0 0
        %1185 = vmatprep.subr.bf16.mxu0 0
        %1186 = vmatpush1.bf16.msra.mxu0 0
        %1187 = vmatprep.subr.bf16.mxu0 0
        %1188 = vmatpush1.bf16.msra.mxu0 0
        %1189 = vmatprep.subr.bf16.mxu0 0
        %1190 = vmatpush1.bf16.msra.mxu0 0
        %1191 = vmatprep.subr.bf16.mxu0 0
        %1192 = vmatpush1.bf16.msra.mxu0 0
        %1193 = vmatprep.subr.bf16.mxu0 0
        %1194 = vmatpush1.bf16.msra.mxu0 0
        %1195 = vmatprep.mubr.bf16.mxu0 0
        %1196 = vmatmul.mubr.bf16.gmra.mrb[0].mxu0 %v1161
        %v1197 = vpop.f32.mrb[0].mxu0
        %v1198 = vadd.f32 0.0, %v1197
        %v1199 = vpop.f32.mrb[0].mxu0
        %v1200 = vpop.f32.mrb[0].mxu0
        %v1201 = vadd.f32 0.0, %v1200
        %v1202 = vpop.f32.mrb[0].mxu0
        %1203 = vdwg.mxu0
        %v1205 = vsel %vm1067, %v1157, 0
        %1207 = vmatprep.subr.bf16.mxu0 0
        %1208 = vmatpush1.bf16.msra.mxu0 %v875
        %1209 = vmatprep.subr.bf16.mxu0 0
        %1210 = vmatpush1.bf16.msra.mxu0 0
        %1211 = vmatprep.subr.bf16.mxu0 0
        %1212 = vmatpush1.bf16.msra.mxu0 0
        %1213 = vmatprep.subr.bf16.mxu0 0
        %1214 = vmatpush1.bf16.msra.mxu0 0
        %1215 = vmatprep.subr.bf16.mxu0 0
        %1216 = vmatpush1.bf16.msra.mxu0 0
        %1217 = vmatprep.subr.bf16.mxu0 0
        %1218 = vmatpush1.bf16.msra.mxu0 0
        %1219 = vmatprep.subr.bf16.mxu0 0
        %1220 = vmatpush1.bf16.msra.mxu0 0
        %1221 = vmatprep.subr.bf16.mxu0 0
        %1222 = vmatpush1.bf16.msra.mxu0 0
        %1223 = vmatprep.subr.bf16.mxu0 0
        %1224 = vmatpush1.bf16.msra.mxu0 0
        %1225 = vmatprep.subr.bf16.mxu0 0
        %1226 = vmatpush1.bf16.msra.mxu0 0
        %1227 = vmatprep.subr.bf16.mxu0 0
        %1228 = vmatpush1.bf16.msra.mxu0 0
        %1229 = vmatprep.subr.bf16.mxu0 0
        %1230 = vmatpush1.bf16.msra.mxu0 0
        %1231 = vmatprep.subr.bf16.mxu0 0
        %1232 = vmatpush1.bf16.msra.mxu0 0
        %1233 = vmatprep.subr.bf16.mxu0 0
        %1234 = vmatpush1.bf16.msra.mxu0 0
        %1235 = vmatprep.subr.bf16.mxu0 0
        %1236 = vmatpush1.bf16.msra.mxu0 0
        %1237 = vmatprep.subr.bf16.mxu0 0
        %1238 = vmatpush1.bf16.msra.mxu0 0
        %1239 = vmatprep.mubr.bf16.mxu0 0
        %1240 = vmatmul.mubr.bf16.gmra.mrb[0].mxu0 %v1205
        %v1241 = vpop.f32.mrb[0].mxu0
        %v1242 = vadd.f32 0.0, %v1241
        %v1243 = vpop.f32.mrb[0].mxu0
        %v1244 = vpop.f32.mrb[0].mxu0
        %v1245 = vadd.f32 0.0, %v1244
        %v1246 = vpop.f32.mrb[0].mxu0
        %1247 = vdwg.mxu0
        %v1249 = vsel %vm1067, %v1158, 0
        %1251 = vmatprep.subr.bf16.mxu0 0
        %1252 = vmatpush1.bf16.msra.mxu0 %v876
        %1253 = vmatprep.subr.bf16.mxu0 0
        %1254 = vmatpush1.bf16.msra.mxu0 0
        %1255 = vmatprep.subr.bf16.mxu0 0
        %1256 = vmatpush1.bf16.msra.mxu0 0
        %1257 = vmatprep.subr.bf16.mxu0 0
        %1258 = vmatpush1.bf16.msra.mxu0 0
        %1259 = vmatprep.subr.bf16.mxu0 0
        %1260 = vmatpush1.bf16.msra.mxu0 0
        %1261 = vmatprep.subr.bf16.mxu0 0
        %1262 = vmatpush1.bf16.msra.mxu0 0
        %1263 = vmatprep.subr.bf16.mxu0 0
        %1264 = vmatpush1.bf16.msra.mxu0 0
        %1265 = vmatprep.subr.bf16.mxu0 0
        %1266 = vmatpush1.bf16.msra.mxu0 0
        %1267 = vmatprep.subr.bf16.mxu0 0
        %1268 = vmatpush1.bf16.msra.mxu0 0
        %1269 = vmatprep.subr.bf16.mxu0 0
        %1270 = vmatpush1.bf16.msra.mxu0 0
        %1271 = vmatprep.subr.bf16.mxu0 0
        %1272 = vmatpush1.bf16.msra.mxu0 0
        %1273 = vmatprep.subr.bf16.mxu0 0
        %1274 = vmatpush1.bf16.msra.mxu0 0
        %1275 = vmatprep.subr.bf16.mxu0 0
        %1276 = vmatpush1.bf16.msra.mxu0 0
        %1277 = vmatprep.subr.bf16.mxu0 0
        %1278 = vmatpush1.bf16.msra.mxu0 0
        %1279 = vmatprep.subr.bf16.mxu0 0
        %1280 = vmatpush1.bf16.msra.mxu0 0
        %1281 = vmatprep.subr.bf16.mxu0 0
        %1282 = vmatpush1.bf16.msra.mxu0 0
        %1283 = vmatprep.mubr.bf16.mxu0 0
        %1284 = vmatmul.mubr.bf16.gmra.mrb[0].mxu0 %v1249
        %v1285 = vpop.f32.mrb[0].mxu0
        %v1286 = vadd.f32 0.0, %v1285
        %v1287 = vpop.f32.mrb[0].mxu0
        %v1288 = vpop.f32.mrb[0].mxu0
        %v1289 = vadd.f32 0.0, %v1288
        %v1290 = vpop.f32.mrb[0].mxu0
        %1291 = vdwg.mxu0
        %v1293 = vsel %vm1067, %v1159, 0
        %1295 = vmatprep.subr.bf16.mxu0 0
        %1296 = vmatpush1.bf16.msra.mxu0 %v877
        %1297 = vmatprep.subr.bf16.mxu0 0
        %1298 = vmatpush1.bf16.msra.mxu0 0
        %1299 = vmatprep.subr.bf16.mxu0 0
        %1300 = vmatpush1.bf16.msra.mxu0 0
        %1301 = vmatprep.subr.bf16.mxu0 0
        %1302 = vmatpush1.bf16.msra.mxu0 0
        %1303 = vmatprep.subr.bf16.mxu0 0
        %1304 = vmatpush1.bf16.msra.mxu0 0
        %1305 = vmatprep.subr.bf16.mxu0 0
        %1306 = vmatpush1.bf16.msra.mxu0 0
        %1307 = vmatprep.subr.bf16.mxu0 0
        %1308 = vmatpush1.bf16.msra.mxu0 0
        %1309 = vmatprep.subr.bf16.mxu0 0
        %1310 = vmatpush1.bf16.msra.mxu0 0
        %1311 = vmatprep.subr.bf16.mxu0 0
        %1312 = vmatpush1.bf16.msra.mxu0 0
        %1313 = vmatprep.subr.bf16.mxu0 0
        %1314 = vmatpush1.bf16.msra.mxu0 0
        %1315 = vmatprep.subr.bf16.mxu0 0
        %1316 = vmatpush1.bf16.msra.mxu0 0
        %1317 = vmatprep.subr.bf16.mxu0 0
        %1318 = vmatpush1.bf16.msra.mxu0 0
        %1319 = vmatprep.subr.bf16.mxu0 0
        %1320 = vmatpush1.bf16.msra.mxu0 0
        %1321 = vmatprep.subr.bf16.mxu0 0
        %1322 = vmatpush1.bf16.msra.mxu0 0
        %1323 = vmatprep.subr.bf16.mxu0 0
        %1324 = vmatpush1.bf16.msra.mxu0 0
        %1325 = vmatprep.subr.bf16.mxu0 0
        %1326 = vmatpush1.bf16.msra.mxu0 0
        %1327 = vmatprep.mubr.bf16.mxu0 0
        %1328 = vmatmul.mubr.bf16.gmra.mrb[0].mxu0 %v1293
        %v1329 = vpop.f32.mrb[0].mxu0
        %v1330 = vadd.f32 0.0, %v1329
        %v1331 = vpop.f32.mrb[0].mxu0
        %v1332 = vpop.f32.mrb[0].mxu0
        %v1333 = vadd.f32 0.0, %v1332
        %v1334 = vpop.f32.mrb[0].mxu0
        %1335 = vdwg.mxu0
        %1338 = vrot.lane.b32.xlu0 %v1242, 32
        %v1339 = vpop.permute.xlu0 %1338
        %1340 = vrot.lane.b32.xlu0 %v1245, 32
        %v1341 = vpop.permute.xlu0 %1340
        %1346 = vrot.lane.b32.xlu0 %v1286, 64
        %v1347 = vpop.permute.xlu0 %1346
        %1348 = vrot.lane.b32.xlu0 %v1289, 64
        %v1349 = vpop.permute.xlu0 %1348
        %1354 = vrot.lane.b32.xlu0 %v1330, 96
        %v1355 = vpop.permute.xlu0 %1354
        %1356 = vrot.lane.b32.xlu0 %v1333, 96
        %v1357 = vpop.permute.xlu0 %1356
        %v1360 = vsel %vm878, %v1198, %v1339
        %v1361 = vsel %vm878, %v1201, %v1341
        %vm1362 = vcmask 523264
        %v1363 = vsel %vm1362, %v1360, %v1347
        %v1364 = vsel %vm1362, %v1361, %v1349
        %vm1365 = vcmask 785408
        %v1366 = vsel %vm1365, %v1363, %v1355
        %v1367 = vsel %vm1365, %v1364, %v1357
        %v1368 = vpack.c.bf16 %v1367, %v1366
        %v1369 = vld [vmem:[#allocation4] sm:$0xf]
        %v1370 = vld [vmem:[#allocation4 + $0x4] sm:$0xf]
        %v1371 = vld [vmem:[#allocation4 + $0x8] sm:$0xf]
        %v1372 = vld [vmem:[#allocation4 + $0xc] sm:$0xf]
        %v1373 = vld [vmem:[#allocation4 + $0x10] sm:$0xf]
        %v1374 = vld [vmem:[#allocation4 + $0x14] sm:$0xf]
        %v1375 = vld [vmem:[#allocation4 + $0x18] sm:$0xf]
        %v1376 = vld [vmem:[#allocation4 + $0x1c] sm:$0xf]
        %v1377 = vld [vmem:[#allocation4 + $0x20] sm:$0xf]
        %v1378 = vld [vmem:[#allocation4 + $0x24] sm:$0xf]
        %v1379 = vld [vmem:[#allocation4 + $0x28] sm:$0xf]
        %v1380 = vld [vmem:[#allocation4 + $0x2c] sm:$0xf]
        %v1381 = vld [vmem:[#allocation4 + $0x30] sm:$0xf]
        %v1382 = vld [vmem:[#allocation4 + $0x34] sm:$0xf]
        %v1383 = vld [vmem:[#allocation4 + $0x38] sm:$0xf]
        %v1384 = vld [vmem:[#allocation4 + $0x3c] sm:$0xf]
        %v1385 = vld [vmem:[%s6] sm:$0x1]
        %v1387 = vlaneseq
        %v1388 = vshrl.u32 %v1387, 7
        %v1389 = vsub.s32 0, %v1388
        %v1390 = vrot.slane %v1385, %v1389
        %v1408 = vunpack.c.l.b16 %v1369
        %v1409 = vunpack.c.l.b16 %v1370
        %v1410 = vunpack.c.l.b16 %v1371
        %v1411 = vunpack.c.l.b16 %v1372
        %v1412 = vunpack.c.l.b16 %v1373
        %v1413 = vunpack.c.l.b16 %v1374
        %v1414 = vunpack.c.l.b16 %v1375
        %v1415 = vunpack.c.l.b16 %v1376
        %v1416 = vunpack.c.l.b16 %v1377
        %v1417 = vunpack.c.l.b16 %v1378
        %v1418 = vunpack.c.l.b16 %v1379
        %v1419 = vunpack.c.l.b16 %v1380
        %v1420 = vunpack.c.l.b16 %v1381
        %v1421 = vunpack.c.l.b16 %v1382
        %v1422 = vunpack.c.l.b16 %v1383
        %v1423 = vunpack.c.l.b16 %v1384
        %v1424 = vpack.c.b16 %v1409, %v1408
        %v1425 = vpack.c.b16 %v1411, %v1410
        %v1426 = vpack.c.b16 %v1413, %v1412
        %v1427 = vpack.c.b16 %v1415, %v1414
        %v1428 = vpack.c.b16 %v1417, %v1416
        %v1429 = vpack.c.b16 %v1419, %v1418
        %v1430 = vpack.c.b16 %v1421, %v1420
        %v1431 = vpack.c.b16 %v1423, %v1422
        %1440 = vmatprep.subr.bf16.mxu0 0
        %1441 = vmatpush1.bf16.msra.mxu0 %v1424
        %1442 = vmatprep.subr.bf16.mxu0 0
        %1443 = vmatpush1.bf16.msra.mxu0 %v1425
        %1444 = vmatprep.subr.bf16.mxu0 0
        %1445 = vmatpush1.bf16.msra.mxu0 %v1426
        %1446 = vmatprep.subr.bf16.mxu0 0
        %1447 = vmatpush1.bf16.msra.mxu0 %v1427
        %1448 = vmatprep.subr.bf16.mxu0 0
        %1449 = vmatpush1.bf16.msra.mxu0 %v1428
        %1450 = vmatprep.subr.bf16.mxu0 0
        %1451 = vmatpush1.bf16.msra.mxu0 %v1429
        %1452 = vmatprep.subr.bf16.mxu0 0
        %1453 = vmatpush1.bf16.msra.mxu0 %v1430
        %1454 = vmatprep.subr.bf16.mxu0 0
        %1455 = vmatpush1.bf16.msra.mxu0 %v1431
        %1456 = vmatprep.subr.bf16.mxu0 0
        %1457 = vmatpush1.bf16.msra.mxu0 0
        %1458 = vmatprep.subr.bf16.mxu0 0
        %1459 = vmatpush1.bf16.msra.mxu0 0
        %1460 = vmatprep.subr.bf16.mxu0 0
        %1461 = vmatpush1.bf16.msra.mxu0 0
        %1462 = vmatprep.subr.bf16.mxu0 0
        %1463 = vmatpush1.bf16.msra.mxu0 0
        %1464 = vmatprep.subr.bf16.mxu0 0
        %1465 = vmatpush1.bf16.msra.mxu0 0
        %1466 = vmatprep.subr.bf16.mxu0 0
        %1467 = vmatpush1.bf16.msra.mxu0 0
        %1468 = vmatprep.subr.bf16.mxu0 0
        %1469 = vmatpush1.bf16.msra.mxu0 0
        %1470 = vmatprep.subr.bf16.mxu0 0
        %1471 = vmatpush1.bf16.msra.mxu0 0
        %1472 = vmatprep.mubr.bf16.mxu0 0
        %1473 = vmatmul.mubr.bf16.gmra.mrb[0].mxu0 %v1368
        %v1474 = vpop.f32.mrb[0].mxu0
        %v1475 = vadd.f32 %v1390, %v1474
        %v1476 = vpop.f32.mrb[0].mxu0
        %v1477 = vpop.f32.mrb[0].mxu0
        %v1478 = vadd.f32 %v1390, %v1477
        %v1479 = vpop.f32.mrb[0].mxu0
        %1480 = vdwg.mxu0
        %v1481 = vadd.f32 %v501, %v1475
        %v1482 = vadd.f32 %v502, %v1478
        %v1483 = vld [vmem:[%s7] sm:$0x1]
        %v1484 = vld [vmem:[%s8] sm:$0x1]
        %1485 = vadd.xlane.f32.xlu0 %v1481
        %v1486 = vpop.xlane.xlu0 %1485
        %1487 = vadd.xlane.f32.xlu0 %v1482
        %v1488 = vpop.xlane.xlu0 %1487
        %v1489 = vmul.f32 %v1486, %v509
        %v1490 = vmul.f32 %v1488, %v509
        %v1491 = vsub.f32 %v1481, %v1489
        %v1492 = vsub.f32 %v1482, %v1490
        %v1493 = vmul.f32 %v1491, %v1491
        %v1494 = vmul.f32 %v1492, %v1492
        %1495 = vadd.xlane.f32.xlu0 %v1493
        %v1496 = vpop.xlane.xlu0 %1495
        %1497 = vadd.xlane.f32.xlu0 %v1494
        %v1498 = vpop.xlane.xlu0 %1497
        %v1499 = vmul.f32 %v1496, %v509
        %v1500 = vmul.f32 %v1498, %v509
        %v1501 = vadd.f32 %v1499, 1e-05
        %v1502 = vadd.f32 %v1500, 1e-05
        %v1503 = vrsqrt.pop %v1501
        %v1504 = vrsqrt.pop %v1502
        %v1505 = vmul.f32 %v1491, %v1503
        %v1506 = vmul.f32 %v1492, %v1504
        %v1508 = vlaneseq
        %v1509 = vshrl.u32 %v1508, 7
        %v1510 = vsub.s32 0, %v1509
        %v1511 = vrot.slane %v1483, %v1510
        %v1513 = vmul.f32 %v1505, %v1511
        %v1514 = vmul.f32 %v1506, %v1511
        %v1516 = vlaneseq
        %v1517 = vshrl.u32 %v1516, 7
        %v1518 = vsub.s32 0, %v1517
        %v1519 = vrot.slane %v1484, %v1518
        %v1521 = vadd.f32 %v1513, %v1519
        %v1522 = vadd.f32 %v1514, %v1519
        %v1523 = vpack.c.bf16 %v1522, %v1521
        %v1524 = vld [vmem:[#allocation6] sm:$0xff]
        %v1525 = vld [vmem:[#allocation6 + $0x8] sm:$0xff]
        %v1526 = vld [vmem:[#allocation6 + $0x10] sm:$0xff]
        %v1527 = vld [vmem:[#allocation6 + $0x18] sm:$0xff]
        %v1528 = vld [vmem:[#allocation6 + $0x20] sm:$0xff]
        %v1529 = vld [vmem:[#allocation6 + $0x28] sm:$0xff]
        %v1530 = vld [vmem:[#allocation6 + $0x30] sm:$0xff]
        %v1531 = vld [vmem:[#allocation6 + $0x38] sm:$0xff]
        %v1532 = vld [vmem:[#allocation6 + $0x40] sm:$0xff]
        %v1533 = vld [vmem:[#allocation6 + $0x48] sm:$0xff]
        %v1534 = vld [vmem:[#allocation6 + $0x50] sm:$0xff]
        %v1535 = vld [vmem:[#allocation6 + $0x58] sm:$0xff]
        %v1536 = vld [vmem:[#allocation6 + $0x60] sm:$0xff]
        %v1537 = vld [vmem:[#allocation6 + $0x68] sm:$0xff]
        %v1538 = vld [vmem:[#allocation6 + $0x70] sm:$0xff]
        %v1539 = vld [vmem:[#allocation6 + $0x78] sm:$0xff]
        %v1540 = vld [vmem:[%s10] sm:$0x3]
        %v1542 = vlaneseq
        %v1543 = vshrl.u32 %v1542, 7
        %v1544 = vsub.s32 0, %v1543
        %v1545 = vrot.slane %v1540, %v1544
        %v1546 = vlaneseq
        %v1547 = vshrl.u32 %v1546, 7
        %v1548 = vsub.s32 1, %v1547
        %v1549 = vrot.slane %v1540, %v1548
        %v1568 = vunpack.c.l.b16 %v1524
        %v1569 = vunpack.c.h.b16 %v1524
        %v1570 = vunpack.c.l.b16 %v1525
        %v1571 = vunpack.c.h.b16 %v1525
        %v1572 = vunpack.c.l.b16 %v1526
        %v1573 = vunpack.c.h.b16 %v1526
        %v1574 = vunpack.c.l.b16 %v1527
        %v1575 = vunpack.c.h.b16 %v1527
        %v1576 = vunpack.c.l.b16 %v1528
        %v1577 = vunpack.c.h.b16 %v1528
        %v1578 = vunpack.c.l.b16 %v1529
        %v1579 = vunpack.c.h.b16 %v1529
        %v1580 = vunpack.c.l.b16 %v1530
        %v1581 = vunpack.c.h.b16 %v1530
        %v1582 = vunpack.c.l.b16 %v1531
        %v1583 = vunpack.c.h.b16 %v1531
        %v1584 = vunpack.c.l.b16 %v1532
        %v1585 = vunpack.c.h.b16 %v1532
        %v1586 = vunpack.c.l.b16 %v1533
        %v1587 = vunpack.c.h.b16 %v1533
        %v1588 = vunpack.c.l.b16 %v1534
        %v1589 = vunpack.c.h.b16 %v1534
        %v1590 = vunpack.c.l.b16 %v1535
        %v1591 = vunpack.c.h.b16 %v1535
        %v1592 = vunpack.c.l.b16 %v1536
        %v1593 = vunpack.c.h.b16 %v1536
        %v1594 = vunpack.c.l.b16 %v1537
        %v1595 = vunpack.c.h.b16 %v1537
        %v1596 = vunpack.c.l.b16 %v1538
        %v1597 = vunpack.c.h.b16 %v1538
        %v1598 = vunpack.c.l.b16 %v1539
        %v1599 = vunpack.c.h.b16 %v1539
        %v1600 = vpack.c.b16 %v1570, %v1568
        %v1601 = vpack.c.b16 %v1571, %v1569
        %v1602 = vpack.c.b16 %v1574, %v1572
        %v1603 = vpack.c.b16 %v1575, %v1573
        %v1604 = vpack.c.b16 %v1578, %v1576
        %v1605 = vpack.c.b16 %v1579, %v1577
        %v1606 = vpack.c.b16 %v1582, %v1580
        %v1607 = vpack.c.b16 %v1583, %v1581
        %v1608 = vpack.c.b16 %v1586, %v1584
        %v1609 = vpack.c.b16 %v1587, %v1585
        %v1610 = vpack.c.b16 %v1590, %v1588
        %v1611 = vpack.c.b16 %v1591, %v1589
        %v1612 = vpack.c.b16 %v1594, %v1592
        %v1613 = vpack.c.b16 %v1595, %v1593
        %v1614 = vpack.c.b16 %v1598, %v1596
        %v1615 = vpack.c.b16 %v1599, %v1597
        %1632 = vmatprep.subr.bf16.mxu0 %v1601
        %1633 = vmatpush1.bf16.msra.mxu0 %v1600
        %1634 = vmatprep.subr.bf16.mxu0 %v1603
        %1635 = vmatpush1.bf16.msra.mxu0 %v1602
        %1636 = vmatprep.subr.bf16.mxu0 %v1605
        %1637 = vmatpush1.bf16.msra.mxu0 %v1604
        %1638 = vmatprep.subr.bf16.mxu0 %v1607
        %1639 = vmatpush1.bf16.msra.mxu0 %v1606
        %1640 = vmatprep.subr.bf16.mxu0 %v1609
        %1641 = vmatpush1.bf16.msra.mxu0 %v1608
        %1642 = vmatprep.subr.bf16.mxu0 %v1611
        %1643 = vmatpush1.bf16.msra.mxu0 %v1610
        %1644 = vmatprep.subr.bf16.mxu0 %v1613
        %1645 = vmatpush1.bf16.msra.mxu0 %v1612
        %1646 = vmatprep.subr.bf16.mxu0 %v1615
        %1647 = vmatpush1.bf16.msra.mxu0 %v1614
        %1648 = vmatprep.subr.bf16.mxu0 0
        %1649 = vmatpush1.bf16.msra.mxu0 0
        %1650 = vmatprep.subr.bf16.mxu0 0
        %1651 = vmatpush1.bf16.msra.mxu0 0
        %1652 = vmatprep.subr.bf16.mxu0 0
        %1653 = vmatpush1.bf16.msra.mxu0 0
        %1654 = vmatprep.subr.bf16.mxu0 0
        %1655 = vmatpush1.bf16.msra.mxu0 0
        %1656 = vmatprep.subr.bf16.mxu0 0
        %1657 = vmatpush1.bf16.msra.mxu0 0
        %1658 = vmatprep.subr.bf16.mxu0 0
        %1659 = vmatpush1.bf16.msra.mxu0 0
        %1660 = vmatprep.subr.bf16.mxu0 0
        %1661 = vmatpush1.bf16.msra.mxu0 0
        %1662 = vmatprep.subr.bf16.mxu0 0
        %1663 = vmatpush1.bf16.msra.mxu0 0
        %1664 = vmatprep.mubr.bf16.mxu0 0
        %1665 = vmatmul.mubr.bf16.gmra.mrb[0].mxu0 %v1523
        %v1666 = vpop.f32.mrb[0].mxu0
        %v1667 = vadd.f32 %v1545, %v1666
        %v1668 = vpop.f32.mrb[0].mxu0
        %v1669 = vadd.f32 %v1549, %v1668
        %v1670 = vpop.f32.mrb[0].mxu0
        %v1671 = vadd.f32 %v1545, %v1670
        %v1672 = vpop.f32.mrb[0].mxu0
        %v1673 = vadd.f32 %v1549, %v1672
        %1674 = vdwg.mxu0
        %v1675 = vmul.f32 %v1667, 0.5
        %v1676 = vmul.f32 %v1669, 0.5
        %v1677 = vmul.f32 %v1671, 0.5
        %v1678 = vmul.f32 %v1673, 0.5
        %v1679 = vmul.f32 %v1667, 0.044715
        %v1680 = vmul.f32 %v1669, 0.044715
        %v1681 = vmul.f32 %v1671, 0.044715
        %v1682 = vmul.f32 %v1673, 0.044715
        %v1683 = vmul.f32 %v1679, %v1667
        %v1684 = vmul.f32 %v1680, %v1669
        %v1685 = vmul.f32 %v1681, %v1671
        %v1686 = vmul.f32 %v1682, %v1673
        %v1687 = vmul.f32 %v1683, %v1667
        %v1688 = vmul.f32 %v1684, %v1669
        %v1689 = vmul.f32 %v1685, %v1671
        %v1690 = vmul.f32 %v1686, %v1673
        %v1691 = vadd.f32 %v1667, %v1687
        %v1692 = vadd.f32 %v1669, %v1688
        %v1693 = vadd.f32 %v1671, %v1689
        %v1694 = vadd.f32 %v1673, %v1690
        %v1695 = vmul.f32 %v1691, 0.7978846
        %v1696 = vmul.f32 %v1692, 0.7978846
        %v1697 = vmul.f32 %v1693, 0.7978846
        %v1698 = vmul.f32 %v1694, 0.7978846
        %v1699 = vtanh.pop %v1695
        %v1700 = vtanh.pop %v1696
        %v1701 = vtanh.pop %v1697
        %v1702 = vtanh.pop %v1698
        %v1703 = vadd.f32 %v1699, 1.0
        %v1704 = vadd.f32 %v1700, 1.0
        %v1705 = vadd.f32 %v1701, 1.0
        %v1706 = vadd.f32 %v1702, 1.0
        %v1707 = vmul.f32 %v1675, %v1703
        %v1708 = vmul.f32 %v1676, %v1704
        %v1709 = vmul.f32 %v1677, %v1705
        %v1710 = vmul.f32 %v1678, %v1706
        %v1711 = vpack.c.bf16 %v1709, %v1707
        %v1712 = vpack.c.bf16 %v1710, %v1708
        %v1713 = vld [vmem:[#allocation7] sm:$0xf]
        %v1714 = vld [vmem:[#allocation7 + $0x4] sm:$0xf]
        %v1715 = vld [vmem:[#allocation7 + $0x8] sm:$0xf]
        %v1716 = vld [vmem:[#allocation7 + $0xc] sm:$0xf]
        %v1717 = vld [vmem:[#allocation7 + $0x10] sm:$0xf]
        %v1718 = vld [vmem:[#allocation7 + $0x14] sm:$0xf]
        %v1719 = vld [vmem:[#allocation7 + $0x18] sm:$0xf]
        %v1720 = vld [vmem:[#allocation7 + $0x1c] sm:$0xf]
        %v1721 = vld [vmem:[#allocation7 + $0x20] sm:$0xf]
        %v1722 = vld [vmem:[#allocation7 + $0x24] sm:$0xf]
        %v1723 = vld [vmem:[#allocation7 + $0x28] sm:$0xf]
        %v1724 = vld [vmem:[#allocation7 + $0x2c] sm:$0xf]
        %v1725 = vld [vmem:[#allocation7 + $0x30] sm:$0xf]
        %v1726 = vld [vmem:[#allocation7 + $0x34] sm:$0xf]
        %v1727 = vld [vmem:[#allocation7 + $0x38] sm:$0xf]
        %v1728 = vld [vmem:[#allocation7 + $0x3c] sm:$0xf]
        %v1729 = vld [vmem:[#allocation7 + $0x40] sm:$0xf]
        %v1730 = vld [vmem:[#allocation7 + $0x44] sm:$0xf]
        %v1731 = vld [vmem:[#allocation7 + $0x48] sm:$0xf]
        %v1732 = vld [vmem:[#allocation7 + $0x4c] sm:$0xf]
        %v1733 = vld [vmem:[#allocation7 + $0x50] sm:$0xf]
        %v1734 = vld [vmem:[#allocation7 + $0x54] sm:$0xf]
        %v1735 = vld [vmem:[#allocation7 + $0x58] sm:$0xf]
        %v1736 = vld [vmem:[#allocation7 + $0x5c] sm:$0xf]
        %v1737 = vld [vmem:[#allocation7 + $0x60] sm:$0xf]
        %v1738 = vld [vmem:[#allocation7 + $0x64] sm:$0xf]
        %v1739 = vld [vmem:[#allocation7 + $0x68] sm:$0xf]
        %v1740 = vld [vmem:[#allocation7 + $0x6c] sm:$0xf]
        %v1741 = vld [vmem:[#allocation7 + $0x70] sm:$0xf]
        %v1742 = vld [vmem:[#allocation7 + $0x74] sm:$0xf]
        %v1743 = vld [vmem:[#allocation7 + $0x78] sm:$0xf]
        %v1744 = vld [vmem:[#allocation7 + $0x7c] sm:$0xf]
        %v1745 = vld [vmem:[%s12] sm:$0x1]
        %v1747 = vlaneseq
        %v1748 = vshrl.u32 %v1747, 7
        %v1749 = vsub.s32 0, %v1748
        %v1750 = vrot.slane %v1745, %v1749
        %v1784 = vunpack.c.l.b16 %v1713
        %v1785 = vunpack.c.l.b16 %v1714
        %v1786 = vunpack.c.l.b16 %v1715
        %v1787 = vunpack.c.l.b16 %v1716
        %v1788 = vunpack.c.l.b16 %v1717
        %v1789 = vunpack.c.l.b16 %v1718
        %v1790 = vunpack.c.l.b16 %v1719
        %v1791 = vunpack.c.l.b16 %v1720
        %v1792 = vunpack.c.l.b16 %v1721
        %v1793 = vunpack.c.l.b16 %v1722
        %v1794 = vunpack.c.l.b16 %v1723
        %v1795 = vunpack.c.l.b16 %v1724
        %v1796 = vunpack.c.l.b16 %v1725
        %v1797 = vunpack.c.l.b16 %v1726
        %v1798 = vunpack.c.l.b16 %v1727
        %v1799 = vunpack.c.l.b16 %v1728
        %v1800 = vunpack.c.l.b16 %v1729
        %v1801 = vunpack.c.l.b16 %v1730
        %v1802 = vunpack.c.l.b16 %v1731
        %v1803 = vunpack.c.l.b16 %v1732
        %v1804 = vunpack.c.l.b16 %v1733
        %v1805 = vunpack.c.l.b16 %v1734
        %v1806 = vunpack.c.l.b16 %v1735
        %v1807 = vunpack.c.l.b16 %v1736
        %v1808 = vunpack.c.l.b16 %v1737
        %v1809 = vunpack.c.l.b16 %v1738
        %v1810 = vunpack.c.l.b16 %v1739
        %v1811 = vunpack.c.l.b16 %v1740
        %v1812 = vunpack.c.l.b16 %v1741
        %v1813 = vunpack.c.l.b16 %v1742
        %v1814 = vunpack.c.l.b16 %v1743
        %v1815 = vunpack.c.l.b16 %v1744
        %v1816 = vpack.c.b16 %v1785, %v1784
        %v1817 = vpack.c.b16 %v1787, %v1786
        %v1818 = vpack.c.b16 %v1789, %v1788
        %v1819 = vpack.c.b16 %v1791, %v1790
        %v1820 = vpack.c.b16 %v1793, %v1792
        %v1821 = vpack.c.b16 %v1795, %v1794
        %v1822 = vpack.c.b16 %v1797, %v1796
        %v1823 = vpack.c.b16 %v1799, %v1798
        %v1824 = vpack.c.b16 %v1801, %v1800
        %v1825 = vpack.c.b16 %v1803, %v1802
        %v1826 = vpack.c.b16 %v1805, %v1804
        %v1827 = vpack.c.b16 %v1807, %v1806
        %v1828 = vpack.c.b16 %v1809, %v1808
        %v1829 = vpack.c.b16 %v1811, %v1810
        %v1830 = vpack.c.b16 %v1813, %v1812
        %v1831 = vpack.c.b16 %v1815, %v1814
        %1848 = vmatprep.subr.bf16.mxu0 0
        %1849 = vmatpush1.bf16.msra.mxu0 %v1816
        %1850 = vmatprep.subr.bf16.mxu0 0
        %1851 = vmatpush1.bf16.msra.mxu0 %v1817
        %1852 = vmatprep.subr.bf16.mxu0 0
        %1853 = vmatpush1.bf16.msra.mxu0 %v1818
        %1854 = vmatprep.subr.bf16.mxu0 0
        %1855 = vmatpush1.bf16.msra.mxu0 %v1819
        %1856 = vmatprep.subr.bf16.mxu0 0
        %1857 = vmatpush1.bf16.msra.mxu0 %v1820
        %1858 = vmatprep.subr.bf16.mxu0 0
        %1859 = vmatpush1.bf16.msra.mxu0 %v1821
        %1860 = vmatprep.subr.bf16.mxu0 0
        %1861 = vmatpush1.bf16.msra.mxu0 %v1822
        %1862 = vmatprep.subr.bf16.mxu0 0
        %1863 = vmatpush1.bf16.msra.mxu0 %v1823
        %1864 = vmatprep.subr.bf16.mxu0 0
        %1865 = vmatpush1.bf16.msra.mxu0 %v1824
        %1866 = vmatprep.subr.bf16.mxu0 0
        %1867 = vmatpush1.bf16.msra.mxu0 %v1825
        %1868 = vmatprep.subr.bf16.mxu0 0
        %1869 = vmatpush1.bf16.msra.mxu0 %v1826
        %1870 = vmatprep.subr.bf16.mxu0 0
        %1871 = vmatpush1.bf16.msra.mxu0 %v1827
        %1872 = vmatprep.subr.bf16.mxu0 0
        %1873 = vmatpush1.bf16.msra.mxu0 %v1828
        %1874 = vmatprep.subr.bf16.mxu0 0
        %1875 = vmatpush1.bf16.msra.mxu0 %v1829
        %1876 = vmatprep.subr.bf16.mxu0 0
        %1877 = vmatpush1.bf16.msra.mxu0 %v1830
        %1878 = vmatprep.subr.bf16.mxu0 0
        %1879 = vmatpush1.bf16.msra.mxu0 %v1831
        %1880 = vmatprep.mubr.bf16.mxu0 %v1712
        %1881 = vmatmul.mubr.bf16.gmra.mrb[0].mxu0 %v1711
        %v1882 = vpop.f32.mrb[0].mxu0
        %v1883 = vadd.f32 %v1750, %v1882
        %v1884 = vpop.f32.mrb[0].mxu0
        %v1885 = vpop.f32.mrb[0].mxu0
        %v1886 = vadd.f32 %v1750, %v1885
        %v1887 = vpop.f32.mrb[0].mxu0
        %1888 = vdwg.mxu0
        %v1889 = vadd.f32 %v1481, %v1883
        %v1890 = vadd.f32 %v1482, %v1886
        %s1891 = scalar_lea.vmem %s1, 1
        %v1892 = vld [vmem:[%s1891] sm:$0x1]
        %s1893 = scalar_lea.vmem %s2, 1
        %v1894 = vld [vmem:[%s1893] sm:$0x1]
        %1895 = vadd.xlane.f32.xlu0 %v1889
        %v1896 = vpop.xlane.xlu0 %1895
        %1897 = vadd.xlane.f32.xlu0 %v1890
        %v1898 = vpop.xlane.xlu0 %1897
        %v1899 = vmul.f32 %v1896, %v509
        %v1900 = vmul.f32 %v1898, %v509
        %v1901 = vsub.f32 %v1889, %v1899
        %v1902 = vsub.f32 %v1890, %v1900
        %v1903 = vmul.f32 %v1901, %v1901
        %v1904 = vmul.f32 %v1902, %v1902
        %1905 = vadd.xlane.f32.xlu0 %v1903
        %v1906 = vpop.xlane.xlu0 %1905
        %1907 = vadd.xlane.f32.xlu0 %v1904
        %v1908 = vpop.xlane.xlu0 %1907
        %v1909 = vmul.f32 %v1906, %v509
        %v1910 = vmul.f32 %v1908, %v509
        %v1911 = vadd.f32 %v1909, 1e-05
        %v1912 = vadd.f32 %v1910, 1e-05
        %v1913 = vrsqrt.pop %v1911
        %v1914 = vrsqrt.pop %v1912
        %v1915 = vmul.f32 %v1901, %v1913
        %v1916 = vmul.f32 %v1902, %v1914
        %v1918 = vlaneseq
        %v1919 = vshrl.u32 %v1918, 7
        %v1920 = vsub.s32 0, %v1919
        %v1921 = vrot.slane %v1892, %v1920
        %v1923 = vmul.f32 %v1915, %v1921
        %v1924 = vmul.f32 %v1916, %v1921
        %v1926 = vlaneseq
        %v1927 = vshrl.u32 %v1926, 7
        %v1928 = vsub.s32 0, %v1927
        %v1929 = vrot.slane %v1894, %v1928
        %v1931 = vadd.f32 %v1923, %v1929
        %v1932 = vadd.f32 %v1924, %v1929
        %v1933 = vpack.c.bf16 %v1932, %v1931
        %s1934 = scalar_lea.vmem [#allocation2], 192
        %v1935 = vld [vmem:[%s1934] sm:$0xff]
        %v1936 = vld [vmem:[%s1934 + $0x8] sm:$0xf]
        %v1937 = vld [vmem:[%s1934 + $0xc] sm:$0xff]
        %v1938 = vld [vmem:[%s1934 + $0x14] sm:$0xf]
        %v1939 = vld [vmem:[%s1934 + $0x18] sm:$0xff]
        %v1940 = vld [vmem:[%s1934 + $0x20] sm:$0xf]
        %v1941 = vld [vmem:[%s1934 + $0x24] sm:$0xff]
        %v1942 = vld [vmem:[%s1934 + $0x2c] sm:$0xf]
        %v1943 = vld [vmem:[%s1934 + $0x30] sm:$0xff]
        %v1944 = vld [vmem:[%s1934 + $0x38] sm:$0xf]
        %v1945 = vld [vmem:[%s1934 + $0x3c] sm:$0xff]
        %v1946 = vld [vmem:[%s1934 + $0x44] sm:$0xf]
        %v1947 = vld [vmem:[%s1934 + $0x48] sm:$0xff]
        %v1948 = vld [vmem:[%s1934 + $0x50] sm:$0xf]
        %v1949 = vld [vmem:[%s1934 + $0x54] sm:$0xff]
        %v1950 = vld [vmem:[%s1934 + $0x5c] sm:$0xf]
        %v1951 = vld [vmem:[%s1934 + $0x60] sm:$0xff]
        %v1952 = vld [vmem:[%s1934 + $0x68] sm:$0xf]
        %v1953 = vld [vmem:[%s1934 + $0x6c] sm:$0xff]
        %v1954 = vld [vmem:[%s1934 + $0x74] sm:$0xf]
        %v1955 = vld [vmem:[%s1934 + $0x78] sm:$0xff]
        %v1956 = vld [vmem:[%s1934 + $0x80] sm:$0xf]
        %v1957 = vld [vmem:[%s1934 + $0x84] sm:$0xff]
        %v1958 = vld [vmem:[%s1934 + $0x8c] sm:$0xf]
        %v1959 = vld [vmem:[%s1934 + $0x90] sm:$0xff]
        %v1960 = vld [vmem:[%s1934 + $0x98] sm:$0xf]
        %v1961 = vld [vmem:[%s1934 + $0x9c] sm:$0xff]
        %v1962 = vld [vmem:[%s1934 + $0xa4] sm:$0xf]
        %v1963 = vld [vmem:[%s1934 + $0xa8] sm:$0xff]
        %v1964 = vld [vmem:[%s1934 + $0xb0] sm:$0xf]
        %v1965 = vld [vmem:[%s1934 + $0xb4] sm:$0xff]
        %v1966 = vld [vmem:[%s1934 + $0xbc] sm:$0xf]
        %s1967 = scalar_lea.vmem %s4, 3
        %v1968 = vld [vmem:[%s1967] sm:$0x7]
        %v1970 = vlaneseq
        %v1971 = vshrl.u32 %v1970, 7
        %v1972 = vsub.s32 0, %v1971
        %v1973 = vrot.slane %v1968, %v1972
        %v1974 = vlaneseq
        %v1975 = vshrl.u32 %v1974, 7
        %v1976 = vsub.s32 1, %v1975
        %v1977 = vrot.slane %v1968, %v1976
        %v1978 = vlaneseq
        %v1979 = vshrl.u32 %v1978, 7
        %v1980 = vsub.s32 2, %v1979
        %v1981 = vrot.slane %v1968, %v1980
        %v2017 = vunpack.c.l.b16 %v1935
        %v2018 = vunpack.c.h.b16 %v1935
        %v2019 = vunpack.c.l.b16 %v1936
        %v2020 = vunpack.c.l.b16 %v1937
        %v2021 = vunpack.c.h.b16 %v1937
        %v2022 = vunpack.c.l.b16 %v1938
        %v2023 = vunpack.c.l.b16 %v1939
        %v2024 = vunpack.c.h.b16 %v1939
        %v2025 = vunpack.c.l.b16 %v1940
        %v2026 = vunpack.c.l.b16 %v1941
        %v2027 = vunpack.c.h.b16 %v1941
        %v2028 = vunpack.c.l.b16 %v1942
        %v2029 = vunpack.c.l.b16 %v1943
        %v2030 = vunpack.c.h.b16 %v1943
        %v2031 = vunpack.c.l.b16 %v1944
        %v2032 = vunpack.c.l.b16 %v1945
        %v2033 = vunpack.c.h.b16 %v1945
        %v2034 = vunpack.c.l.b16 %v1946
        %v2035 = vunpack.c.l.b16 %v1947
        %v2036 = vunpack.c.h.b16 %v1947
        %v2037 = vunpack.c.l.b16 %v1948
        %v2038 = vunpack.c.l.b16 %v1949
        %v2039 = vunpack.c.h.b16 %v1949
        %v2040 = vunpack.c.l.b16 %v1950
        %v2041 = vunpack.c.l.b16 %v1951
        %v2042 = vunpack.c.h.b16 %v1951
        %v2043 = vunpack.c.l.b16 %v1952
        %v2044 = vunpack.c.l.b16 %v1953
        %v2045 = vunpack.c.h.b16 %v1953
        %v2046 = vunpack.c.l.b16 %v1954
        %v2047 = vunpack.c.l.b16 %v1955
        %v2048 = vunpack.c.h.b16 %v1955
        %v2049 = vunpack.c.l.b16 %v1956
        %v2050 = vunpack.c.l.b16 %v1957
        %v2051 = vunpack.c.h.b16 %v1957
        %v2052 = vunpack.c.l.b16 %v1958
        %v2053 = vunpack.c.l.b16 %v1959
        %v2054 = vunpack.c.h.b16 %v1959
        %v2055 = vunpack.c.l.b16 %v1960
        %v2056 = vunpack.c.l.b16 %v1961
        %v2057 = vunpack.c.h.b16 %v1961
        %v2058 = vunpack.c.l.b16 %v1962
        %v2059 = vunpack.c.l.b16 %v1963
        %v2060 = vunpack.c.h.b16 %v1963
        %v2061 = vunpack.c.l.b16 %v1964
        %v2062 = vunpack.c.l.b16 %v1965
        %v2063 = vunpack.c.h.b16 %v1965
        %v2064 = vunpack.c.l.b16 %v1966
        %v2065 = vpack.c.b16 %v2020, %v2017
        %v2066 = vpack.c.b16 %v2021, %v2018
        %v2067 = vpack.c.b16 %v2022, %v2019
        %v2068 = vpack.c.b16 %v2026, %v2023
        %v2069 = vpack.c.b16 %v2027, %v2024
        %v2070 = vpack.c.b16 %v2028, %v2025
        %v2071 = vpack.c.b16 %v2032, %v2029
        %v2072 = vpack.c.b16 %v2033, %v2030
        %v2073 = vpack.c.b16 %v2034, %v2031
        %v2074 = vpack.c.b16 %v2038, %v2035
        %v2075 = vpack.c.b16 %v2039, %v2036
        %v2076 = vpack.c.b16 %v2040, %v2037
        %v2077 = vpack.c.b16 %v2044, %v2041
        %v2078 = vpack.c.b16 %v2045, %v2042
        %v2079 = vpack.c.b16 %v2046, %v2043
        %v2080 = vpack.c.b16 %v2050, %v2047
        %v2081 = vpack.c.b16 %v2051, %v2048
        %v2082 = vpack.c.b16 %v2052, %v2049
        %v2083 = vpack.c.b16 %v2056, %v2053
        %v2084 = vpack.c.b16 %v2057, %v2054
        %v2085 = vpack.c.b16 %v2058, %v2055
        %v2086 = vpack.c.b16 %v2062, %v2059
        %v2087 = vpack.c.b16 %v2063, %v2060
        %v2088 = vpack.c.b16 %v2064, %v2061
        %2113 = vmatprep.subr.bf16.mxu0 %v2066
        %2114 = vmatpush1.bf16.msra.mxu0 %v2065
        %2115 = vmatprep.subr.bf16.mxu0 %v2069
        %2116 = vmatpush1.bf16.msra.mxu0 %v2068
        %2117 = vmatprep.subr.bf16.mxu0 %v2072
        %2118 = vmatpush1.bf16.msra.mxu0 %v2071
        %2119 = vmatprep.subr.bf16.mxu0 %v2075
        %2120 = vmatpush1.bf16.msra.mxu0 %v2074
        %2121 = vmatprep.subr.bf16.mxu0 %v2078
        %2122 = vmatpush1.bf16.msra.mxu0 %v2077
        %2123 = vmatprep.subr.bf16.mxu0 %v2081
        %2124 = vmatpush1.bf16.msra.mxu0 %v2080
        %2125 = vmatprep.subr.bf16.mxu0 %v2084
        %2126 = vmatpush1.bf16.msra.mxu0 %v2083
        %2127 = vmatprep.subr.bf16.mxu0 %v2087
        %2128 = vmatpush1.bf16.msra.mxu0 %v2086
        %2129 = vmatprep.subr.bf16.mxu0 0
        %2130 = vmatpush1.bf16.msra.mxu0 0
        %2131 = vmatprep.subr.bf16.mxu0 0
        %2132 = vmatpush1.bf16.msra.mxu0 0
        %2133 = vmatprep.subr.bf16.mxu0 0
        %2134 = vmatpush1.bf16.msra.mxu0 0
        %2135 = vmatprep.subr.bf16.mxu0 0
        %2136 = vmatpush1.bf16.msra.mxu0 0
        %2137 = vmatprep.subr.bf16.mxu0 0
        %2138 = vmatpush1.bf16.msra.mxu0 0
        %2139 = vmatprep.subr.bf16.mxu0 0
        %2140 = vmatpush1.bf16.msra.mxu0 0
        %2141 = vmatprep.subr.bf16.mxu0 0
        %2142 = vmatpush1.bf16.msra.mxu0 0
        %2143 = vmatprep.subr.bf16.mxu0 0
        %2144 = vmatpush1.bf16.msra.mxu0 0
        %2145 = vmatprep.mubr.bf16.mxu0 0
        %2146 = vmatmul.mubr.bf16.gmra.mrb[0].mxu0 %v1933
        %v2147 = vpop.f32.mrb[0].mxu0
        %v2148 = vadd.f32 %v1973, %v2147
        %v2149 = vpop.f32.mrb[0].mxu0
        %v2150 = vadd.f32 %v1977, %v2149
        %v2151 = vpop.f32.mrb[0].mxu0
        %v2152 = vadd.f32 %v1973, %v2151
        %v2153 = vpop.f32.mrb[0].mxu0
        %v2154 = vadd.f32 %v1977, %v2153
        %2155 = vdwg.mxu0
        %2156 = vmatprep.subr.bf16.mxu0 0
        %2157 = vmatpush1.bf16.msra.mxu0 %v2067
        %2158 = vmatprep.subr.bf16.mxu0 0
        %2159 = vmatpush1.bf16.msra.mxu0 %v2070
        %2160 = vmatprep.subr.bf16.mxu0 0
        %2161 = vmatpush1.bf16.msra.mxu0 %v2073
        %2162 = vmatprep.subr.bf16.mxu0 0
        %2163 = vmatpush1.bf16.msra.mxu0 %v2076
        %2164 = vmatprep.subr.bf16.mxu0 0
        %2165 = vmatpush1.bf16.msra.mxu0 %v2079
        %2166 = vmatprep.subr.bf16.mxu0 0
        %2167 = vmatpush1.bf16.msra.mxu0 %v2082
        %2168 = vmatprep.subr.bf16.mxu0 0
        %2169 = vmatpush1.bf16.msra.mxu0 %v2085
        %2170 = vmatprep.subr.bf16.mxu0 0
        %2171 = vmatpush1.bf16.msra.mxu0 %v2088
        %2172 = vmatprep.subr.bf16.mxu0 0
        %2173 = vmatpush1.bf16.msra.mxu0 0
        %2174 = vmatprep.subr.bf16.mxu0 0
        %2175 = vmatpush1.bf16.msra.mxu0 0
        %2176 = vmatprep.subr.bf16.mxu0 0
        %2177 = vmatpush1.bf16.msra.mxu0 0
        %2178 = vmatprep.subr.bf16.mxu0 0
        %2179 = vmatpush1.bf16.msra.mxu0 0
        %2180 = vmatprep.subr.bf16.mxu0 0
        %2181 = vmatpush1.bf16.msra.mxu0 0
        %2182 = vmatprep.subr.bf16.mxu0 0
        %2183 = vmatpush1.bf16.msra.mxu0 0
        %2184 = vmatprep.subr.bf16.mxu0 0
        %2185 = vmatpush1.bf16.msra.mxu0 0
        %2186 = vmatprep.subr.bf16.mxu0 0
        %2187 = vmatpush1.bf16.msra.mxu0 0
        %2188 = vmatprep.mubr.bf16.mxu0 0
        %2189 = vmatmul.mubr.bf16.gmra.mrb[0].mxu0 %v1933
        %v2190 = vpop.f32.mrb[0].mxu0
        %v2191 = vadd.f32 %v1981, %v2190
        %v2192 = vpop.f32.mrb[0].mxu0
        %v2193 = vpop.f32.mrb[0].mxu0
        %v2194 = vadd.f32 %v1981, %v2193
        %v2195 = vpop.f32.mrb[0].mxu0
        %2196 = vdwg.mxu0
        %2199 = vrot.lane.b32.xlu0 %v2148, 96
        %v2200 = vpop.permute.xlu0 %2199
        %2201 = vrot.lane.b32.xlu0 %v2152, 96
        %v2202 = vpop.permute.xlu0 %2201
        %2205 = vrot.lane.b32.xlu0 %v2148, 64
        %v2206 = vpop.permute.xlu0 %2205
        %2207 = vrot.lane.b32.xlu0 %v2152, 64
        %v2208 = vpop.permute.xlu0 %2207
        %2211 = vrot.lane.b32.xlu0 %v2148, 32
        %v2212 = vpop.permute.xlu0 %2211
        %2213 = vrot.lane.b32.xlu0 %v2152, 32
        %v2214 = vpop.permute.xlu0 %2213
        %v2217 = vpack.c.bf16 %v2152, %v2148
        %v2218 = vpack.c.bf16 %v2202, %v2200
        %v2219 = vpack.c.bf16 %v2208, %v2206
        %v2220 = vpack.c.bf16 %v2214, %v2212
        %2223 = vrot.lane.b32.xlu0 %v2150, 96
        %v2224 = vpop.permute.xlu0 %2223
        %2225 = vrot.lane.b32.xlu0 %v2154, 96
        %v2226 = vpop.permute.xlu0 %2225
        %2229 = vrot.lane.b32.xlu0 %v2150, 64
        %v2230 = vpop.permute.xlu0 %2229
        %2231 = vrot.lane.b32.xlu0 %v2154, 64
        %v2232 = vpop.permute.xlu0 %2231
        %2235 = vrot.lane.b32.xlu0 %v2150, 32
        %v2236 = vpop.permute.xlu0 %2235
        %2237 = vrot.lane.b32.xlu0 %v2154, 32
        %v2238 = vpop.permute.xlu0 %2237
        %v2241 = vpack.c.bf16 %v2154, %v2150
        %v2242 = vpack.c.bf16 %v2226, %v2224
        %v2243 = vpack.c.bf16 %v2232, %v2230
        %v2244 = vpack.c.bf16 %v2238, %v2236
        %2247 = vrot.lane.b32.xlu0 %v2191, 96
        %v2248 = vpop.permute.xlu0 %2247
        %2249 = vrot.lane.b32.xlu0 %v2194, 96
        %v2250 = vpop.permute.xlu0 %2249
        %2253 = vrot.lane.b32.xlu0 %v2191, 64
        %v2254 = vpop.permute.xlu0 %2253
        %2255 = vrot.lane.b32.xlu0 %v2194, 64
        %v2256 = vpop.permute.xlu0 %2255
        %2259 = vrot.lane.b32.xlu0 %v2191, 32
        %v2260 = vpop.permute.xlu0 %2259
        %2261 = vrot.lane.b32.xlu0 %v2194, 32
        %v2262 = vpop.permute.xlu0 %2261
        %v2265 = vpack.c.bf16 %v2194, %v2191
        %v2266 = vpack.c.bf16 %v2250, %v2248
        %v2267 = vpack.c.bf16 %v2256, %v2254
        %v2268 = vpack.c.bf16 %v2262, %v2260
        %v2270 = vsel %vm878, %v2217, 0
        %v2273 = vsel %vm878, %v2241, 0
        %2275 = vmatprep.subr.bf16.mxu0 0
        %2276 = vmatpush1.bf16.xpose.msra.mxu0 %v2273
        %2277 = vmatprep.subr.bf16.mxu0 0
        %2278 = vmatpush1.bf16.xpose.msra.mxu0 0
        %2279 = vmatprep.subr.bf16.mxu0 0
        %2280 = vmatpush1.bf16.xpose.msra.mxu0 0
        %2281 = vmatprep.subr.bf16.mxu0 0
        %2282 = vmatpush1.bf16.xpose.msra.mxu0 0
        %2283 = vmatprep.subr.bf16.mxu0 0
        %2284 = vmatpush1.bf16.xpose.msra.mxu0 0
        %2285 = vmatprep.subr.bf16.mxu0 0
        %2286 = vmatpush1.bf16.xpose.msra.mxu0 0
        %2287 = vmatprep.subr.bf16.mxu0 0
        %2288 = vmatpush1.bf16.xpose.msra.mxu0 0
        %2289 = vmatprep.subr.bf16.mxu0 0
        %2290 = vmatpush1.bf16.xpose.msra.mxu0 0
        %2291 = vmatprep.subr.bf16.mxu0 0
        %2292 = vmatpush1.bf16.xpose.msra.mxu0 0
        %2293 = vmatprep.subr.bf16.mxu0 0
        %2294 = vmatpush1.bf16.xpose.msra.mxu0 0
        %2295 = vmatprep.subr.bf16.mxu0 0
        %2296 = vmatpush1.bf16.xpose.msra.mxu0 0
        %2297 = vmatprep.subr.bf16.mxu0 0
        %2298 = vmatpush1.bf16.xpose.msra.mxu0 0
        %2299 = vmatprep.subr.bf16.mxu0 0
        %2300 = vmatpush1.bf16.xpose.msra.mxu0 0
        %2301 = vmatprep.subr.bf16.mxu0 0
        %2302 = vmatpush1.bf16.xpose.msra.mxu0 0
        %2303 = vmatprep.subr.bf16.mxu0 0
        %2304 = vmatpush1.bf16.xpose.msra.mxu0 0
        %2305 = vmatprep.subr.bf16.mxu0 0
        %2306 = vmatpush1.bf16.xpose.msra.mxu0 0
        %2307 = vmatprep.mubr.bf16.mxu0 0
        %2308 = vmatmul.mubr.bf16.gmra.mrb[0].mxu0 %v2270
        %v2309 = vpop.f32.mrb[0].mxu0
        %v2310 = vadd.f32 0.0, %v2309
        %v2311 = vpop.f32.mrb[0].mxu0
        %v2312 = vpop.f32.mrb[0].mxu0
        %v2313 = vadd.f32 0.0, %v2312
        %v2314 = vpop.f32.mrb[0].mxu0
        %2315 = vdwg.mxu0
        %v2317 = vsel %vm878, %v2218, 0
        %v2320 = vsel %vm878, %v2242, 0
        %2322 = vmatprep.subr.bf16.mxu0 0
        %2323 = vmatpush1.bf16.xpose.msra.mxu0 %v2320
        %2324 = vmatprep.subr.bf16.mxu0 0
        %2325 = vmatpush1.bf16.xpose.msra.mxu0 0
        %2326 = vmatprep.subr.bf16.mxu0 0
        %2327 = vmatpush1.bf16.xpose.msra.mxu0 0
        %2328 = vmatprep.subr.bf16.mxu0 0
        %2329 = vmatpush1.bf16.xpose.msra.mxu0 0
        %2330 = vmatprep.subr.bf16.mxu0 0
        %2331 = vmatpush1.bf16.xpose.msra.mxu0 0
        %2332 = vmatprep.subr.bf16.mxu0 0
        %2333 = vmatpush1.bf16.xpose.msra.mxu0 0
        %2334 = vmatprep.subr.bf16.mxu0 0
        %2335 = vmatpush1.bf16.xpose.msra.mxu0 0
        %2336 = vmatprep.subr.bf16.mxu0 0
        %2337 = vmatpush1.bf16.xpose.msra.mxu0 0
        %2338 = vmatprep.subr.bf16.mxu0 0
        %2339 = vmatpush1.bf16.xpose.msra.mxu0 0
        %2340 = vmatprep.subr.bf16.mxu0 0
        %2341 = vmatpush1.bf16.xpose.msra.mxu0 0
        %2342 = vmatprep.subr.bf16.mxu0 0
        %2343 = vmatpush1.bf16.xpose.msra.mxu0 0
        %2344 = vmatprep.subr.bf16.mxu0 0
        %2345 = vmatpush1.bf16.xpose.msra.mxu0 0
        %2346 = vmatprep.subr.bf16.mxu0 0
        %2347 = vmatpush1.bf16.xpose.msra.mxu0 0
        %2348 = vmatprep.subr.bf16.mxu0 0
        %2349 = vmatpush1.bf16.xpose.msra.mxu0 0
        %2350 = vmatprep.subr.bf16.mxu0 0
        %2351 = vmatpush1.bf16.xpose.msra.mxu0 0
        %2352 = vmatprep.subr.bf16.mxu0 0
        %2353 = vmatpush1.bf16.xpose.msra.mxu0 0
        %2354 = vmatprep.mubr.bf16.mxu0 0
        %2355 = vmatmul.mubr.bf16.gmra.mrb[0].mxu0 %v2317
        %v2356 = vpop.f32.mrb[0].mxu0
        %v2357 = vadd.f32 0.0, %v2356
        %v2358 = vpop.f32.mrb[0].mxu0
        %v2359 = vpop.f32.mrb[0].mxu0
        %v2360 = vadd.f32 0.0, %v2359
        %v2361 = vpop.f32.mrb[0].mxu0
        %2362 = vdwg.mxu0
        %v2364 = vsel %vm878, %v2219, 0
        %v2367 = vsel %vm878, %v2243, 0
        %2369 = vmatprep.subr.bf16.mxu0 0
        %2370 = vmatpush1.bf16.xpose.msra.mxu0 %v2367
        %2371 = vmatprep.subr.bf16.mxu0 0
        %2372 = vmatpush1.bf16.xpose.msra.mxu0 0
        %2373 = vmatprep.subr.bf16.mxu0 0
        %2374 = vmatpush1.bf16.xpose.msra.mxu0 0
        %2375 = vmatprep.subr.bf16.mxu0 0
        %2376 = vmatpush1.bf16.xpose.msra.mxu0 0
        %2377 = vmatprep.subr.bf16.mxu0 0
        %2378 = vmatpush1.bf16.xpose.msra.mxu0 0
        %2379 = vmatprep.subr.bf16.mxu0 0
        %2380 = vmatpush1.bf16.xpose.msra.mxu0 0
        %2381 = vmatprep.subr.bf16.mxu0 0
        %2382 = vmatpush1.bf16.xpose.msra.mxu0 0
        %2383 = vmatprep.subr.bf16.mxu0 0
        %2384 = vmatpush1.bf16.xpose.msra.mxu0 0
        %2385 = vmatprep.subr.bf16.mxu0 0
        %2386 = vmatpush1.bf16.xpose.msra.mxu0 0
        %2387 = vmatprep.subr.bf16.mxu0 0
        %2388 = vmatpush1.bf16.xpose.msra.mxu0 0
        %2389 = vmatprep.subr.bf16.mxu0 0
        %2390 = vmatpush1.bf16.xpose.msra.mxu0 0
        %2391 = vmatprep.subr.bf16.mxu0 0
        %2392 = vmatpush1.bf16.xpose.msra.mxu0 0
        %2393 = vmatprep.subr.bf16.mxu0 0
        %2394 = vmatpush1.bf16.xpose.msra.mxu0 0
        %2395 = vmatprep.subr.bf16.mxu0 0
        %2396 = vmatpush1.bf16.xpose.msra.mxu0 0
        %2397 = vmatprep.subr.bf16.mxu0 0
        %2398 = vmatpush1.bf16.xpose.msra.mxu0 0
        %2399 = vmatprep.subr.bf16.mxu0 0
        %2400 = vmatpush1.bf16.xpose.msra.mxu0 0
        %2401 = vmatprep.mubr.bf16.mxu0 0
        %2402 = vmatmul.mubr.bf16.gmra.mrb[0].mxu0 %v2364
        %v2403 = vpop.f32.mrb[0].mxu0
        %v2404 = vadd.f32 0.0, %v2403
        %v2405 = vpop.f32.mrb[0].mxu0
        %v2406 = vpop.f32.mrb[0].mxu0
        %v2407 = vadd.f32 0.0, %v2406
        %v2408 = vpop.f32.mrb[0].mxu0
        %2409 = vdwg.mxu0
        %v2411 = vsel %vm878, %v2220, 0
        %v2414 = vsel %vm878, %v2244, 0
        %2416 = vmatprep.subr.bf16.mxu0 0
        %2417 = vmatpush1.bf16.xpose.msra.mxu0 %v2414
        %2418 = vmatprep.subr.bf16.mxu0 0
        %2419 = vmatpush1.bf16.xpose.msra.mxu0 0
        %2420 = vmatprep.subr.bf16.mxu0 0
        %2421 = vmatpush1.bf16.xpose.msra.mxu0 0
        %2422 = vmatprep.subr.bf16.mxu0 0
        %2423 = vmatpush1.bf16.xpose.msra.mxu0 0
        %2424 = vmatprep.subr.bf16.mxu0 0
        %2425 = vmatpush1.bf16.xpose.msra.mxu0 0
        %2426 = vmatprep.subr.bf16.mxu0 0
        %2427 = vmatpush1.bf16.xpose.msra.mxu0 0
        %2428 = vmatprep.subr.bf16.mxu0 0
        %2429 = vmatpush1.bf16.xpose.msra.mxu0 0
        %2430 = vmatprep.subr.bf16.mxu0 0
        %2431 = vmatpush1.bf16.xpose.msra.mxu0 0
        %2432 = vmatprep.subr.bf16.mxu0 0
        %2433 = vmatpush1.bf16.xpose.msra.mxu0 0
        %2434 = vmatprep.subr.bf16.mxu0 0
        %2435 = vmatpush1.bf16.xpose.msra.mxu0 0
        %2436 = vmatprep.subr.bf16.mxu0 0
        %2437 = vmatpush1.bf16.xpose.msra.mxu0 0
        %2438 = vmatprep.subr.bf16.mxu0 0
        %2439 = vmatpush1.bf16.xpose.msra.mxu0 0
        %2440 = vmatprep.subr.bf16.mxu0 0
        %2441 = vmatpush1.bf16.xpose.msra.mxu0 0
        %2442 = vmatprep.subr.bf16.mxu0 0
        %2443 = vmatpush1.bf16.xpose.msra.mxu0 0
        %2444 = vmatprep.subr.bf16.mxu0 0
        %2445 = vmatpush1.bf16.xpose.msra.mxu0 0
        %2446 = vmatprep.subr.bf16.mxu0 0
        %2447 = vmatpush1.bf16.xpose.msra.mxu0 0
        %2448 = vmatprep.mubr.bf16.mxu0 0
        %2449 = vmatmul.mubr.bf16.gmra.mrb[0].mxu0 %v2411
        %v2450 = vpop.f32.mrb[0].mxu0
        %v2451 = vadd.f32 0.0, %v2450
        %v2452 = vpop.f32.mrb[0].mxu0
        %v2453 = vpop.f32.mrb[0].mxu0
        %v2454 = vadd.f32 0.0, %v2453
        %v2455 = vpop.f32.mrb[0].mxu0
        %2456 = vdwg.mxu0
        %v2457 = vsel %vm1067, %v2310, -inf
        %2458 = vmax.xlane.f32.xlu0 %v2457
        %v2459 = vpop.xlane.xlu0 %2458
        %v2460 = vsel %vm1067, %v2313, -inf
        %2461 = vmax.xlane.f32.xlu0 %v2460
        %v2462 = vpop.xlane.xlu0 %2461
        %v2463 = vsel %vm1067, %v2357, -inf
        %2464 = vmax.xlane.f32.xlu0 %v2463
        %v2465 = vpop.xlane.xlu0 %2464
        %v2466 = vsel %vm1067, %v2360, -inf
        %2467 = vmax.xlane.f32.xlu0 %v2466
        %v2468 = vpop.xlane.xlu0 %2467
        %v2469 = vsel %vm1067, %v2404, -inf
        %2470 = vmax.xlane.f32.xlu0 %v2469
        %v2471 = vpop.xlane.xlu0 %2470
        %v2472 = vsel %vm1067, %v2407, -inf
        %2473 = vmax.xlane.f32.xlu0 %v2472
        %v2474 = vpop.xlane.xlu0 %2473
        %v2475 = vsel %vm1067, %v2451, -inf
        %2476 = vmax.xlane.f32.xlu0 %v2475
        %v2477 = vpop.xlane.xlu0 %2476
        %v2478 = vsel %vm1067, %v2454, -inf
        %2479 = vmax.xlane.f32.xlu0 %v2478
        %v2480 = vpop.xlane.xlu0 %2479
        %v2481 = vsub.f32 %v2310, %v2459
        %v2482 = vsub.f32 %v2313, %v2462
        %v2483 = vsub.f32 %v2357, %v2465
        %v2484 = vsub.f32 %v2360, %v2468
        %v2485 = vsub.f32 %v2404, %v2471
        %v2486 = vsub.f32 %v2407, %v2474
        %v2487 = vsub.f32 %v2451, %v2477
        %v2488 = vsub.f32 %v2454, %v2480
        %v2489 = vmul.f32 %v2481, 1.442695
        %v2490 = vpow.pop %v2489
        %v2491 = vmul.f32 %v2482, 1.442695
        %v2492 = vpow.pop %v2491
        %v2493 = vmul.f32 %v2483, 1.442695
        %v2494 = vpow.pop %v2493
        %v2495 = vmul.f32 %v2484, 1.442695
        %v2496 = vpow.pop %v2495
        %v2497 = vmul.f32 %v2485, 1.442695
        %v2498 = vpow.pop %v2497
        %v2499 = vmul.f32 %v2486, 1.442695
        %v2500 = vpow.pop %v2499
        %v2501 = vmul.f32 %v2487, 1.442695
        %v2502 = vpow.pop %v2501
        %v2503 = vmul.f32 %v2488, 1.442695
        %v2504 = vpow.pop %v2503
        %v2505 = vsel %vm1067, %v2490, 0.0
        %2506 = vadd.xlane.f32.xlu0 %v2505
        %v2507 = vpop.xlane.xlu0 %2506
        %v2508 = vsel %vm1067, %v2492, 0.0
        %2509 = vadd.xlane.f32.xlu0 %v2508
        %v2510 = vpop.xlane.xlu0 %2509
        %v2511 = vsel %vm1067, %v2494, 0.0
        %2512 = vadd.xlane.f32.xlu0 %v2511
        %v2513 = vpop.xlane.xlu0 %2512
        %v2514 = vsel %vm1067, %v2496, 0.0
        %2515 = vadd.xlane.f32.xlu0 %v2514
        %v2516 = vpop.xlane.xlu0 %2515
        %v2517 = vsel %vm1067, %v2498, 0.0
        %2518 = vadd.xlane.f32.xlu0 %v2517
        %v2519 = vpop.xlane.xlu0 %2518
        %v2520 = vsel %vm1067, %v2500, 0.0
        %2521 = vadd.xlane.f32.xlu0 %v2520
        %v2522 = vpop.xlane.xlu0 %2521
        %v2523 = vsel %vm1067, %v2502, 0.0
        %2524 = vadd.xlane.f32.xlu0 %v2523
        %v2525 = vpop.xlane.xlu0 %2524
        %v2526 = vsel %vm1067, %v2504, 0.0
        %2527 = vadd.xlane.f32.xlu0 %v2526
        %v2528 = vpop.xlane.xlu0 %2527
        %v2529 = vrcp.pop %v2507
        %v2530 = vrcp.pop %v2510
        %v2531 = vrcp.pop %v2513
        %v2532 = vrcp.pop %v2516
        %v2533 = vrcp.pop %v2519
        %v2534 = vrcp.pop %v2522
        %v2535 = vrcp.pop %v2525
        %v2536 = vrcp.pop %v2528
        %v2537 = vmul.f32 %v2490, %v2529
        %v2538 = vmul.f32 %v2492, %v2530
        %v2539 = vmul.f32 %v2494, %v2531
        %v2540 = vmul.f32 %v2496, %v2532
        %v2541 = vmul.f32 %v2498, %v2533
        %v2542 = vmul.f32 %v2500, %v2534
        %v2543 = vmul.f32 %v2502, %v2535
        %v2544 = vmul.f32 %v2504, %v2536
        %v2545 = vpack.c.bf16 %v2538, %v2537
        %v2546 = vpack.c.bf16 %v2540, %v2539
        %v2547 = vpack.c.bf16 %v2542, %v2541
        %v2548 = vpack.c.bf16 %v2544, %v2543
        %v2550 = vsel %vm1067, %v2545, 0
        %2552 = vmatprep.subr.bf16.mxu0 0
        %2553 = vmatpush1.bf16.msra.mxu0 %v2265
        %2554 = vmatprep.subr.bf16.mxu0 0
        %2555 = vmatpush1.bf16.msra.mxu0 0
        %2556 = vmatprep.subr.bf16.mxu0 0
        %2557 = vmatpush1.bf16.msra.mxu0 0
        %2558 = vmatprep.subr.bf16.mxu0 0
        %2559 = vmatpush1.bf16.msra.mxu0 0
        %2560 = vmatprep.subr.bf16.mxu0 0
        %2561 = vmatpush1.bf16.msra.mxu0 0
        %2562 = vmatprep.subr.bf16.mxu0 0
        %2563 = vmatpush1.bf16.msra.mxu0 0
        %2564 = vmatprep.subr.bf16.mxu0 0
        %2565 = vmatpush1.bf16.msra.mxu0 0
        %2566 = vmatprep.subr.bf16.mxu0 0
        %2567 = vmatpush1.bf16.msra.mxu0 0
        %2568 = vmatprep.subr.bf16.mxu0 0
        %2569 = vmatpush1.bf16.msra.mxu0 0
        %2570 = vmatprep.subr.bf16.mxu0 0
        %2571 = vmatpush1.bf16.msra.mxu0 0
        %2572 = vmatprep.subr.bf16.mxu0 0
        %2573 = vmatpush1.bf16.msra.mxu0 0
        %2574 = vmatprep.subr.bf16.mxu0 0
        %2575 = vmatpush1.bf16.msra.mxu0 0
        %2576 = vmatprep.subr.bf16.mxu0 0
        %2577 = vmatpush1.bf16.msra.mxu0 0
        %2578 = vmatprep.subr.bf16.mxu0 0
        %2579 = vmatpush1.bf16.msra.mxu0 0
        %2580 = vmatprep.subr.bf16.mxu0 0
        %2581 = vmatpush1.bf16.msra.mxu0 0
        %2582 = vmatprep.subr.bf16.mxu0 0
        %2583 = vmatpush1.bf16.msra.mxu0 0
        %2584 = vmatprep.mubr.bf16.mxu0 0
        %2585 = vmatmul.mubr.bf16.gmra.mrb[0].mxu0 %v2550
        %v2586 = vpop.f32.mrb[0].mxu0
        %v2587 = vadd.f32 0.0, %v2586
        %v2588 = vpop.f32.mrb[0].mxu0
        %v2589 = vpop.f32.mrb[0].mxu0
        %v2590 = vadd.f32 0.0, %v2589
        %v2591 = vpop.f32.mrb[0].mxu0
        %2592 = vdwg.mxu0
        %v2594 = vsel %vm1067, %v2546, 0
        %2596 = vmatprep.subr.bf16.mxu0 0
        %2597 = vmatpush1.bf16.msra.mxu0 %v2266
        %2598 = vmatprep.subr.bf16.mxu0 0
        %2599 = vmatpush1.bf16.msra.mxu0 0
        %2600 = vmatprep.subr.bf16.mxu0 0
        %2601 = vmatpush1.bf16.msra.mxu0 0
        %2602 = vmatprep.subr.bf16.mxu0 0
        %2603 = vmatpush1.bf16.msra.mxu0 0
        %2604 = vmatprep.subr.bf16.mxu0 0
        %2605 = vmatpush1.bf16.msra.mxu0 0
        %2606 = vmatprep.subr.bf16.mxu0 0
        %2607 = vmatpush1.bf16.msra.mxu0 0
        %2608 = vmatprep.subr.bf16.mxu0 0
        %2609 = vmatpush1.bf16.msra.mxu0 0
        %2610 = vmatprep.subr.bf16.mxu0 0
        %2611 = vmatpush1.bf16.msra.mxu0 0
        %2612 = vmatprep.subr.bf16.mxu0 0
        %2613 = vmatpush1.bf16.msra.mxu0 0
        %2614 = vmatprep.subr.bf16.mxu0 0
        %2615 = vmatpush1.bf16.msra.mxu0 0
        %2616 = vmatprep.subr.bf16.mxu0 0
        %2617 = vmatpush1.bf16.msra.mxu0 0
        %2618 = vmatprep.subr.bf16.mxu0 0
        %2619 = vmatpush1.bf16.msra.mxu0 0
        %2620 = vmatprep.subr.bf16.mxu0 0
        %2621 = vmatpush1.bf16.msra.mxu0 0
        %2622 = vmatprep.subr.bf16.mxu0 0
        %2623 = vmatpush1.bf16.msra.mxu0 0
        %2624 = vmatprep.subr.bf16.mxu0 0
        %2625 = vmatpush1.bf16.msra.mxu0 0
        %2626 = vmatprep.subr.bf16.mxu0 0
        %2627 = vmatpush1.bf16.msra.mxu0 0
        %2628 = vmatprep.mubr.bf16.mxu0 0
        %2629 = vmatmul.mubr.bf16.gmra.mrb[0].mxu0 %v2594
        %v2630 = vpop.f32.mrb[0].mxu0
        %v2631 = vadd.f32 0.0, %v2630
        %v2632 = vpop.f32.mrb[0].mxu0
        %v2633 = vpop.f32.mrb[0].mxu0
        %v2634 = vadd.f32 0.0, %v2633
        %v2635 = vpop.f32.mrb[0].mxu0
        %2636 = vdwg.mxu0
        %v2638 = vsel %vm1067, %v2547, 0
        %2640 = vmatprep.subr.bf16.mxu0 0
        %2641 = vmatpush1.bf16.msra.mxu0 %v2267
        %2642 = vmatprep.subr.bf16.mxu0 0
        %2643 = vmatpush1.bf16.msra.mxu0 0
        %2644 = vmatprep.subr.bf16.mxu0 0
        %2645 = vmatpush1.bf16.msra.mxu0 0
        %2646 = vmatprep.subr.bf16.mxu0 0
        %2647 = vmatpush1.bf16.msra.mxu0 0
        %2648 = vmatprep.subr.bf16.mxu0 0
        %2649 = vmatpush1.bf16.msra.mxu0 0
        %2650 = vmatprep.subr.bf16.mxu0 0
        %2651 = vmatpush1.bf16.msra.mxu0 0
        %2652 = vmatprep.subr.bf16.mxu0 0
        %2653 = vmatpush1.bf16.msra.mxu0 0
        %2654 = vmatprep.subr.bf16.mxu0 0
        %2655 = vmatpush1.bf16.msra.mxu0 0
        %2656 = vmatprep.subr.bf16.mxu0 0
        %2657 = vmatpush1.bf16.msra.mxu0 0
        %2658 = vmatprep.subr.bf16.mxu0 0
        %2659 = vmatpush1.bf16.msra.mxu0 0
        %2660 = vmatprep.subr.bf16.mxu0 0
        %2661 = vmatpush1.bf16.msra.mxu0 0
        %2662 = vmatprep.subr.bf16.mxu0 0
        %2663 = vmatpush1.bf16.msra.mxu0 0
        %2664 = vmatprep.subr.bf16.mxu0 0
        %2665 = vmatpush1.bf16.msra.mxu0 0
        %2666 = vmatprep.subr.bf16.mxu0 0
        %2667 = vmatpush1.bf16.msra.mxu0 0
        %2668 = vmatprep.subr.bf16.mxu0 0
        %2669 = vmatpush1.bf16.msra.mxu0 0
        %2670 = vmatprep.subr.bf16.mxu0 0
        %2671 = vmatpush1.bf16.msra.mxu0 0
        %2672 = vmatprep.mubr.bf16.mxu0 0
        %2673 = vmatmul.mubr.bf16.gmra.mrb[0].mxu0 %v2638
        %v2674 = vpop.f32.mrb[0].mxu0
        %v2675 = vadd.f32 0.0, %v2674
        %v2676 = vpop.f32.mrb[0].mxu0
        %v2677 = vpop.f32.mrb[0].mxu0
        %v2678 = vadd.f32 0.0, %v2677
        %v2679 = vpop.f32.mrb[0].mxu0
        %2680 = vdwg.mxu0
        %v2682 = vsel %vm1067, %v2548, 0
        %2684 = vmatprep.subr.bf16.mxu0 0
        %2685 = vmatpush1.bf16.msra.mxu0 %v2268
        %2686 = vmatprep.subr.bf16.mxu0 0
        %2687 = vmatpush1.bf16.msra.mxu0 0
        %2688 = vmatprep.subr.bf16.mxu0 0
        %2689 = vmatpush1.bf16.msra.mxu0 0
        %2690 = vmatprep.subr.bf16.mxu0 0
        %2691 = vmatpush1.bf16.msra.mxu0 0
        %2692 = vmatprep.subr.bf16.mxu0 0
        %2693 = vmatpush1.bf16.msra.mxu0 0
        %2694 = vmatprep.subr.bf16.mxu0 0
        %2695 = vmatpush1.bf16.msra.mxu0 0
        %2696 = vmatprep.subr.bf16.mxu0 0
        %2697 = vmatpush1.bf16.msra.mxu0 0
        %2698 = vmatprep.subr.bf16.mxu0 0
        %2699 = vmatpush1.bf16.msra.mxu0 0
        %2700 = vmatprep.subr.bf16.mxu0 0
        %2701 = vmatpush1.bf16.msra.mxu0 0
        %2702 = vmatprep.subr.bf16.mxu0 0
        %2703 = vmatpush1.bf16.msra.mxu0 0
        %2704 = vmatprep.subr.bf16.mxu0 0
        %2705 = vmatpush1.bf16.msra.mxu0 0
        %2706 = vmatprep.subr.bf16.mxu0 0
        %2707 = vmatpush1.bf16.msra.mxu0 0
        %2708 = vmatprep.subr.bf16.mxu0 0
        %2709 = vmatpush1.bf16.msra.mxu0 0
        %2710 = vmatprep.subr.bf16.mxu0 0
        %2711 = vmatpush1.bf16.msra.mxu0 0
        %2712 = vmatprep.subr.bf16.mxu0 0
        %2713 = vmatpush1.bf16.msra.mxu0 0
        %2714 = vmatprep.subr.bf16.mxu0 0
        %2715 = vmatpush1.bf16.msra.mxu0 0
        %2716 = vmatprep.mubr.bf16.mxu0 0
        %2717 = vmatmul.mubr.bf16.gmra.mrb[0].mxu0 %v2682
        %v2718 = vpop.f32.mrb[0].mxu0
        %v2719 = vadd.f32 0.0, %v2718
        %v2720 = vpop.f32.mrb[0].mxu0
        %v2721 = vpop.f32.mrb[0].mxu0
        %v2722 = vadd.f32 0.0, %v2721
        %v2723 = vpop.f32.mrb[0].mxu0
        %2724 = vdwg.mxu0
        %2727 = vrot.lane.b32.xlu0 %v2631, 32
        %v2728 = vpop.permute.xlu0 %2727
        %2729 = vrot.lane.b32.xlu0 %v2634, 32
        %v2730 = vpop.permute.xlu0 %2729
        %2735 = vrot.lane.b32.xlu0 %v2675, 64
        %v2736 = vpop.permute.xlu0 %2735
        %2737 = vrot.lane.b32.xlu0 %v2678, 64
        %v2738 = vpop.permute.xlu0 %2737
        %2743 = vrot.lane.b32.xlu0 %v2719, 96
        %v2744 = vpop.permute.xlu0 %2743
        %2745 = vrot.lane.b32.xlu0 %v2722, 96
        %v2746 = vpop.permute.xlu0 %2745
        %v2749 = vsel %vm878, %v2587, %v2728
        %v2750 = vsel %vm878, %v2590, %v2730
        %v2751 = vsel %vm1362, %v2749, %v2736
        %v2752 = vsel %vm1362, %v2750, %v2738
        %v2753 = vsel %vm1365, %v2751, %v2744
        %v2754 = vsel %vm1365, %v2752, %v2746
        %v2755 = vpack.c.bf16 %v2754, %v2753
        %s2756 = scalar_lea.vmem [#allocation4], 64
        %v2757 = vld [vmem:[%s2756] sm:$0xf]
        %v2758 = vld [vmem:[%s2756 + $0x4] sm:$0xf]
        %v2759 = vld [vmem:[%s2756 + $0x8] sm:$0xf]
        %v2760 = vld [vmem:[%s2756 + $0xc] sm:$0xf]
        %v2761 = vld [vmem:[%s2756 + $0x10] sm:$0xf]
        %v2762 = vld [vmem:[%s2756 + $0x14] sm:$0xf]
        %v2763 = vld [vmem:[%s2756 + $0x18] sm:$0xf]
        %v2764 = vld [vmem:[%s2756 + $0x1c] sm:$0xf]
        %v2765 = vld [vmem:[%s2756 + $0x20] sm:$0xf]
        %v2766 = vld [vmem:[%s2756 + $0x24] sm:$0xf]
        %v2767 = vld [vmem:[%s2756 + $0x28] sm:$0xf]
        %v2768 = vld [vmem:[%s2756 + $0x2c] sm:$0xf]
        %v2769 = vld [vmem:[%s2756 + $0x30] sm:$0xf]
        %v2770 = vld [vmem:[%s2756 + $0x34] sm:$0xf]
        %v2771 = vld [vmem:[%s2756 + $0x38] sm:$0xf]
        %v2772 = vld [vmem:[%s2756 + $0x3c] sm:$0xf]
        %s2773 = scalar_lea.vmem %s6, 1
        %v2774 = vld [vmem:[%s2773] sm:$0x1]
        %v2776 = vlaneseq
        %v2777 = vshrl.u32 %v2776, 7
        %v2778 = vsub.s32 0, %v2777
        %v2779 = vrot.slane %v2774, %v2778
        %v2797 = vunpack.c.l.b16 %v2757
        %v2798 = vunpack.c.l.b16 %v2758
        %v2799 = vunpack.c.l.b16 %v2759
        %v2800 = vunpack.c.l.b16 %v2760
        %v2801 = vunpack.c.l.b16 %v2761
        %v2802 = vunpack.c.l.b16 %v2762
        %v2803 = vunpack.c.l.b16 %v2763
        %v2804 = vunpack.c.l.b16 %v2764
        %v2805 = vunpack.c.l.b16 %v2765
        %v2806 = vunpack.c.l.b16 %v2766
        %v2807 = vunpack.c.l.b16 %v2767
        %v2808 = vunpack.c.l.b16 %v2768
        %v2809 = vunpack.c.l.b16 %v2769
        %v2810 = vunpack.c.l.b16 %v2770
        %v2811 = vunpack.c.l.b16 %v2771
        %v2812 = vunpack.c.l.b16 %v2772
        %v2813 = vpack.c.b16 %v2798, %v2797
        %v2814 = vpack.c.b16 %v2800, %v2799
        %v2815 = vpack.c.b16 %v2802, %v2801
        %v2816 = vpack.c.b16 %v2804, %v2803
        %v2817 = vpack.c.b16 %v2806, %v2805
        %v2818 = vpack.c.b16 %v2808, %v2807
        %v2819 = vpack.c.b16 %v2810, %v2809
        %v2820 = vpack.c.b16 %v2812, %v2811
        %2829 = vmatprep.subr.bf16.mxu0 0
        %2830 = vmatpush1.bf16.msra.mxu0 %v2813
        %2831 = vmatprep.subr.bf16.mxu0 0
        %2832 = vmatpush1.bf16.msra.mxu0 %v2814
        %2833 = vmatprep.subr.bf16.mxu0 0
        %2834 = vmatpush1.bf16.msra.mxu0 %v2815
        %2835 = vmatprep.subr.bf16.mxu0 0
        %2836 = vmatpush1.bf16.msra.mxu0 %v2816
        %2837 = vmatprep.subr.bf16.mxu0 0
        %2838 = vmatpush1.bf16.msra.mxu0 %v2817
        %2839 = vmatprep.subr.bf16.mxu0 0
        %2840 = vmatpush1.bf16.msra.mxu0 %v2818
        %2841 = vmatprep.subr.bf16.mxu0 0
        %2842 = vmatpush1.bf16.msra.mxu0 %v2819
        %2843 = vmatprep.subr.bf16.mxu0 0
        %2844 = vmatpush1.bf16.msra.mxu0 %v2820
        %2845 = vmatprep.subr.bf16.mxu0 0
        %2846 = vmatpush1.bf16.msra.mxu0 0
        %2847 = vmatprep.subr.bf16.mxu0 0
        %2848 = vmatpush1.bf16.msra.mxu0 0
        %2849 = vmatprep.subr.bf16.mxu0 0
        %2850 = vmatpush1.bf16.msra.mxu0 0
        %2851 = vmatprep.subr.bf16.mxu0 0
        %2852 = vmatpush1.bf16.msra.mxu0 0
        %2853 = vmatprep.subr.bf16.mxu0 0
        %2854 = vmatpush1.bf16.msra.mxu0 0
        %2855 = vmatprep.subr.bf16.mxu0 0
        %2856 = vmatpush1.bf16.msra.mxu0 0
        %2857 = vmatprep.subr.bf16.mxu0 0
        %2858 = vmatpush1.bf16.msra.mxu0 0
        %2859 = vmatprep.subr.bf16.mxu0 0
        %2860 = vmatpush1.bf16.msra.mxu0 0
        %2861 = vmatprep.mubr.bf16.mxu0 0
        %2862 = vmatmul.mubr.bf16.gmra.mrb[0].mxu0 %v2755
        %v2863 = vpop.f32.mrb[0].mxu0
        %v2864 = vadd.f32 %v2779, %v2863
        %v2865 = vpop.f32.mrb[0].mxu0
        %v2866 = vpop.f32.mrb[0].mxu0
        %v2867 = vadd.f32 %v2779, %v2866
        %v2868 = vpop.f32.mrb[0].mxu0
        %2869 = vdwg.mxu0
        %v2870 = vadd.f32 %v1889, %v2864
        %v2871 = vadd.f32 %v1890, %v2867
        %s2872 = scalar_lea.vmem %s7, 1
        %v2873 = vld [vmem:[%s2872] sm:$0x1]
        %s2874 = scalar_lea.vmem %s8, 1
        %v2875 = vld [vmem:[%s2874] sm:$0x1]
        %2876 = vadd.xlane.f32.xlu0 %v2870
        %v2877 = vpop.xlane.xlu0 %2876
        %2878 = vadd.xlane.f32.xlu0 %v2871
        %v2879 = vpop.xlane.xlu0 %2878
        %v2880 = vmul.f32 %v2877, %v509
        %v2881 = vmul.f32 %v2879, %v509
        %v2882 = vsub.f32 %v2870, %v2880
        %v2883 = vsub.f32 %v2871, %v2881
        %v2884 = vmul.f32 %v2882, %v2882
        %v2885 = vmul.f32 %v2883, %v2883
        %2886 = vadd.xlane.f32.xlu0 %v2884
        %v2887 = vpop.xlane.xlu0 %2886
        %2888 = vadd.xlane.f32.xlu0 %v2885
        %v2889 = vpop.xlane.xlu0 %2888
        %v2890 = vmul.f32 %v2887, %v509
        %v2891 = vmul.f32 %v2889, %v509
        %v2892 = vadd.f32 %v2890, 1e-05
        %v2893 = vadd.f32 %v2891, 1e-05
        %v2894 = vrsqrt.pop %v2892
        %v2895 = vrsqrt.pop %v2893
        %v2896 = vmul.f32 %v2882, %v2894
        %v2897 = vmul.f32 %v2883, %v2895
        %v2899 = vlaneseq
        %v2900 = vshrl.u32 %v2899, 7
        %v2901 = vsub.s32 0, %v2900
        %v2902 = vrot.slane %v2873, %v2901
        %v2904 = vmul.f32 %v2896, %v2902
        %v2905 = vmul.f32 %v2897, %v2902
        %v2907 = vlaneseq
        %v2908 = vshrl.u32 %v2907, 7
        %v2909 = vsub.s32 0, %v2908
        %v2910 = vrot.slane %v2875, %v2909
        %v2912 = vadd.f32 %v2904, %v2910
        %v2913 = vadd.f32 %v2905, %v2910
        %v2914 = vpack.c.bf16 %v2913, %v2912
        %s2915 = scalar_lea.vmem [#allocation6], 128
        %v2916 = vld [vmem:[%s2915] sm:$0xff]
        %v2917 = vld [vmem:[%s2915 + $0x8] sm:$0xff]
        %v2918 = vld [vmem:[%s2915 + $0x10] sm:$0xff]
        %v2919 = vld [vmem:[%s2915 + $0x18] sm:$0xff]
        %v2920 = vld [vmem:[%s2915 + $0x20] sm:$0xff]
        %v2921 = vld [vmem:[%s2915 + $0x28] sm:$0xff]
        %v2922 = vld [vmem:[%s2915 + $0x30] sm:$0xff]
        %v2923 = vld [vmem:[%s2915 + $0x38] sm:$0xff]
        %v2924 = vld [vmem:[%s2915 + $0x40] sm:$0xff]
        %v2925 = vld [vmem:[%s2915 + $0x48] sm:$0xff]
        %v2926 = vld [vmem:[%s2915 + $0x50] sm:$0xff]
        %v2927 = vld [vmem:[%s2915 + $0x58] sm:$0xff]
        %v2928 = vld [vmem:[%s2915 + $0x60] sm:$0xff]
        %v2929 = vld [vmem:[%s2915 + $0x68] sm:$0xff]
        %v2930 = vld [vmem:[%s2915 + $0x70] sm:$0xff]
        %v2931 = vld [vmem:[%s2915 + $0x78] sm:$0xff]
        %s2932 = scalar_lea.vmem %s10, 2
        %v2933 = vld [vmem:[%s2932] sm:$0x3]
        %v2935 = vlaneseq
        %v2936 = vshrl.u32 %v2935, 7
        %v2937 = vsub.s32 0, %v2936
        %v2938 = vrot.slane %v2933, %v2937
        %v2939 = vlaneseq
        %v2940 = vshrl.u32 %v2939, 7
        %v2941 = vsub.s32 1, %v2940
        %v2942 = vrot.slane %v2933, %v2941
        %v2961 = vunpack.c.l.b16 %v2916
        %v2962 = vunpack.c.h.b16 %v2916
        %v2963 = vunpack.c.l.b16 %v2917
        %v2964 = vunpack.c.h.b16 %v2917
        %v2965 = vunpack.c.l.b16 %v2918
        %v2966 = vunpack.c.h.b16 %v2918
        %v2967 = vunpack.c.l.b16 %v2919
        %v2968 = vunpack.c.h.b16 %v2919
        %v2969 = vunpack.c.l.b16 %v2920
        %v2970 = vunpack.c.h.b16 %v2920
        %v2971 = vunpack.c.l.b16 %v2921
        %v2972 = vunpack.c.h.b16 %v2921
        %v2973 = vunpack.c.l.b16 %v2922
        %v2974 = vunpack.c.h.b16 %v2922
        %v2975 = vunpack.c.l.b16 %v2923
        %v2976 = vunpack.c.h.b16 %v2923
        %v2977 = vunpack.c.l.b16 %v2924
        %v2978 = vunpack.c.h.b16 %v2924
        %v2979 = vunpack.c.l.b16 %v2925
        %v2980 = vunpack.c.h.b16 %v2925
        %v2981 = vunpack.c.l.b16 %v2926
        %v2982 = vunpack.c.h.b16 %v2926
        %v2983 = vunpack.c.l.b16 %v2927
        %v2984 = vunpack.c.h.b16 %v2927
        %v2985 = vunpack.c.l.b16 %v2928
        %v2986 = vunpack.c.h.b16 %v2928
        %v2987 = vunpack.c.l.b16 %v2929
        %v2988 = vunpack.c.h.b16 %v2929
        %v2989 = vunpack.c.l.b16 %v2930
        %v2990 = vunpack.c.h.b16 %v2930
        %v2991 = vunpack.c.l.b16 %v2931
        %v2992 = vunpack.c.h.b16 %v2931
        %v2993 = vpack.c.b16 %v2963, %v2961
        %v2994 = vpack.c.b16 %v2964, %v2962
        %v2995 = vpack.c.b16 %v2967, %v2965
        %v2996 = vpack.c.b16 %v2968, %v2966
        %v2997 = vpack.c.b16 %v2971, %v2969
        %v2998 = vpack.c.b16 %v2972, %v2970
        %v2999 = vpack.c.b16 %v2975, %v2973
        %v3000 = vpack.c.b16 %v2976, %v2974
        %v3001 = vpack.c.b16 %v2979, %v2977
        %v3002 = vpack.c.b16 %v2980, %v2978
        %v3003 = vpack.c.b16 %v2983, %v2981
        %v3004 = vpack.c.b16 %v2984, %v2982
        %v3005 = vpack.c.b16 %v2987, %v2985
        %v3006 = vpack.c.b16 %v2988, %v2986
        %v3007 = vpack.c.b16 %v2991, %v2989
        %v3008 = vpack.c.b16 %v2992, %v2990
        %3025 = vmatprep.subr.bf16.mxu0 %v2994
        %3026 = vmatpush1.bf16.msra.mxu0 %v2993
        %3027 = vmatprep.subr.bf16.mxu0 %v2996
        %3028 = vmatpush1.bf16.msra.mxu0 %v2995
        %3029 = vmatprep.subr.bf16.mxu0 %v2998
        %3030 = vmatpush1.bf16.msra.mxu0 %v2997
        %3031 = vmatprep.subr.bf16.mxu0 %v3000
        %3032 = vmatpush1.bf16.msra.mxu0 %v2999
        %3033 = vmatprep.subr.bf16.mxu0 %v3002
        %3034 = vmatpush1.bf16.msra.mxu0 %v3001
        %3035 = vmatprep.subr.bf16.mxu0 %v3004
        %3036 = vmatpush1.bf16.msra.mxu0 %v3003
        %3037 = vmatprep.subr.bf16.mxu0 %v3006
        %3038 = vmatpush1.bf16.msra.mxu0 %v3005
        %3039 = vmatprep.subr.bf16.mxu0 %v3008
        %3040 = vmatpush1.bf16.msra.mxu0 %v3007
        %3041 = vmatprep.subr.bf16.mxu0 0
        %3042 = vmatpush1.bf16.msra.mxu0 0
        %3043 = vmatprep.subr.bf16.mxu0 0
        %3044 = vmatpush1.bf16.msra.mxu0 0
        %3045 = vmatprep.subr.bf16.mxu0 0
        %3046 = vmatpush1.bf16.msra.mxu0 0
        %3047 = vmatprep.subr.bf16.mxu0 0
        %3048 = vmatpush1.bf16.msra.mxu0 0
        %3049 = vmatprep.subr.bf16.mxu0 0
        %3050 = vmatpush1.bf16.msra.mxu0 0
        %3051 = vmatprep.subr.bf16.mxu0 0
        %3052 = vmatpush1.bf16.msra.mxu0 0
        %3053 = vmatprep.subr.bf16.mxu0 0
        %3054 = vmatpush1.bf16.msra.mxu0 0
        %3055 = vmatprep.subr.bf16.mxu0 0
        %3056 = vmatpush1.bf16.msra.mxu0 0
        %3057 = vmatprep.mubr.bf16.mxu0 0
        %3058 = vmatmul.mubr.bf16.gmra.mrb[0].mxu0 %v2914
        %v3059 = vpop.f32.mrb[0].mxu0
        %v3060 = vadd.f32 %v2938, %v3059
        %v3061 = vpop.f32.mrb[0].mxu0
        %v3062 = vadd.f32 %v2942, %v3061
        %v3063 = vpop.f32.mrb[0].mxu0
        %v3064 = vadd.f32 %v2938, %v3063
        %v3065 = vpop.f32.mrb[0].mxu0
        %v3066 = vadd.f32 %v2942, %v3065
        %3067 = vdwg.mxu0
        %v3068 = vmul.f32 %v3060, 0.5
        %v3069 = vmul.f32 %v3062, 0.5
        %v3070 = vmul.f32 %v3064, 0.5
        %v3071 = vmul.f32 %v3066, 0.5
        %v3072 = vmul.f32 %v3060, 0.044715
        %v3073 = vmul.f32 %v3062, 0.044715
        %v3074 = vmul.f32 %v3064, 0.044715
        %v3075 = vmul.f32 %v3066, 0.044715
        %v3076 = vmul.f32 %v3072, %v3060
        %v3077 = vmul.f32 %v3073, %v3062
        %v3078 = vmul.f32 %v3074, %v3064
        %v3079 = vmul.f32 %v3075, %v3066
        %v3080 = vmul.f32 %v3076, %v3060
        %v3081 = vmul.f32 %v3077, %v3062
        %v3082 = vmul.f32 %v3078, %v3064
        %v3083 = vmul.f32 %v3079, %v3066
        %v3084 = vadd.f32 %v3060, %v3080
        %v3085 = vadd.f32 %v3062, %v3081
        %v3086 = vadd.f32 %v3064, %v3082
        %v3087 = vadd.f32 %v3066, %v3083
        %v3088 = vmul.f32 %v3084, 0.7978846
        %v3089 = vmul.f32 %v3085, 0.7978846
        %v3090 = vmul.f32 %v3086, 0.7978846
        %v3091 = vmul.f32 %v3087, 0.7978846
        %v3092 = vtanh.pop %v3088
        %v3093 = vtanh.pop %v3089
        %v3094 = vtanh.pop %v3090
        %v3095 = vtanh.pop %v3091
        %v3096 = vadd.f32 %v3092, 1.0
        %v3097 = vadd.f32 %v3093, 1.0
        %v3098 = vadd.f32 %v3094, 1.0
        %v3099 = vadd.f32 %v3095, 1.0
        %v3100 = vmul.f32 %v3068, %v3096
        %v3101 = vmul.f32 %v3069, %v3097
        %v3102 = vmul.f32 %v3070, %v3098
        %v3103 = vmul.f32 %v3071, %v3099
        %v3104 = vpack.c.bf16 %v3102, %v3100
        %v3105 = vpack.c.bf16 %v3103, %v3101
        %s3106 = scalar_lea.vmem [#allocation7], 128
        %v3107 = vld [vmem:[%s3106] sm:$0xf]
        %v3108 = vld [vmem:[%s3106 + $0x4] sm:$0xf]
        %v3109 = vld [vmem:[%s3106 + $0x8] sm:$0xf]
        %v3110 = vld [vmem:[%s3106 + $0xc] sm:$0xf]
        %v3111 = vld [vmem:[%s3106 + $0x10] sm:$0xf]
        %v3112 = vld [vmem:[%s3106 + $0x14] sm:$0xf]
        %v3113 = vld [vmem:[%s3106 + $0x18] sm:$0xf]
        %v3114 = vld [vmem:[%s3106 + $0x1c] sm:$0xf]
        %v3115 = vld [vmem:[%s3106 + $0x20] sm:$0xf]
        %v3116 = vld [vmem:[%s3106 + $0x24] sm:$0xf]
        %v3117 = vld [vmem:[%s3106 + $0x28] sm:$0xf]
        %v3118 = vld [vmem:[%s3106 + $0x2c] sm:$0xf]
        %v3119 = vld [vmem:[%s3106 + $0x30] sm:$0xf]
        %v3120 = vld [vmem:[%s3106 + $0x34] sm:$0xf]
        %v3121 = vld [vmem:[%s3106 + $0x38] sm:$0xf]
        %v3122 = vld [vmem:[%s3106 + $0x3c] sm:$0xf]
        %v3123 = vld [vmem:[%s3106 + $0x40] sm:$0xf]
        %v3124 = vld [vmem:[%s3106 + $0x44] sm:$0xf]
        %v3125 = vld [vmem:[%s3106 + $0x48] sm:$0xf]
        %v3126 = vld [vmem:[%s3106 + $0x4c] sm:$0xf]
        %v3127 = vld [vmem:[%s3106 + $0x50] sm:$0xf]
        %v3128 = vld [vmem:[%s3106 + $0x54] sm:$0xf]
        %v3129 = vld [vmem:[%s3106 + $0x58] sm:$0xf]
        %v3130 = vld [vmem:[%s3106 + $0x5c] sm:$0xf]
        %v3131 = vld [vmem:[%s3106 + $0x60] sm:$0xf]
        %v3132 = vld [vmem:[%s3106 + $0x64] sm:$0xf]
        %v3133 = vld [vmem:[%s3106 + $0x68] sm:$0xf]
        %v3134 = vld [vmem:[%s3106 + $0x6c] sm:$0xf]
        %v3135 = vld [vmem:[%s3106 + $0x70] sm:$0xf]
        %v3136 = vld [vmem:[%s3106 + $0x74] sm:$0xf]
        %v3137 = vld [vmem:[%s3106 + $0x78] sm:$0xf]
        %v3138 = vld [vmem:[%s3106 + $0x7c] sm:$0xf]
        %s3139 = scalar_lea.vmem %s12, 1
        %v3140 = vld [vmem:[%s3139] sm:$0x1]
        %v3142 = vlaneseq
        %v3143 = vshrl.u32 %v3142, 7
        %v3144 = vsub.s32 0, %v3143
        %v3145 = vrot.slane %v3140, %v3144
        %v3179 = vunpack.c.l.b16 %v3107
        %v3180 = vunpack.c.l.b16 %v3108
        %v3181 = vunpack.c.l.b16 %v3109
        %v3182 = vunpack.c.l.b16 %v3110
        %v3183 = vunpack.c.l.b16 %v3111
        %v3184 = vunpack.c.l.b16 %v3112
        %v3185 = vunpack.c.l.b16 %v3113
        %v3186 = vunpack.c.l.b16 %v3114
        %v3187 = vunpack.c.l.b16 %v3115
        %v3188 = vunpack.c.l.b16 %v3116
        %v3189 = vunpack.c.l.b16 %v3117
        %v3190 = vunpack.c.l.b16 %v3118
        %v3191 = vunpack.c.l.b16 %v3119
        %v3192 = vunpack.c.l.b16 %v3120
        %v3193 = vunpack.c.l.b16 %v3121
        %v3194 = vunpack.c.l.b16 %v3122
        %v3195 = vunpack.c.l.b16 %v3123
        %v3196 = vunpack.c.l.b16 %v3124
        %v3197 = vunpack.c.l.b16 %v3125
        %v3198 = vunpack.c.l.b16 %v3126
        %v3199 = vunpack.c.l.b16 %v3127
        %v3200 = vunpack.c.l.b16 %v3128
        %v3201 = vunpack.c.l.b16 %v3129
        %v3202 = vunpack.c.l.b16 %v3130
        %v3203 = vunpack.c.l.b16 %v3131
        %v3204 = vunpack.c.l.b16 %v3132
        %v3205 = vunpack.c.l.b16 %v3133
        %v3206 = vunpack.c.l.b16 %v3134
        %v3207 = vunpack.c.l.b16 %v3135
        %v3208 = vunpack.c.l.b16 %v3136
        %v3209 = vunpack.c.l.b16 %v3137
        %v3210 = vunpack.c.l.b16 %v3138
        %v3211 = vpack.c.b16 %v3180, %v3179
        %v3212 = vpack.c.b16 %v3182, %v3181
        %v3213 = vpack.c.b16 %v3184, %v3183
        %v3214 = vpack.c.b16 %v3186, %v3185
        %v3215 = vpack.c.b16 %v3188, %v3187
        %v3216 = vpack.c.b16 %v3190, %v3189
        %v3217 = vpack.c.b16 %v3192, %v3191
        %v3218 = vpack.c.b16 %v3194, %v3193
        %v3219 = vpack.c.b16 %v3196, %v3195
        %v3220 = vpack.c.b16 %v3198, %v3197
        %v3221 = vpack.c.b16 %v3200, %v3199
        %v3222 = vpack.c.b16 %v3202, %v3201
        %v3223 = vpack.c.b16 %v3204, %v3203
        %v3224 = vpack.c.b16 %v3206, %v3205
        %v3225 = vpack.c.b16 %v3208, %v3207
        %v3226 = vpack.c.b16 %v3210, %v3209
        %3243 = vmatprep.subr.bf16.mxu0 0
        %3244 = vmatpush1.bf16.msra.mxu0 %v3211
        %3245 = vmatprep.subr.bf16.mxu0 0
        %3246 = vmatpush1.bf16.msra.mxu0 %v3212
        %3247 = vmatprep.subr.bf16.mxu0 0
        %3248 = vmatpush1.bf16.msra.mxu0 %v3213
        %3249 = vmatprep.subr.bf16.mxu0 0
        %3250 = vmatpush1.bf16.msra.mxu0 %v3214
        %3251 = vmatprep.subr.bf16.mxu0 0
        %3252 = vmatpush1.bf16.msra.mxu0 %v3215
        %3253 = vmatprep.subr.bf16.mxu0 0
        %3254 = vmatpush1.bf16.msra.mxu0 %v3216
        %3255 = vmatprep.subr.bf16.mxu0 0
        %3256 = vmatpush1.bf16.msra.mxu0 %v3217
        %3257 = vmatprep.subr.bf16.mxu0 0
        %3258 = vmatpush1.bf16.msra.mxu0 %v3218
        %3259 = vmatprep.subr.bf16.mxu0 0
        %3260 = vmatpush1.bf16.msra.mxu0 %v3219
        %3261 = vmatprep.subr.bf16.mxu0 0
        %3262 = vmatpush1.bf16.msra.mxu0 %v3220
        %3263 = vmatprep.subr.bf16.mxu0 0
        %3264 = vmatpush1.bf16.msra.mxu0 %v3221
        %3265 = vmatprep.subr.bf16.mxu0 0
        %3266 = vmatpush1.bf16.msra.mxu0 %v3222
        %3267 = vmatprep.subr.bf16.mxu0 0
        %3268 = vmatpush1.bf16.msra.mxu0 %v3223
        %3269 = vmatprep.subr.bf16.mxu0 0
        %3270 = vmatpush1.bf16.msra.mxu0 %v3224
        %3271 = vmatprep.subr.bf16.mxu0 0
        %3272 = vmatpush1.bf16.msra.mxu0 %v3225
        %3273 = vmatprep.subr.bf16.mxu0 0
        %3274 = vmatpush1.bf16.msra.mxu0 %v3226
        %3275 = vmatprep.mubr.bf16.mxu0 %v3105
        %3276 = vmatmul.mubr.bf16.gmra.mrb[0].mxu0 %v3104
        %v3277 = vpop.f32.mrb[0].mxu0
        %v3278 = vadd.f32 %v3145, %v3277
        %v3279 = vpop.f32.mrb[0].mxu0
        %v3280 = vpop.f32.mrb[0].mxu0
        %v3281 = vadd.f32 %v3145, %v3280
        %v3282 = vpop.f32.mrb[0].mxu0
        %3283 = vdwg.mxu0
        %v3284 = vadd.f32 %v2870, %v3278
        %v3285 = vadd.f32 %v2871, %v3281
        %3286 = vst [vmem:[%s499] sm:$0xff] %v3284
        %3287 = vst [vmem:[%s499 + $0x8] sm:$0xff] %v3285
        %p3288 = scmp.lt.s32.totalorder %s27, 1
        %s3289 = scalar_select %p3288, %s27, 1
        %s3290 = smul.addr %s3289, 2
        %s3291 = smul.addr %s3290, 8
        %s3292 = scalar_lea.vmem %s13, %s3291
        // Predicated region
        $region89: #{transformer_encoder.1} parent=71 // pred_check
          %p3293 = pneg %p323
        $region90: #{transformer_encoder.1} parent=71 // pred_check_branch
          %3295 = sbr.rel (%p3293) target = $region92
        $region91: #{transformer_encoder.1} parent=71 // pred_region
          _
        $region92: #{transformer_encoder.1} parent=71 // pred_fallthru
          _
      $region72: #{transformer_encoder.1} parent=5 // pred_fallthru
        _
      %p3296 = scmp.le.s32.totalorder 2, %s22
      // Predicated region
      $region93: #{transformer_encoder.1} parent=5 // pred_check
        %p3297 = pneg %p3296
      $region94: #{transformer_encoder.1} parent=5 // pred_check_branch
        %3299 = sbr.rel (%p3297) target = $region96
      $region95: #{transformer_encoder.1} parent=5 // pred_region
        %s3300 = ssub.s32 %s22, 2
        // Predicated region
        $region97: #{transformer_encoder.1} parent=95 // pred_check
          %p3301 = pneg %p329
        $region98: #{transformer_encoder.1} parent=95 // pred_check_branch
          %3303 = sbr.rel (%p3301) target = $region100
        $region99: #{transformer_encoder.1} parent=95 // pred_region
          %p3304 = scmp.lt.s32.totalorder %s28, 1
          %s3305 = scalar_select %p3304, %s28, 1
          %s3306 = smul.addr %s3305, 2
          %s3307 = smul.addr %s3306, 8
          %s3308 = scalar_lea.vmem %s13, %s3307
        $region100: #{transformer_encoder.1} parent=95 // pred_fallthru
          _
      $region96: #{transformer_encoder.1} parent=5 // pred_fallthru
        _
    $region6: #{transformer_encoder.1} parent=1 // loop_footer
      %s26 = sadd.s32 1, %s22
    $region7: #{transformer_encoder.1} parent=1 // loop_footer_branch
      %21 = sbr.rel target = $region3
    $region8: #{transformer_encoder.1} parent=1 // loop_exit
      _
    %3309 = vsyncpa [#allocation3], 1
    %s3310 = scalar_lea.sflag [#allocation3], 1
    %3311 = vsyncpa %s3310, 1
    %3312 = vsyncpa [#allocation5], 1
    %3313 = vsyncpa [#allocation8], 1

</llo_original>
